<compile_context>
chip_gen: v7x
topology: tpu7x:2x2x1
jax: 0.10.0
libtpu: 0.0.40
codegen_flags: <defaults>
</compile_context>

<pallas_src>
import functools
import math

import numpy as np
import jax
import jax.numpy as jnp
from jax.experimental import pallas as pl
from jax.experimental.pallas import tpu as pltpu


# ----------------------------------------------------------------------------
# parameter-only precomputation (cpb_mlp relative position bias) -- plain JAX
# ----------------------------------------------------------------------------
def compute_rel_pos_bias(params, ws, num_heads):
    rc = jnp.arange(-(ws - 1), ws, dtype=jnp.float32)
    table = jnp.stack(jnp.meshgrid(rc, rc, indexing="ij"), axis=-1)  # (2ws-1, 2ws-1, 2)
    table = table / jnp.float32(ws - 1)
    table = table * 8.0
    table = jnp.sign(table) * jnp.log2(jnp.abs(table) + 1.0) / np.log2(8.0)
    flat = table.reshape(-1, 2)
    h = jnp.maximum(flat @ params["cpb_w1"].T + params["cpb_b1"], 0.0)
    tab = h @ params["cpb_w2"].T                                     # (M, heads)

    coords = jnp.stack(jnp.meshgrid(jnp.arange(ws), jnp.arange(ws), indexing="ij"))
    cf = coords.reshape(2, -1)
    rel = (cf[:, :, None] - cf[:, None, :]).transpose(1, 2, 0)
    rel = rel + jnp.array([ws - 1, ws - 1])
    idx = rel[:, :, 0] * (2 * ws - 1) + rel[:, :, 1]                 # (N, N)
    rpb = tab[idx.reshape(-1)].reshape(ws * ws, ws * ws, num_heads).transpose(2, 0, 1)
    return 16.0 * jax.nn.sigmoid(rpb)                                # (heads, N, N)


def _window_partition_np(x, ws):
    B, H, W, C = x.shape
    x = x.reshape(B, H // ws, ws, W // ws, ws, C)
    return x.transpose(0, 1, 3, 2, 4, 5).reshape(-1, ws, ws, C)


def compute_attn_mask(H, W, ws, ss):
    """Standard Swin shifted-window mask, shape (nW, N, N) of {0, -100}."""
    img = np.zeros((1, H, W, 1), np.float32)
    cnt = 0
    for hs in (slice(0, -ws), slice(-ws, -ss), slice(-ss, None)):
        for wsl in (slice(0, -ws), slice(-ws, -ss), slice(-ss, None)):
            img[:, hs, wsl, :] = cnt
            cnt += 1
    mw = _window_partition_np(img, ws).reshape(-1, ws * ws)
    am = mw[:, None, :] - mw[:, :, None]
    am = np.where(am != 0, np.float32(-100.0), np.float32(0.0))
    return jnp.asarray(am)


# ----------------------------------------------------------------------------
# Pallas kernel: cosine window attention over a block of TW windows
# ----------------------------------------------------------------------------
def _window_attn_kernel(num_heads, x_ref, bias_ref, wqkv_ref, qkvb_ref,
                        scale_ref, wproj_ref, projb_ref, o_ref):
    TW, N, C = x_ref.shape
    hd = C // num_heads

    # Fused QKV projection over all TW windows: (TW*N, C) @ (C, 3C); bf16 in, f32 acc.
    x2 = x_ref[...].reshape(TW * N, C).astype(jnp.bfloat16)
    qkv = jnp.dot(x2, wqkv_ref[...], preferred_element_type=jnp.float32)
    qkv = qkv + qkvb_ref[...]                                        # (TW*N, 3C) f32
    qkv3 = qkv.reshape(TW, N, 3 * C)                                 # leading-dim reshape only

    acc = jnp.zeros((TW * N, C), jnp.float32)
    for h in range(num_heads):                                       # static, small head loop
        q = qkv3[:, :, h * hd:(h + 1) * hd]                          # (TW, N, hd)
        k = qkv3[:, :, C + h * hd:C + (h + 1) * hd]
        v = qkv3[:, :, 2 * C + h * hd:2 * C + (h + 1) * hd]

        # cosine attention: normalize q, k (rsqrt on the EUP), fold in per-head logit scale
        qn = q * jax.lax.rsqrt(jnp.sum(q * q, axis=-1, keepdims=True) + 1e-12)
        kn = k * jax.lax.rsqrt(jnp.sum(k * k, axis=-1, keepdims=True) + 1e-12)
        qn = qn * scale_ref[h]                                       # SMEM scalar

        s = jnp.einsum("bnd,bmd->bnm",
                       qn.astype(jnp.bfloat16), kn.astype(jnp.bfloat16),
                       preferred_element_type=jnp.float32)           # (TW, N, N)
        s = s + bias_ref[:, h]                                       # rel-pos bias (+ shift mask)

        s = s - jnp.max(s, axis=-1, keepdims=True)
        p = jnp.exp(s)
        p = p * pl.reciprocal(jnp.sum(p, axis=-1, keepdims=True), approx=True)

        o_h = jnp.einsum("bnm,bmd->bnd",
                         p.astype(jnp.bfloat16), v.astype(jnp.bfloat16),
                         preferred_element_type=jnp.float32)         # (TW, N, hd)

        # Fold this head's output directly into the projection matmul (no concatenate).
        acc = acc + jnp.dot(o_h.reshape(TW * N, hd).astype(jnp.bfloat16),
                            wproj_ref[h],                            # (hd, C) bf16
                            preferred_element_type=jnp.float32)

    y = acc + projb_ref[...]                                         # (TW*N, C)
    o_ref[...] = y.reshape(TW, N, C).astype(o_ref.dtype)


def _choose_tw(B_, nW, N, C, nh):
    """Windows per grid step: multiple of nW dividing B_, aiming for >=256 matmul rows
    (v6e/v7x MXU fill) while keeping VMEM blocks modest (v7x 64 MiB ceiling)."""
    cands = [d for d in range(nW, B_ + 1, nW) if B_ % d == 0]
    if not cands:
        cands = [B_]

    def fits(d):
        bias_bytes = d * nh * N * N * 4
        x_bytes = d * N * C * 4
        return bias_bytes <= (8 << 20) and x_bytes <= (4 << 20)

    good = [d for d in cands if fits(d)]
    if not good:
        good = cands[:1]
    for d in good:
        if d * N >= 256:
            return d
    return good[-1]


def window_attention_v_forward(x, mask, params, num_heads, rpb=None, prev_v=None):
    """Pallas forward of WindowAttention_V.  x: (num_windows*B, N, C); mask: (nW, N, N) or None."""
    # TODO(synk): prev_v cross-value concat path (attn.reshape(...).mean(-2)) not implemented.
    assert prev_v is None
    B_, N, C = x.shape
    nh = num_heads
    hd = C // nh
    assert C % nh == 0

    if rpb is None:
        ws = int(round(math.sqrt(N)))
        assert ws * ws == N
        rpb = compute_rel_pos_bias(params, ws, nh)                   # (nh, N, N)

    if mask is not None:
        nW = mask.shape[0]
        assert B_ % nW == 0
        per_win = rpb[None] + mask[:, None]                          # (nW, nh, N, N)
    else:
        nW = 1
        per_win = rpb[None]                                          # (1, nh, N, N)

    tw = _choose_tw(B_, nW, N, C, nh)
    # Per-window bias for one grid step; step-independent because tw % nW == 0.
    bias = jnp.tile(per_win, (tw // nW, 1, 1, 1)).astype(jnp.float32)  # (tw, nh, N, N)

    scale = jnp.exp(jnp.minimum(params["logit_scale"].reshape(nh),
                                jnp.float32(np.log(1.0 / 0.01)))).astype(jnp.float32)
    qkv_b = jnp.concatenate([params["q_bias"],
                             jnp.zeros_like(params["v_bias"]),
                             params["v_bias"]]).reshape(1, 3 * C).astype(jnp.float32)
    wqkv = params["qkv_w"].T.astype(jnp.bfloat16)                    # (C, 3C)
    wproj = params["proj_w"].T.reshape(nh, hd, C).astype(jnp.bfloat16)  # per-head proj rows
    projb = params["proj_b"].reshape(1, C).astype(jnp.float32)

    kernel = functools.partial(_window_attn_kernel, nh)
    return pl.pallas_call(
        kernel,
        out_shape=jax.ShapeDtypeStruct((B_, N, C), x.dtype),
        grid_spec=pltpu.PrefetchScalarGridSpec(
            num_scalar_prefetch=0,
            grid=(B_ // tw,),
            in_specs=[
                pl.BlockSpec((tw, N, C), lambda i: (i, 0, 0)),        # x block
                pl.BlockSpec((tw, nh, N, N), lambda i: (0, 0, 0, 0)),  # bias (resident)
                pl.BlockSpec((C, 3 * C), lambda i: (0, 0)),           # qkv weight (bf16, resident)
                pl.BlockSpec((1, 3 * C), lambda i: (0, 0)),           # qkv bias
                pl.BlockSpec(memory_space=pltpu.MemorySpace.SMEM),    # per-head logit scale
                pl.BlockSpec((nh, hd, C), lambda i: (0, 0, 0)),       # proj weight (bf16, resident)
                pl.BlockSpec((1, C), lambda i: (0, 0)),               # proj bias
            ],
            out_specs=pl.BlockSpec((tw, N, C), lambda i: (i, 0, 0)),
        ),
        compiler_params=pltpu.CompilerParams(
            dimension_semantics=("parallel",),                        # independent windows -> both TCs on v7x
        ),
    )(x, bias, wqkv, qkv_b, scale, wproj, projb)


# ----------------------------------------------------------------------------
# pure-JAX reference mirroring the PyTorch forward (prev_v=None, dropout=eval)
# ----------------------------------------------------------------------------
def window_attention_v_reference(x, mask, params, num_heads):
    B_, N, C = x.shape
    nh = num_heads
    hd = C // nh
    ws = int(round(math.sqrt(N)))
    rpb = compute_rel_pos_bias(params, ws, nh)

    qkv_bias = jnp.concatenate([params["q_bias"],
                                jnp.zeros_like(params["v_bias"]),
                                params["v_bias"]])
    qkv = x @ params["qkv_w"].T + qkv_bias
    qkv = qkv.reshape(B_, N, 3, nh, hd).transpose(2, 0, 3, 1, 4)
    q, k, v = qkv[0], qkv[1], qkv[2]
    qn = q / jnp.maximum(jnp.linalg.norm(q, axis=-1, keepdims=True), 1e-12)
    kn = k / jnp.maximum(jnp.linalg.norm(k, axis=-1, keepdims=True), 1e-12)
    scale = jnp.exp(jnp.minimum(params["logit_scale"],
                                jnp.float32(np.log(1.0 / 0.01)))).reshape(1, nh, 1, 1)
    attn = jnp.einsum("bhnd,bhmd->bhnm", qn, kn) * scale
    attn = attn + rpb[None]
    if mask is not None:
        nW = mask.shape[0]
        attn = attn.reshape(B_ // nW, nW, nh, N, N) + mask[None, :, None]
        attn = attn.reshape(B_, nh, N, N)
    attn = jax.nn.softmax(attn, axis=-1)
    out = jnp.einsum("bhnm,bhmd->bhnd", attn, v).transpose(0, 2, 1, 3).reshape(B_, N, C)
    return out @ params["proj_w"].T + params["proj_b"]


# ----------------------------------------------------------------------------
if __name__ == "__main__":
    # small config consistent with the module
    C, nh = 32, 4
    ws, ss = 4, 2
    H = W = 8
    N = ws * ws
    nW = (H // ws) * (W // ws)      # 4 windows per image
    B = 2
    B_ = B * nW                     # (num_windows * B, N, C) input

    key = jax.random.PRNGKey(0)
    ks = jax.random.split(key, 12)

    def init(k, shape, s=0.02):
        return s * jax.random.normal(k, shape, jnp.float32)

    params = {
        "qkv_w": init(ks[0], (3 * C, C)),
        "q_bias": init(ks[1], (C,)),
        "v_bias": init(ks[2], (C,)),
        "proj_w": init(ks[3], (C, C)),
        "proj_b": init(ks[4], (C,)),
        "logit_scale": jnp.log(10.0 * jnp.ones((nh, 1, 1), jnp.float32)),
        "cpb_w1": init(ks[5], (512, 2), 0.1),
        "cpb_b1": init(ks[6], (512,), 0.1),
        "cpb_w2": init(ks[7], (nh, 512), 0.1),
    }

    x = jax.random.normal(ks[8], (B_, N, C), jnp.float32)
    mask = compute_attn_mask(H, W, ws, ss)                  # (nW, N, N)

    # parameter-only precompute, hoisted out of the per-forward path
    rpb = compute_rel_pos_bias(params, ws, nh)

    # shifted (masked) path
    out = jax.block_until_ready(window_attention_v_forward(x, mask, params, nh, rpb=rpb))
    ref = jax.block_until_ready(window_attention_v_reference(x, mask, params, nh))
    # tolerance covers bf16 MXU inputs (f32 accumulation) in the kernel
    np.testing.assert_allclose(np.asarray(out), np.asarray(ref), rtol=5e-2, atol=1e-3)

    # non-shifted (mask=None) path
    out2 = jax.block_until_ready(window_attention_v_forward(x, None, params, nh, rpb=rpb))
    ref2 = jax.block_until_ready(window_attention_v_reference(x, None, params, nh))
    np.testing.assert_allclose(np.asarray(out2), np.asarray(ref2), rtol=5e-2, atol=1e-3)

    print("KERNEL_OK")
</pallas_src>

<mosaic_0001>
module attributes {stable_mosaic.version = 11 : i64} {
  func.func @_window_attn_kernel(%arg0: i32, %arg1: memref<8x16x32xf32, #tpu.memory_space<vmem>>, %arg2: memref<8x4x16x16xf32, #tpu.memory_space<vmem>>, %arg3: memref<32x96xbf16, #tpu.memory_space<vmem>>, %arg4: memref<1x96xf32, #tpu.memory_space<vmem>>, %arg5: memref<4xf32, #tpu.memory_space<smem>>, %arg6: memref<4x8x32xbf16, #tpu.memory_space<vmem>>, %arg7: memref<1x32xf32, #tpu.memory_space<vmem>>, %arg8: memref<8x16x32xf32, #tpu.memory_space<vmem>>) attributes {dimension_semantics = [#tpu.dimension_semantics<parallel>], iteration_bounds = array<i64: 1>, scalar_prefetch = 0 : i64, scratch_operands = 0 : i64, tpu.core_type = #tpu.core_type<tc>, window_params = [{transform_indices = @transform_0, window_bounds = array<i64: 8, 16, 32>}, {pipeline_mode = #tpu.pipeline_mode<synchronous>, transform_indices = @transform_1, window_bounds = array<i64: 8, 4, 16, 16>}, {pipeline_mode = #tpu.pipeline_mode<synchronous>, transform_indices = @transform_2, window_bounds = array<i64: 32, 96>}, {pipeline_mode = #tpu.pipeline_mode<synchronous>, transform_indices = @transform_3, window_bounds = array<i64: 1, 96>}, {transform_indices = @transform_4, window_bounds = array<i64: 4>}, {pipeline_mode = #tpu.pipeline_mode<synchronous>, transform_indices = @transform_5, window_bounds = array<i64: 4, 8, 32>}, {pipeline_mode = #tpu.pipeline_mode<synchronous>, transform_indices = @transform_6, window_bounds = array<i64: 1, 32>}, {transform_indices = @transform_7, window_bounds = array<i64: 8, 16, 32>}]} {
    %c0 = arith.constant 0 : index
    %c0_0 = arith.constant 0 : index
    %c0_1 = arith.constant 0 : index
    %0 = vector.load %arg1[%c0, %c0_0, %c0_1] : memref<8x16x32xf32, #tpu.memory_space<vmem>>, vector<8x16x32xf32>
    %1 = vector.shape_cast %0 : vector<8x16x32xf32> to vector<128x32xf32>
    %2 = arith.truncf %1 : vector<128x32xf32> to vector<128x32xbf16>
    %c0_2 = arith.constant 0 : index
    %c0_3 = arith.constant 0 : index
    %3 = vector.load %arg3[%c0_2, %c0_3] : memref<32x96xbf16, #tpu.memory_space<vmem>>, vector<32x96xbf16>
    %cst = arith.constant dense<0.000000e+00> : vector<128x96xf32>
    %4 = tpu.matmul %2, %3, %cst {dimension_numbers = #tpu.dot_dimension_numbers<[1], [0], [0], [1], [0, 0, 1, 1], [], []>} : vector<128x32xbf16>, vector<32x96xbf16>, vector<128x96xf32> -> vector<128x96xf32>
    %c0_4 = arith.constant 0 : index
    %c0_5 = arith.constant 0 : index
    %5 = vector.load %arg4[%c0_4, %c0_5] : memref<1x96xf32, #tpu.memory_space<vmem>>, vector<1x96xf32>
    %6 = vector.broadcast %5 : vector<1x96xf32> to vector<128x96xf32>
    %7 = arith.addf %4, %6 : vector<128x96xf32>
    %8 = vector.shape_cast %7 : vector<128x96xf32> to vector<8x16x96xf32>
    %cst_6 = arith.constant 0.000000e+00 : f32
    %9 = vector.broadcast %cst_6 : f32 to vector<128x32xf32>
    %10 = vector.extract_strided_slice %8 {offsets = [0, 0, 0], sizes = [8, 16, 8], strides = [1, 1, 1]} : vector<8x16x96xf32> to vector<8x16x8xf32>
    %11 = vector.extract_strided_slice %8 {offsets = [0, 0, 32], sizes = [8, 16, 8], strides = [1, 1, 1]} : vector<8x16x96xf32> to vector<8x16x8xf32>
    %12 = vector.extract_strided_slice %8 {offsets = [0, 0, 64], sizes = [8, 16, 8], strides = [1, 1, 1]} : vector<8x16x96xf32> to vector<8x16x8xf32>
    %13 = arith.mulf %10, %10 : vector<8x16x8xf32>
    %cst_7 = arith.constant dense<0.000000e+00> : vector<8x16xf32>
    %14 = vector.multi_reduction <add>, %13, %cst_7 [2] : vector<8x16x8xf32> to vector<8x16xf32>
    %15 = vector.shape_cast %14 : vector<8x16xf32> to vector<8x16x1xf32>
    %cst_8 = arith.constant 9.99999996E-13 : f32
    %16 = vector.broadcast %cst_8 : f32 to vector<8x16x1xf32>
    %17 = arith.addf %15, %16 : vector<8x16x1xf32>
    %18 = math.rsqrt %17 : vector<8x16x1xf32>
    %19 = vector.broadcast %18 : vector<8x16x1xf32> to vector<8x16x8xf32>
    %20 = arith.mulf %10, %19 : vector<8x16x8xf32>
    %21 = arith.mulf %11, %11 : vector<8x16x8xf32>
    %cst_9 = arith.constant dense<0.000000e+00> : vector<8x16xf32>
    %22 = vector.multi_reduction <add>, %21, %cst_9 [2] : vector<8x16x8xf32> to vector<8x16xf32>
    %23 = vector.shape_cast %22 : vector<8x16xf32> to vector<8x16x1xf32>
    %cst_10 = arith.constant 9.99999996E-13 : f32
    %24 = vector.broadcast %cst_10 : f32 to vector<8x16x1xf32>
    %25 = arith.addf %23, %24 : vector<8x16x1xf32>
    %26 = math.rsqrt %25 : vector<8x16x1xf32>
    %27 = vector.broadcast %26 : vector<8x16x1xf32> to vector<8x16x8xf32>
    %28 = arith.mulf %11, %27 : vector<8x16x8xf32>
    %c0_11 = arith.constant 0 : index
    %29 = memref.load %arg5[%c0_11] : memref<4xf32, #tpu.memory_space<smem>>
    %30 = vector.broadcast %29 : f32 to vector<8x16x8xf32>
    %31 = arith.mulf %20, %30 : vector<8x16x8xf32>
    %32 = arith.truncf %31 : vector<8x16x8xf32> to vector<8x16x8xbf16>
    %33 = arith.truncf %28 : vector<8x16x8xf32> to vector<8x16x8xbf16>
    "tpu.trace_start"() <{level = 10 : i32, message = "bnd,bmd->bnm"}> : () -> ()
    %cst_12 = arith.constant dense<0.000000e+00> : vector<8x16x16xf32>
    %34 = tpu.matmul %32, %33, %cst_12 {dimension_numbers = #tpu.dot_dimension_numbers<[2], [2], [1], [1], [0, 0, 0, 1, 1, 1], [0], [0]>} : vector<8x16x8xbf16>, vector<8x16x8xbf16>, vector<8x16x16xf32> -> vector<8x16x16xf32>
    "tpu.trace_stop"() : () -> ()
    %c0_13 = arith.constant 0 : index
    %c0_14 = arith.constant 0 : index
    %c0_15 = arith.constant 0 : index
    %c0_16 = arith.constant 0 : index
    %35 = vector.load %arg2[%c0_13, %c0_14, %c0_15, %c0_16] : memref<8x4x16x16xf32, #tpu.memory_space<vmem>>, vector<8x1x16x16xf32>
    %36 = vector.shape_cast %35 : vector<8x1x16x16xf32> to vector<8x16x16xf32>
    %37 = arith.addf %34, %36 : vector<8x16x16xf32>
    %cst_17 = arith.constant dense<0xFF800000> : vector<8x16xf32>
    %38 = vector.multi_reduction <maximumf>, %37, %cst_17 [2] : vector<8x16x16xf32> to vector<8x16xf32>
    %39 = vector.shape_cast %38 : vector<8x16xf32> to vector<8x16x1xf32>
    %40 = vector.broadcast %39 : vector<8x16x1xf32> to vector<8x16x16xf32>
    %41 = arith.subf %37, %40 : vector<8x16x16xf32>
    %42 = math.exp %41 : vector<8x16x16xf32>
    %cst_18 = arith.constant dense<0.000000e+00> : vector<8x16xf32>
    %43 = vector.multi_reduction <add>, %42, %cst_18 [2] : vector<8x16x16xf32> to vector<8x16xf32>
    %44 = vector.shape_cast %43 : vector<8x16xf32> to vector<8x16x1xf32>
    %45 = tpu.reciprocal %44 {approx = true} : vector<8x16x1xf32> -> vector<8x16x1xf32>
    %46 = vector.broadcast %45 : vector<8x16x1xf32> to vector<8x16x16xf32>
    %47 = arith.mulf %42, %46 : vector<8x16x16xf32>
    %48 = arith.truncf %47 : vector<8x16x16xf32> to vector<8x16x16xbf16>
    %49 = arith.truncf %12 : vector<8x16x8xf32> to vector<8x16x8xbf16>
    "tpu.trace_start"() <{level = 10 : i32, message = "bnm,bmd->bnd"}> : () -> ()
    %cst_19 = arith.constant dense<0.000000e+00> : vector<8x16x8xf32>
    %50 = tpu.matmul %48, %49, %cst_19 {dimension_numbers = #tpu.dot_dimension_numbers<[2], [1], [1], [2], [0, 0, 0, 1, 1, 2], [0], [0]>} : vector<8x16x16xbf16>, vector<8x16x8xbf16>, vector<8x16x8xf32> -> vector<8x16x8xf32>
    "tpu.trace_stop"() : () -> ()
    %51 = vector.shape_cast %50 : vector<8x16x8xf32> to vector<128x8xf32>
    %52 = arith.truncf %51 : vector<128x8xf32> to vector<128x8xbf16>
    %c0_20 = arith.constant 0 : index
    %c0_21 = arith.constant 0 : index
    %c0_22 = arith.constant 0 : index
    %53 = vector.load %arg6[%c0_20, %c0_21, %c0_22] : memref<4x8x32xbf16, #tpu.memory_space<vmem>>, vector<1x8x32xbf16>
    %54 = vector.shape_cast %53 : vector<1x8x32xbf16> to vector<8x32xbf16>
    %cst_23 = arith.constant dense<0.000000e+00> : vector<128x32xf32>
    %55 = tpu.matmul %52, %54, %cst_23 {dimension_numbers = #tpu.dot_dimension_numbers<[1], [0], [0], [1], [0, 0, 1, 1], [], []>} : vector<128x8xbf16>, vector<8x32xbf16>, vector<128x32xf32> -> vector<128x32xf32>
    %56 = arith.addf %9, %55 : vector<128x32xf32>
    %57 = vector.extract_strided_slice %8 {offsets = [0, 0, 8], sizes = [8, 16, 8], strides = [1, 1, 1]} : vector<8x16x96xf32> to vector<8x16x8xf32>
    %58 = vector.extract_strided_slice %8 {offsets = [0, 0, 40], sizes = [8, 16, 8], strides = [1, 1, 1]} : vector<8x16x96xf32> to vector<8x16x8xf32>
    %59 = vector.extract_strided_slice %8 {offsets = [0, 0, 72], sizes = [8, 16, 8], strides = [1, 1, 1]} : vector<8x16x96xf32> to vector<8x16x8xf32>
    %60 = arith.mulf %57, %57 : vector<8x16x8xf32>
    %cst_24 = arith.constant dense<0.000000e+00> : vector<8x16xf32>
    %61 = vector.multi_reduction <add>, %60, %cst_24 [2] : vector<8x16x8xf32> to vector<8x16xf32>
    %62 = vector.shape_cast %61 : vector<8x16xf32> to vector<8x16x1xf32>
    %cst_25 = arith.constant 9.99999996E-13 : f32
    %63 = vector.broadcast %cst_25 : f32 to vector<8x16x1xf32>
    %64 = arith.addf %62, %63 : vector<8x16x1xf32>
    %65 = math.rsqrt %64 : vector<8x16x1xf32>
    %66 = vector.broadcast %65 : vector<8x16x1xf32> to vector<8x16x8xf32>
    %67 = arith.mulf %57, %66 : vector<8x16x8xf32>
    %68 = arith.mulf %58, %58 : vector<8x16x8xf32>
    %cst_26 = arith.constant dense<0.000000e+00> : vector<8x16xf32>
    %69 = vector.multi_reduction <add>, %68, %cst_26 [2] : vector<8x16x8xf32> to vector<8x16xf32>
    %70 = vector.shape_cast %69 : vector<8x16xf32> to vector<8x16x1xf32>
    %cst_27 = arith.constant 9.99999996E-13 : f32
    %71 = vector.broadcast %cst_27 : f32 to vector<8x16x1xf32>
    %72 = arith.addf %70, %71 : vector<8x16x1xf32>
    %73 = math.rsqrt %72 : vector<8x16x1xf32>
    %74 = vector.broadcast %73 : vector<8x16x1xf32> to vector<8x16x8xf32>
    %75 = arith.mulf %58, %74 : vector<8x16x8xf32>
    %c1 = arith.constant 1 : index
    %76 = memref.load %arg5[%c1] : memref<4xf32, #tpu.memory_space<smem>>
    %77 = vector.broadcast %76 : f32 to vector<8x16x8xf32>
    %78 = arith.mulf %67, %77 : vector<8x16x8xf32>
    %79 = arith.truncf %78 : vector<8x16x8xf32> to vector<8x16x8xbf16>
    %80 = arith.truncf %75 : vector<8x16x8xf32> to vector<8x16x8xbf16>
    "tpu.trace_start"() <{level = 10 : i32, message = "bnd,bmd->bnm"}> : () -> ()
    %cst_28 = arith.constant dense<0.000000e+00> : vector<8x16x16xf32>
    %81 = tpu.matmul %79, %80, %cst_28 {dimension_numbers = #tpu.dot_dimension_numbers<[2], [2], [1], [1], [0, 0, 0, 1, 1, 1], [0], [0]>} : vector<8x16x8xbf16>, vector<8x16x8xbf16>, vector<8x16x16xf32> -> vector<8x16x16xf32>
    "tpu.trace_stop"() : () -> ()
    %c0_29 = arith.constant 0 : index
    %c1_30 = arith.constant 1 : index
    %c0_31 = arith.constant 0 : index
    %c0_32 = arith.constant 0 : index
    %82 = vector.load %arg2[%c0_29, %c1_30, %c0_31, %c0_32] : memref<8x4x16x16xf32, #tpu.memory_space<vmem>>, vector<8x1x16x16xf32>
    %83 = vector.shape_cast %82 : vector<8x1x16x16xf32> to vector<8x16x16xf32>
    %84 = arith.addf %81, %83 : vector<8x16x16xf32>
    %cst_33 = arith.constant dense<0xFF800000> : vector<8x16xf32>
    %85 = vector.multi_reduction <maximumf>, %84, %cst_33 [2] : vector<8x16x16xf32> to vector<8x16xf32>
    %86 = vector.shape_cast %85 : vector<8x16xf32> to vector<8x16x1xf32>
    %87 = vector.broadcast %86 : vector<8x16x1xf32> to vector<8x16x16xf32>
    %88 = arith.subf %84, %87 : vector<8x16x16xf32>
    %89 = math.exp %88 : vector<8x16x16xf32>
    %cst_34 = arith.constant dense<0.000000e+00> : vector<8x16xf32>
    %90 = vector.multi_reduction <add>, %89, %cst_34 [2] : vector<8x16x16xf32> to vector<8x16xf32>
    %91 = vector.shape_cast %90 : vector<8x16xf32> to vector<8x16x1xf32>
    %92 = tpu.reciprocal %91 {approx = true} : vector<8x16x1xf32> -> vector<8x16x1xf32>
    %93 = vector.broadcast %92 : vector<8x16x1xf32> to vector<8x16x16xf32>
    %94 = arith.mulf %89, %93 : vector<8x16x16xf32>
    %95 = arith.truncf %94 : vector<8x16x16xf32> to vector<8x16x16xbf16>
    %96 = arith.truncf %59 : vector<8x16x8xf32> to vector<8x16x8xbf16>
    "tpu.trace_start"() <{level = 10 : i32, message = "bnm,bmd->bnd"}> : () -> ()
    %cst_35 = arith.constant dense<0.000000e+00> : vector<8x16x8xf32>
    %97 = tpu.matmul %95, %96, %cst_35 {dimension_numbers = #tpu.dot_dimension_numbers<[2], [1], [1], [2], [0, 0, 0, 1, 1, 2], [0], [0]>} : vector<8x16x16xbf16>, vector<8x16x8xbf16>, vector<8x16x8xf32> -> vector<8x16x8xf32>
    "tpu.trace_stop"() : () -> ()
    %98 = vector.shape_cast %97 : vector<8x16x8xf32> to vector<128x8xf32>
    %99 = arith.truncf %98 : vector<128x8xf32> to vector<128x8xbf16>
    %c1_36 = arith.constant 1 : index
    %c0_37 = arith.constant 0 : index
    %c0_38 = arith.constant 0 : index
    %100 = vector.load %arg6[%c1_36, %c0_37, %c0_38] : memref<4x8x32xbf16, #tpu.memory_space<vmem>>, vector<1x8x32xbf16>
    %101 = vector.shape_cast %100 : vector<1x8x32xbf16> to vector<8x32xbf16>
    %cst_39 = arith.constant dense<0.000000e+00> : vector<128x32xf32>
    %102 = tpu.matmul %99, %101, %cst_39 {dimension_numbers = #tpu.dot_dimension_numbers<[1], [0], [0], [1], [0, 0, 1, 1], [], []>} : vector<128x8xbf16>, vector<8x32xbf16>, vector<128x32xf32> -> vector<128x32xf32>
    %103 = arith.addf %56, %102 : vector<128x32xf32>
    %104 = vector.extract_strided_slice %8 {offsets = [0, 0, 16], sizes = [8, 16, 8], strides = [1, 1, 1]} : vector<8x16x96xf32> to vector<8x16x8xf32>
    %105 = vector.extract_strided_slice %8 {offsets = [0, 0, 48], sizes = [8, 16, 8], strides = [1, 1, 1]} : vector<8x16x96xf32> to vector<8x16x8xf32>
    %106 = vector.extract_strided_slice %8 {offsets = [0, 0, 80], sizes = [8, 16, 8], strides = [1, 1, 1]} : vector<8x16x96xf32> to vector<8x16x8xf32>
    %107 = arith.mulf %104, %104 : vector<8x16x8xf32>
    %cst_40 = arith.constant dense<0.000000e+00> : vector<8x16xf32>
    %108 = vector.multi_reduction <add>, %107, %cst_40 [2] : vector<8x16x8xf32> to vector<8x16xf32>
    %109 = vector.shape_cast %108 : vector<8x16xf32> to vector<8x16x1xf32>
    %cst_41 = arith.constant 9.99999996E-13 : f32
    %110 = vector.broadcast %cst_41 : f32 to vector<8x16x1xf32>
    %111 = arith.addf %109, %110 : vector<8x16x1xf32>
    %112 = math.rsqrt %111 : vector<8x16x1xf32>
    %113 = vector.broadcast %112 : vector<8x16x1xf32> to vector<8x16x8xf32>
    %114 = arith.mulf %104, %113 : vector<8x16x8xf32>
    %115 = arith.mulf %105, %105 : vector<8x16x8xf32>
    %cst_42 = arith.constant dense<0.000000e+00> : vector<8x16xf32>
    %116 = vector.multi_reduction <add>, %115, %cst_42 [2] : vector<8x16x8xf32> to vector<8x16xf32>
    %117 = vector.shape_cast %116 : vector<8x16xf32> to vector<8x16x1xf32>
    %cst_43 = arith.constant 9.99999996E-13 : f32
    %118 = vector.broadcast %cst_43 : f32 to vector<8x16x1xf32>
    %119 = arith.addf %117, %118 : vector<8x16x1xf32>
    %120 = math.rsqrt %119 : vector<8x16x1xf32>
    %121 = vector.broadcast %120 : vector<8x16x1xf32> to vector<8x16x8xf32>
    %122 = arith.mulf %105, %121 : vector<8x16x8xf32>
    %c2 = arith.constant 2 : index
    %123 = memref.load %arg5[%c2] : memref<4xf32, #tpu.memory_space<smem>>
    %124 = vector.broadcast %123 : f32 to vector<8x16x8xf32>
    %125 = arith.mulf %114, %124 : vector<8x16x8xf32>
    %126 = arith.truncf %125 : vector<8x16x8xf32> to vector<8x16x8xbf16>
    %127 = arith.truncf %122 : vector<8x16x8xf32> to vector<8x16x8xbf16>
    "tpu.trace_start"() <{level = 10 : i32, message = "bnd,bmd->bnm"}> : () -> ()
    %cst_44 = arith.constant dense<0.000000e+00> : vector<8x16x16xf32>
    %128 = tpu.matmul %126, %127, %cst_44 {dimension_numbers = #tpu.dot_dimension_numbers<[2], [2], [1], [1], [0, 0, 0, 1, 1, 1], [0], [0]>} : vector<8x16x8xbf16>, vector<8x16x8xbf16>, vector<8x16x16xf32> -> vector<8x16x16xf32>
    "tpu.trace_stop"() : () -> ()
    %c0_45 = arith.constant 0 : index
    %c2_46 = arith.constant 2 : index
    %c0_47 = arith.constant 0 : index
    %c0_48 = arith.constant 0 : index
    %129 = vector.load %arg2[%c0_45, %c2_46, %c0_47, %c0_48] : memref<8x4x16x16xf32, #tpu.memory_space<vmem>>, vector<8x1x16x16xf32>
    %130 = vector.shape_cast %129 : vector<8x1x16x16xf32> to vector<8x16x16xf32>
    %131 = arith.addf %128, %130 : vector<8x16x16xf32>
    %cst_49 = arith.constant dense<0xFF800000> : vector<8x16xf32>
    %132 = vector.multi_reduction <maximumf>, %131, %cst_49 [2] : vector<8x16x16xf32> to vector<8x16xf32>
    %133 = vector.shape_cast %132 : vector<8x16xf32> to vector<8x16x1xf32>
    %134 = vector.broadcast %133 : vector<8x16x1xf32> to vector<8x16x16xf32>
    %135 = arith.subf %131, %134 : vector<8x16x16xf32>
    %136 = math.exp %135 : vector<8x16x16xf32>
    %cst_50 = arith.constant dense<0.000000e+00> : vector<8x16xf32>
    %137 = vector.multi_reduction <add>, %136, %cst_50 [2] : vector<8x16x16xf32> to vector<8x16xf32>
    %138 = vector.shape_cast %137 : vector<8x16xf32> to vector<8x16x1xf32>
    %139 = tpu.reciprocal %138 {approx = true} : vector<8x16x1xf32> -> vector<8x16x1xf32>
    %140 = vector.broadcast %139 : vector<8x16x1xf32> to vector<8x16x16xf32>
    %141 = arith.mulf %136, %140 : vector<8x16x16xf32>
    %142 = arith.truncf %141 : vector<8x16x16xf32> to vector<8x16x16xbf16>
    %143 = arith.truncf %106 : vector<8x16x8xf32> to vector<8x16x8xbf16>
    "tpu.trace_start"() <{level = 10 : i32, message = "bnm,bmd->bnd"}> : () -> ()
    %cst_51 = arith.constant dense<0.000000e+00> : vector<8x16x8xf32>
    %144 = tpu.matmul %142, %143, %cst_51 {dimension_numbers = #tpu.dot_dimension_numbers<[2], [1], [1], [2], [0, 0, 0, 1, 1, 2], [0], [0]>} : vector<8x16x16xbf16>, vector<8x16x8xbf16>, vector<8x16x8xf32> -> vector<8x16x8xf32>
    "tpu.trace_stop"() : () -> ()
    %145 = vector.shape_cast %144 : vector<8x16x8xf32> to vector<128x8xf32>
    %146 = arith.truncf %145 : vector<128x8xf32> to vector<128x8xbf16>
    %c2_52 = arith.constant 2 : index
    %c0_53 = arith.constant 0 : index
    %c0_54 = arith.constant 0 : index
    %147 = vector.load %arg6[%c2_52, %c0_53, %c0_54] : memref<4x8x32xbf16, #tpu.memory_space<vmem>>, vector<1x8x32xbf16>
    %148 = vector.shape_cast %147 : vector<1x8x32xbf16> to vector<8x32xbf16>
    %cst_55 = arith.constant dense<0.000000e+00> : vector<128x32xf32>
    %149 = tpu.matmul %146, %148, %cst_55 {dimension_numbers = #tpu.dot_dimension_numbers<[1], [0], [0], [1], [0, 0, 1, 1], [], []>} : vector<128x8xbf16>, vector<8x32xbf16>, vector<128x32xf32> -> vector<128x32xf32>
    %150 = arith.addf %103, %149 : vector<128x32xf32>
    %151 = vector.extract_strided_slice %8 {offsets = [0, 0, 24], sizes = [8, 16, 8], strides = [1, 1, 1]} : vector<8x16x96xf32> to vector<8x16x8xf32>
    %152 = vector.extract_strided_slice %8 {offsets = [0, 0, 56], sizes = [8, 16, 8], strides = [1, 1, 1]} : vector<8x16x96xf32> to vector<8x16x8xf32>
    %153 = vector.extract_strided_slice %8 {offsets = [0, 0, 88], sizes = [8, 16, 8], strides = [1, 1, 1]} : vector<8x16x96xf32> to vector<8x16x8xf32>
    %154 = arith.mulf %151, %151 : vector<8x16x8xf32>
    %cst_56 = arith.constant dense<0.000000e+00> : vector<8x16xf32>
    %155 = vector.multi_reduction <add>, %154, %cst_56 [2] : vector<8x16x8xf32> to vector<8x16xf32>
    %156 = vector.shape_cast %155 : vector<8x16xf32> to vector<8x16x1xf32>
    %cst_57 = arith.constant 9.99999996E-13 : f32
    %157 = vector.broadcast %cst_57 : f32 to vector<8x16x1xf32>
    %158 = arith.addf %156, %157 : vector<8x16x1xf32>
    %159 = math.rsqrt %158 : vector<8x16x1xf32>
    %160 = vector.broadcast %159 : vector<8x16x1xf32> to vector<8x16x8xf32>
    %161 = arith.mulf %151, %160 : vector<8x16x8xf32>
    %162 = arith.mulf %152, %152 : vector<8x16x8xf32>
    %cst_58 = arith.constant dense<0.000000e+00> : vector<8x16xf32>
    %163 = vector.multi_reduction <add>, %162, %cst_58 [2] : vector<8x16x8xf32> to vector<8x16xf32>
    %164 = vector.shape_cast %163 : vector<8x16xf32> to vector<8x16x1xf32>
    %cst_59 = arith.constant 9.99999996E-13 : f32
    %165 = vector.broadcast %cst_59 : f32 to vector<8x16x1xf32>
    %166 = arith.addf %164, %165 : vector<8x16x1xf32>
    %167 = math.rsqrt %166 : vector<8x16x1xf32>
    %168 = vector.broadcast %167 : vector<8x16x1xf32> to vector<8x16x8xf32>
    %169 = arith.mulf %152, %168 : vector<8x16x8xf32>
    %c3 = arith.constant 3 : index
    %170 = memref.load %arg5[%c3] : memref<4xf32, #tpu.memory_space<smem>>
    %171 = vector.broadcast %170 : f32 to vector<8x16x8xf32>
    %172 = arith.mulf %161, %171 : vector<8x16x8xf32>
    %173 = arith.truncf %172 : vector<8x16x8xf32> to vector<8x16x8xbf16>
    %174 = arith.truncf %169 : vector<8x16x8xf32> to vector<8x16x8xbf16>
    "tpu.trace_start"() <{level = 10 : i32, message = "bnd,bmd->bnm"}> : () -> ()
    %cst_60 = arith.constant dense<0.000000e+00> : vector<8x16x16xf32>
    %175 = tpu.matmul %173, %174, %cst_60 {dimension_numbers = #tpu.dot_dimension_numbers<[2], [2], [1], [1], [0, 0, 0, 1, 1, 1], [0], [0]>} : vector<8x16x8xbf16>, vector<8x16x8xbf16>, vector<8x16x16xf32> -> vector<8x16x16xf32>
    "tpu.trace_stop"() : () -> ()
    %c0_61 = arith.constant 0 : index
    %c3_62 = arith.constant 3 : index
    %c0_63 = arith.constant 0 : index
    %c0_64 = arith.constant 0 : index
    %176 = vector.load %arg2[%c0_61, %c3_62, %c0_63, %c0_64] : memref<8x4x16x16xf32, #tpu.memory_space<vmem>>, vector<8x1x16x16xf32>
    %177 = vector.shape_cast %176 : vector<8x1x16x16xf32> to vector<8x16x16xf32>
    %178 = arith.addf %175, %177 : vector<8x16x16xf32>
    %cst_65 = arith.constant dense<0xFF800000> : vector<8x16xf32>
    %179 = vector.multi_reduction <maximumf>, %178, %cst_65 [2] : vector<8x16x16xf32> to vector<8x16xf32>
    %180 = vector.shape_cast %179 : vector<8x16xf32> to vector<8x16x1xf32>
    %181 = vector.broadcast %180 : vector<8x16x1xf32> to vector<8x16x16xf32>
    %182 = arith.subf %178, %181 : vector<8x16x16xf32>
    %183 = math.exp %182 : vector<8x16x16xf32>
    %cst_66 = arith.constant dense<0.000000e+00> : vector<8x16xf32>
    %184 = vector.multi_reduction <add>, %183, %cst_66 [2] : vector<8x16x16xf32> to vector<8x16xf32>
    %185 = vector.shape_cast %184 : vector<8x16xf32> to vector<8x16x1xf32>
    %186 = tpu.reciprocal %185 {approx = true} : vector<8x16x1xf32> -> vector<8x16x1xf32>
    %187 = vector.broadcast %186 : vector<8x16x1xf32> to vector<8x16x16xf32>
    %188 = arith.mulf %183, %187 : vector<8x16x16xf32>
    %189 = arith.truncf %188 : vector<8x16x16xf32> to vector<8x16x16xbf16>
    %190 = arith.truncf %153 : vector<8x16x8xf32> to vector<8x16x8xbf16>
    "tpu.trace_start"() <{level = 10 : i32, message = "bnm,bmd->bnd"}> : () -> ()
    %cst_67 = arith.constant dense<0.000000e+00> : vector<8x16x8xf32>
    %191 = tpu.matmul %189, %190, %cst_67 {dimension_numbers = #tpu.dot_dimension_numbers<[2], [1], [1], [2], [0, 0, 0, 1, 1, 2], [0], [0]>} : vector<8x16x16xbf16>, vector<8x16x8xbf16>, vector<8x16x8xf32> -> vector<8x16x8xf32>
    "tpu.trace_stop"() : () -> ()
    %192 = vector.shape_cast %191 : vector<8x16x8xf32> to vector<128x8xf32>
    %193 = arith.truncf %192 : vector<128x8xf32> to vector<128x8xbf16>
    %c3_68 = arith.constant 3 : index
    %c0_69 = arith.constant 0 : index
    %c0_70 = arith.constant 0 : index
    %194 = vector.load %arg6[%c3_68, %c0_69, %c0_70] : memref<4x8x32xbf16, #tpu.memory_space<vmem>>, vector<1x8x32xbf16>
    %195 = vector.shape_cast %194 : vector<1x8x32xbf16> to vector<8x32xbf16>
    %cst_71 = arith.constant dense<0.000000e+00> : vector<128x32xf32>
    %196 = tpu.matmul %193, %195, %cst_71 {dimension_numbers = #tpu.dot_dimension_numbers<[1], [0], [0], [1], [0, 0, 1, 1], [], []>} : vector<128x8xbf16>, vector<8x32xbf16>, vector<128x32xf32> -> vector<128x32xf32>
    %197 = arith.addf %150, %196 : vector<128x32xf32>
    %c0_72 = arith.constant 0 : index
    %c0_73 = arith.constant 0 : index
    %198 = vector.load %arg7[%c0_72, %c0_73] : memref<1x32xf32, #tpu.memory_space<vmem>>, vector<1x32xf32>
    %199 = vector.broadcast %198 : vector<1x32xf32> to vector<128x32xf32>
    %200 = arith.addf %197, %199 : vector<128x32xf32>
    %201 = vector.shape_cast %200 : vector<128x32xf32> to vector<8x16x32xf32>
    %c0_74 = arith.constant 0 : index
    %c0_75 = arith.constant 0 : index
    %c0_76 = arith.constant 0 : index
    %202 = vector.load %arg8[%c0_74, %c0_75, %c0_76] : memref<8x16x32xf32, #tpu.memory_space<vmem>>, vector<8x16x32xf32>
    tpu.vector_store %arg8[%c0_74, %c0_75, %c0_76], %201 {strides = array<i32>} : memref<8x16x32xf32, #tpu.memory_space<vmem>>, vector<8x16x32xf32>,
    return
  }
  func.func @transform_0(%arg0: i32) -> (i32, i32, i32) {
    %c0_i32 = arith.constant 0 : i32
    %c0_i32_0 = arith.constant 0 : i32
    %c0_i32_1 = arith.constant 0 : i32
    return %arg0, %c0_i32, %c0_i32_0 : i32, i32, i32
  }
  func.func @transform_1(%arg0: i32) -> (i32, i32, i32, i32) {
    %c0_i32 = arith.constant 0 : i32
    %c0_i32_0 = arith.constant 0 : i32
    %c0_i32_1 = arith.constant 0 : i32
    %c0_i32_2 = arith.constant 0 : i32
    %c0_i32_3 = arith.constant 0 : i32
    return %c0_i32, %c0_i32_0, %c0_i32_1, %c0_i32_2 : i32, i32, i32, i32
  }
  func.func @transform_2(%arg0: i32) -> (i32, i32) {
    %c0_i32 = arith.constant 0 : i32
    %c0_i32_0 = arith.constant 0 : i32
    %c0_i32_1 = arith.constant 0 : i32
    return %c0_i32, %c0_i32_0 : i32, i32
  }
  func.func @transform_3(%arg0: i32) -> (i32, i32) {
    %c0_i32 = arith.constant 0 : i32
    %c0_i32_0 = arith.constant 0 : i32
    %c0_i32_1 = arith.constant 0 : i32
    return %c0_i32, %c0_i32_0 : i32, i32
  }
  func.func @transform_4(%arg0: i32) -> i32 {
    %c0_i32 = arith.constant 0 : i32
    %c0_i32_0 = arith.constant 0 : i32
    return %c0_i32 : i32
  }
  func.func @transform_5(%arg0: i32) -> (i32, i32, i32) {
    %c0_i32 = arith.constant 0 : i32
    %c0_i32_0 = arith.constant 0 : i32
    %c0_i32_1 = arith.constant 0 : i32
    %c0_i32_2 = arith.constant 0 : i32
    return %c0_i32, %c0_i32_0, %c0_i32_1 : i32, i32, i32
  }
  func.func @transform_6(%arg0: i32) -> (i32, i32) {
    %c0_i32 = arith.constant 0 : i32
    %c0_i32_0 = arith.constant 0 : i32
    %c0_i32_1 = arith.constant 0 : i32
    return %c0_i32, %c0_i32_0 : i32, i32
  }
  func.func @transform_7(%arg0: i32) -> (i32, i32, i32) {
    %c0_i32 = arith.constant 0 : i32
    %c0_i32_0 = arith.constant 0 : i32
    %c0_i32_1 = arith.constant 0 : i32
    return %arg0, %c0_i32, %c0_i32_0 : i32, i32, i32
  }
}

</mosaic_0001>

<llo_original>
// kernel: tpu_custom_call.1
$region0: #{tpu_custom_call.1}
  #allocation0 [shape = 'u32[]', space=smem, size = 0x4, offset = 0x4, fixed_abs, tag = 'smem constant byte address 0x4 - core index']
  #allocation1 [shape = 'u32[144,128]{1,0:T(1,128)}', space=vmem, size = 0x12000, scoped, tag = 'internal scratch']
  %s0 = inlined_call_operand.hbm [shape: f32[8,16,32], index: 0, kind: input, shape index: {}]
  %s1 = inlined_call_operand.hbm [shape: f32[8,4,16,16], index: 1, kind: input, shape index: {}]
  %s2 = inlined_call_operand.hbm [shape: bf16[32,96], index: 2, kind: input, shape index: {}]
  %s3 = inlined_call_operand.vmem [shape: f32[1,96], index: 3, kind: input, shape index: {}]
  %s4 = inlined_call_operand.vmem [shape: f32[4], index: 4, kind: input, shape index: {}]
  %s5 = inlined_call_operand.vmem [shape: bf16[4,8,32], index: 5, kind: input, shape index: {}]
  %s6 = inlined_call_operand.vmem [shape: f32[1,32], index: 6, kind: input, shape index: {}]
  %s7 = inlined_call_operand.hbm [shape: f32[8,16,32], index: 7, kind: output, shape index: {}]
  %s8 = sld [smem:[#allocation0]]
  $region54: #{tpu_custom_call.1} parent=0
    _
  %s10 = ssub.s32 1, %s8
  %s11 = scalar_select 0, %s10, %s8
  $region1: #{tpu_custom_call.1} parent=0
    #allocation2 [shape = 'u8[65536]{0}', space=vmem, size = 0x10000, scoped, tag = 'input window, operand 0, single buffered']
    #allocation3 [shape = 's32[1]{0}', space=sflag, size = 0x4, scoped, tag = 'scoped memory for tpu_custom_call.1']
    #allocation4 [shape = 's32[1]{0}', space=sflag, size = 0x4, scoped, tag = 'scoped memory for tpu_custom_call.1']
    #allocation5 [shape = 's32[1]{0}', space=sflag, size = 0x4, scoped, tag = 'scoped memory for tpu_custom_call.1']
    #allocation6 [shape = 'u8[262144]{0}', space=vmem, size = 0x40000, scoped, tag = 'input window, operand 1, single buffered']
    #allocation7 [shape = 's32[1]{0}', space=sflag, size = 0x4, scoped, tag = 'scoped memory for tpu_custom_call.1']
    #allocation8 [shape = 'u8[8192]{0}', space=vmem, size = 0x2000, scoped, tag = 'input window, operand 2, single buffered']
    #allocation9 [shape = 'u8[512]{0}', space=smem, size = 0x200, scoped, tag = 'input window, operand 4, single buffered']
    #allocation10 [shape = 'u8[65536]{0}', space=vmem, size = 0x10000, scoped, tag = 'output window, operand 0, single buffered']
    %12 = vsyncpa [#allocation3], 0
    %13 = vsyncpa [#allocation7], 0
    %14 = vsyncpa [#allocation5], 0
    %15 = vsyncpa [#allocation4], 0
    // Predicated region
    $region2: #{tpu_custom_call.1} parent=1 // pred_check
      _
    $region3: #{tpu_custom_call.1} parent=1 // pred_check_branch
      %17 = sbr.rel (0) target = $region5
    $region4: #{tpu_custom_call.1} parent=1 // pred_region
      %s19 = ssub.s32 2048, 2048
      %20 = vsyncadd [#allocation3], %s19
      %s21 = sshll.u32 [#allocation2], 4
      %s22 = int_to_ptr.vmem [resolvable:$true] %s21
      %27 = dma.hbm_to_vmem [thread:$0]  %s0, 2048, %s22, [#allocation3], 128, 128, 8
    $region5: #{tpu_custom_call.1} parent=1 // pred_fallthru
      _
    // Predicated region
    $region6: #{tpu_custom_call.1} parent=1 // pred_check
      _
    $region7: #{tpu_custom_call.1} parent=1 // pred_check_branch
      %29 = sbr.rel (0) target = $region9
    $region8: #{tpu_custom_call.1} parent=1 // pred_region
      %s31 = ssub.s32 8192, 8192
      %32 = vsyncadd [#allocation7], %s31
      %s33 = sshll.u32 [#allocation6], 4
      %s34 = int_to_ptr.vmem [resolvable:$true] %s33
      %39 = dma.hbm_to_vmem [thread:$0]  %s1, 8192, %s34, [#allocation7], 128, 128, 8
    $region9: #{tpu_custom_call.1} parent=1 // pred_fallthru
      _
    // Predicated region
    $region10: #{tpu_custom_call.1} parent=1 // pred_check
      _
    $region11: #{tpu_custom_call.1} parent=1 // pred_check_branch
      %41 = sbr.rel (0) target = $region13
    $region12: #{tpu_custom_call.1} parent=1 // pred_region
      %s43 = ssub.s32 256, 256
      %44 = vsyncadd [#allocation7], %s43
      %s45 = sshll.u32 [#allocation8], 4
      %s46 = int_to_ptr.vmem [resolvable:$true] %s45
      %51 = dma.hbm_to_vmem [thread:$0]  %s2, 256, %s46, [#allocation7], 64, 64, 4
    $region13: #{tpu_custom_call.1} parent=1 // pred_fallthru
      _
    // Predicated region
    $region14: #{tpu_custom_call.1} parent=1 // pred_check
      _
    $region15: #{tpu_custom_call.1} parent=1 // pred_check_branch
      %53 = sbr.rel (0) target = $region17
    $region16: #{tpu_custom_call.1} parent=1 // pred_region
      _
    $region17: #{tpu_custom_call.1} parent=1 // pred_fallthru
      _
    // Predicated region
    $region18: #{tpu_custom_call.1} parent=1 // pred_check
      _
    $region19: #{tpu_custom_call.1} parent=1 // pred_check_branch
      %55 = sbr.rel (0) target = $region21
    $region20: #{tpu_custom_call.1} parent=1 // pred_region
      %s57 = ssub.s32 16, 16
      %58 = vsyncadd [#allocation5], %s57
      %s60 = sshll.u32 %s4, 4
      %s61 = int_to_ptr.vmem [resolvable:$true] %s60
      %63 = dma.vmem_to_smem %s61, 16, [#allocation9], [#allocation5]
    $region21: #{tpu_custom_call.1} parent=1 // pred_fallthru
      _
    // Predicated region
    $region22: #{tpu_custom_call.1} parent=1 // pred_check
      _
    $region23: #{tpu_custom_call.1} parent=1 // pred_check_branch
      %65 = sbr.rel (0) target = $region25
    $region24: #{tpu_custom_call.1} parent=1 // pred_region
      _
    $region25: #{tpu_custom_call.1} parent=1 // pred_fallthru
      _
    // Predicated region
    $region26: #{tpu_custom_call.1} parent=1 // pred_check
      _
    $region27: #{tpu_custom_call.1} parent=1 // pred_check_branch
      %67 = sbr.rel (0) target = $region29
    $region28: #{tpu_custom_call.1} parent=1 // pred_region
      _
    $region29: #{tpu_custom_call.1} parent=1 // pred_fallthru
      _
    // Predicated region
    $region30: #{tpu_custom_call.1} parent=1 // pred_check
      _
    $region31: #{tpu_custom_call.1} parent=1 // pred_check_branch
      %69 = sbr.rel (0) target = $region33
    $region32: #{tpu_custom_call.1} parent=1 // pred_region
      %70 = dma.done [#allocation3], 2048
    $region33: #{tpu_custom_call.1} parent=1 // pred_fallthru
      _
    // Predicated region
    $region34: #{tpu_custom_call.1} parent=1 // pred_check
      _
    $region35: #{tpu_custom_call.1} parent=1 // pred_check_branch
      %72 = sbr.rel (0) target = $region37
    $region36: #{tpu_custom_call.1} parent=1 // pred_region
      %73 = dma.done [#allocation7], 8192
    $region37: #{tpu_custom_call.1} parent=1 // pred_fallthru
      _
    // Predicated region
    $region38: #{tpu_custom_call.1} parent=1 // pred_check
      _
    $region39: #{tpu_custom_call.1} parent=1 // pred_check_branch
      %75 = sbr.rel (0) target = $region41
    $region40: #{tpu_custom_call.1} parent=1 // pred_region
      %76 = dma.done [#allocation7], 256
    $region41: #{tpu_custom_call.1} parent=1 // pred_fallthru
      _
    // Predicated region
    $region42: #{tpu_custom_call.1} parent=1 // pred_check
      _
    $region43: #{tpu_custom_call.1} parent=1 // pred_check_branch
      %78 = sbr.rel (0) target = $region45
    $region44: #{tpu_custom_call.1} parent=1 // pred_region
      %79 = dma.done [#allocation5], 16
    $region45: #{tpu_custom_call.1} parent=1 // pred_fallthru
      _
    %80 = sfence
    %v82 = vld [vmem:[#allocation2] sm:$0xff]
    %v83 = vld [vmem:[#allocation2 + $0x8] sm:$0xff]
    %v84 = vld [vmem:[#allocation2 + $0x10] sm:$0xff]
    %v85 = vld [vmem:[#allocation2 + $0x18] sm:$0xff]
    %v86 = vld [vmem:[#allocation2 + $0x20] sm:$0xff]
    %v87 = vld [vmem:[#allocation2 + $0x28] sm:$0xff]
    %v88 = vld [vmem:[#allocation2 + $0x30] sm:$0xff]
    %v89 = vld [vmem:[#allocation2 + $0x38] sm:$0xff]
    %v90 = vld [vmem:[#allocation2 + $0x40] sm:$0xff]
    %v91 = vld [vmem:[#allocation2 + $0x48] sm:$0xff]
    %v92 = vld [vmem:[#allocation2 + $0x50] sm:$0xff]
    %v93 = vld [vmem:[#allocation2 + $0x58] sm:$0xff]
    %v94 = vld [vmem:[#allocation2 + $0x60] sm:$0xff]
    %v95 = vld [vmem:[#allocation2 + $0x68] sm:$0xff]
    %v96 = vld [vmem:[#allocation2 + $0x70] sm:$0xff]
    %v97 = vld [vmem:[#allocation2 + $0x78] sm:$0xff]
    %v98 = vpack.c.bf16 %v83, %v82
    %v99 = vpack.c.bf16 %v85, %v84
    %v100 = vpack.c.bf16 %v87, %v86
    %v101 = vpack.c.bf16 %v89, %v88
    %v102 = vpack.c.bf16 %v91, %v90
    %v103 = vpack.c.bf16 %v93, %v92
    %v104 = vpack.c.bf16 %v95, %v94
    %v105 = vpack.c.bf16 %v97, %v96
    %v106 = vld [vmem:[#allocation8] sm:$0xf]
    %v107 = vld [vmem:[#allocation8 + $0x4] sm:$0xf]
    %v108 = vld [vmem:[#allocation8 + $0x8] sm:$0xf]
    %v109 = vld [vmem:[#allocation8 + $0xc] sm:$0xf]
    %v110 = vld [vmem:[%s3] sm:$0x1]
    %v112 = vlaneseq
    %v113 = vshrl.u32 %v112, 7
    %v114 = vsub.s32 0, %v113
    %v115 = vrot.slane %v110, %v114
    %v121 = vunpack.c.l.b16 %v106
    %v122 = vunpack.c.l.b16 %v107
    %v123 = vunpack.c.l.b16 %v108
    %v124 = vunpack.c.l.b16 %v109
    %v125 = vpack.c.b16 %v122, %v121
    %v126 = vpack.c.b16 %v124, %v123
    %vm129 = vcmask 261120
    %v131 = vsel %vm129, %v98, 0
    %v134 = vsel %vm129, %v99, 0
    %v137 = vsel %vm129, %v100, 0
    %v140 = vsel %vm129, %v101, 0
    %v143 = vsel %vm129, %v102, 0
    %v146 = vsel %vm129, %v103, 0
    %v149 = vsel %vm129, %v104, 0
    %v152 = vsel %vm129, %v105, 0
    %154 = vmatprep.subr.bf16.mxu0 0
    %155 = vmatpush1.bf16.msra.mxu0 %v125
    %156 = vmatprep.subr.bf16.mxu0 0
    %157 = vmatpush1.bf16.msra.mxu0 %v126
    %158 = vmatprep.subr.bf16.mxu0 0
    %159 = vmatpush1.bf16.msra.mxu0 0
    %160 = vmatprep.subr.bf16.mxu0 0
    %161 = vmatpush1.bf16.msra.mxu0 0
    %162 = vmatprep.subr.bf16.mxu0 0
    %163 = vmatpush1.bf16.msra.mxu0 0
    %164 = vmatprep.subr.bf16.mxu0 0
    %165 = vmatpush1.bf16.msra.mxu0 0
    %166 = vmatprep.subr.bf16.mxu0 0
    %167 = vmatpush1.bf16.msra.mxu0 0
    %168 = vmatprep.subr.bf16.mxu0 0
    %169 = vmatpush1.bf16.msra.mxu0 0
    %170 = vmatprep.subr.bf16.mxu0 0
    %171 = vmatpush1.bf16.msra.mxu0 0
    %172 = vmatprep.subr.bf16.mxu0 0
    %173 = vmatpush1.bf16.msra.mxu0 0
    %174 = vmatprep.subr.bf16.mxu0 0
    %175 = vmatpush1.bf16.msra.mxu0 0
    %176 = vmatprep.subr.bf16.mxu0 0
    %177 = vmatpush1.bf16.msra.mxu0 0
    %178 = vmatprep.subr.bf16.mxu0 0
    %179 = vmatpush1.bf16.msra.mxu0 0
    %180 = vmatprep.subr.bf16.mxu0 0
    %181 = vmatpush1.bf16.msra.mxu0 0
    %182 = vmatprep.subr.bf16.mxu0 0
    %183 = vmatpush1.bf16.msra.mxu0 0
    %184 = vmatprep.subr.bf16.mxu0 0
    %185 = vmatpush1.bf16.msra.mxu0 0
    %186 = vmatprep.mubr.bf16.mxu0 0
    %187 = vmatmul.mubr.bf16.gmra.mrb[0].mxu0 %v131
    %v188 = vpop.f32.mrb[0].mxu0
    %v189 = vadd.f32 %v115, %v188
    %v190 = vpop.f32.mrb[0].mxu0
    %v191 = vpop.f32.mrb[0].mxu0
    %v192 = vadd.f32 %v115, %v191
    %v193 = vpop.f32.mrb[0].mxu0
    %194 = vmatprep.mubr.bf16.mxu0 0
    %195 = vmatmul.mubr.bf16.gmra.mrb[0].mxu0 %v134
    %v196 = vpop.f32.mrb[0].mxu0
    %v197 = vadd.f32 %v115, %v196
    %v198 = vpop.f32.mrb[0].mxu0
    %v199 = vpop.f32.mrb[0].mxu0
    %v200 = vadd.f32 %v115, %v199
    %v201 = vpop.f32.mrb[0].mxu0
    %202 = vmatprep.mubr.bf16.mxu0 0
    %203 = vmatmul.mubr.bf16.gmra.mrb[0].mxu0 %v137
    %v204 = vpop.f32.mrb[0].mxu0
    %v205 = vadd.f32 %v115, %v204
    %v206 = vpop.f32.mrb[0].mxu0
    %v207 = vpop.f32.mrb[0].mxu0
    %v208 = vadd.f32 %v115, %v207
    %v209 = vpop.f32.mrb[0].mxu0
    %210 = vmatprep.mubr.bf16.mxu0 0
    %211 = vmatmul.mubr.bf16.gmra.mrb[0].mxu0 %v140
    %v212 = vpop.f32.mrb[0].mxu0
    %v213 = vadd.f32 %v115, %v212
    %v214 = vpop.f32.mrb[0].mxu0
    %v215 = vpop.f32.mrb[0].mxu0
    %v216 = vadd.f32 %v115, %v215
    %v217 = vpop.f32.mrb[0].mxu0
    %218 = vmatprep.mubr.bf16.mxu0 0
    %219 = vmatmul.mubr.bf16.gmra.mrb[0].mxu0 %v143
    %v220 = vpop.f32.mrb[0].mxu0
    %v221 = vadd.f32 %v115, %v220
    %v222 = vpop.f32.mrb[0].mxu0
    %v223 = vpop.f32.mrb[0].mxu0
    %v224 = vadd.f32 %v115, %v223
    %v225 = vpop.f32.mrb[0].mxu0
    %226 = vmatprep.mubr.bf16.mxu0 0
    %227 = vmatmul.mubr.bf16.gmra.mrb[0].mxu0 %v146
    %v228 = vpop.f32.mrb[0].mxu0
    %v229 = vadd.f32 %v115, %v228
    %v230 = vpop.f32.mrb[0].mxu0
    %v231 = vpop.f32.mrb[0].mxu0
    %v232 = vadd.f32 %v115, %v231
    %v233 = vpop.f32.mrb[0].mxu0
    %234 = vmatprep.mubr.bf16.mxu0 0
    %235 = vmatmul.mubr.bf16.gmra.mrb[0].mxu0 %v149
    %v236 = vpop.f32.mrb[0].mxu0
    %v237 = vadd.f32 %v115, %v236
    %v238 = vpop.f32.mrb[0].mxu0
    %v239 = vpop.f32.mrb[0].mxu0
    %v240 = vadd.f32 %v115, %v239
    %v241 = vpop.f32.mrb[0].mxu0
    %242 = vmatprep.mubr.bf16.mxu0 0
    %243 = vmatmul.mubr.bf16.gmra.mrb[0].mxu0 %v152
    %v244 = vpop.f32.mrb[0].mxu0
    %v245 = vadd.f32 %v115, %v244
    %v246 = vpop.f32.mrb[0].mxu0
    %v247 = vpop.f32.mrb[0].mxu0
    %v248 = vadd.f32 %v115, %v247
    %v249 = vpop.f32.mrb[0].mxu0
    %250 = vdwg.mxu0
    %v251 = vmul.f32 %v189, %v189
    %v252 = vmul.f32 %v192, %v192
    %v253 = vmul.f32 %v197, %v197
    %v254 = vmul.f32 %v200, %v200
    %v255 = vmul.f32 %v205, %v205
    %v256 = vmul.f32 %v208, %v208
    %v257 = vmul.f32 %v213, %v213
    %v258 = vmul.f32 %v216, %v216
    %v259 = vmul.f32 %v221, %v221
    %v260 = vmul.f32 %v224, %v224
    %v261 = vmul.f32 %v229, %v229
    %v262 = vmul.f32 %v232, %v232
    %v263 = vmul.f32 %v237, %v237
    %v264 = vmul.f32 %v240, %v240
    %v265 = vmul.f32 %v245, %v245
    %v266 = vmul.f32 %v248, %v248
    %vm267 = vcmask 64512
    %v268 = vsel %vm267, %v251, 0.0
    %269 = vadd.xlane.f32.xlu0 %v268
    %v270 = vpop.xlane.xlu0 %269
    %v271 = vsel %vm267, %v252, 0.0
    %272 = vadd.xlane.f32.xlu0 %v271
    %v273 = vpop.xlane.xlu0 %272
    %v274 = vsel %vm267, %v253, 0.0
    %275 = vadd.xlane.f32.xlu0 %v274
    %v276 = vpop.xlane.xlu0 %275
    %v277 = vsel %vm267, %v254, 0.0
    %278 = vadd.xlane.f32.xlu0 %v277
    %v279 = vpop.xlane.xlu0 %278
    %v280 = vsel %vm267, %v255, 0.0
    %281 = vadd.xlane.f32.xlu0 %v280
    %v282 = vpop.xlane.xlu0 %281
    %v283 = vsel %vm267, %v256, 0.0
    %284 = vadd.xlane.f32.xlu0 %v283
    %v285 = vpop.xlane.xlu0 %284
    %v286 = vsel %vm267, %v257, 0.0
    %287 = vadd.xlane.f32.xlu0 %v286
    %v288 = vpop.xlane.xlu0 %287
    %v289 = vsel %vm267, %v258, 0.0
    %290 = vadd.xlane.f32.xlu0 %v289
    %v291 = vpop.xlane.xlu0 %290
    %v292 = vsel %vm267, %v259, 0.0
    %293 = vadd.xlane.f32.xlu0 %v292
    %v294 = vpop.xlane.xlu0 %293
    %v295 = vsel %vm267, %v260, 0.0
    %296 = vadd.xlane.f32.xlu0 %v295
    %v297 = vpop.xlane.xlu0 %296
    %v298 = vsel %vm267, %v261, 0.0
    %299 = vadd.xlane.f32.xlu0 %v298
    %v300 = vpop.xlane.xlu0 %299
    %v301 = vsel %vm267, %v262, 0.0
    %302 = vadd.xlane.f32.xlu0 %v301
    %v303 = vpop.xlane.xlu0 %302
    %v304 = vsel %vm267, %v263, 0.0
    %305 = vadd.xlane.f32.xlu0 %v304
    %v306 = vpop.xlane.xlu0 %305
    %v307 = vsel %vm267, %v264, 0.0
    %308 = vadd.xlane.f32.xlu0 %v307
    %v309 = vpop.xlane.xlu0 %308
    %v310 = vsel %vm267, %v265, 0.0
    %311 = vadd.xlane.f32.xlu0 %v310
    %v312 = vpop.xlane.xlu0 %311
    %v313 = vsel %vm267, %v266, 0.0
    %314 = vadd.xlane.f32.xlu0 %v313
    %v315 = vpop.xlane.xlu0 %314
    %v316 = vadd.f32 %v270, 1e-12
    %v317 = vadd.f32 %v273, 1e-12
    %v318 = vadd.f32 %v276, 1e-12
    %v319 = vadd.f32 %v279, 1e-12
    %v320 = vadd.f32 %v282, 1e-12
    %v321 = vadd.f32 %v285, 1e-12
    %v322 = vadd.f32 %v288, 1e-12
    %v323 = vadd.f32 %v291, 1e-12
    %v324 = vadd.f32 %v294, 1e-12
    %v325 = vadd.f32 %v297, 1e-12
    %v326 = vadd.f32 %v300, 1e-12
    %v327 = vadd.f32 %v303, 1e-12
    %v328 = vadd.f32 %v306, 1e-12
    %v329 = vadd.f32 %v309, 1e-12
    %v330 = vadd.f32 %v312, 1e-12
    %v331 = vadd.f32 %v315, 1e-12
    %v332 = vrsqrt.pop %v316
    %v333 = vrsqrt.pop %v317
    %v334 = vrsqrt.pop %v318
    %v335 = vrsqrt.pop %v319
    %v336 = vrsqrt.pop %v320
    %v337 = vrsqrt.pop %v321
    %v338 = vrsqrt.pop %v322
    %v339 = vrsqrt.pop %v323
    %v340 = vrsqrt.pop %v324
    %v341 = vrsqrt.pop %v325
    %v342 = vrsqrt.pop %v326
    %v343 = vrsqrt.pop %v327
    %v344 = vrsqrt.pop %v328
    %v345 = vrsqrt.pop %v329
    %v346 = vrsqrt.pop %v330
    %v347 = vrsqrt.pop %v331
    %v348 = vmul.f32 %v189, %v332
    %v349 = vmul.f32 %v192, %v333
    %v350 = vmul.f32 %v197, %v334
    %v351 = vmul.f32 %v200, %v335
    %v352 = vmul.f32 %v205, %v336
    %v353 = vmul.f32 %v208, %v337
    %v354 = vmul.f32 %v213, %v338
    %v355 = vmul.f32 %v216, %v339
    %v356 = vmul.f32 %v221, %v340
    %v357 = vmul.f32 %v224, %v341
    %v358 = vmul.f32 %v229, %v342
    %v359 = vmul.f32 %v232, %v343
    %v360 = vmul.f32 %v237, %v344
    %v361 = vmul.f32 %v240, %v345
    %v362 = vmul.f32 %v245, %v346
    %v363 = vmul.f32 %v248, %v347
    %380 = vrot.lane.b32.xlu0 %v251, 96
    %v381 = vpop.permute.xlu0 %380
    %382 = vrot.lane.b32.xlu0 %v252, 96
    %v383 = vpop.permute.xlu0 %382
    %384 = vrot.lane.b32.xlu0 %v253, 96
    %v385 = vpop.permute.xlu0 %384
    %386 = vrot.lane.b32.xlu0 %v254, 96
    %v387 = vpop.permute.xlu0 %386
    %388 = vrot.lane.b32.xlu0 %v255, 96
    %v389 = vpop.permute.xlu0 %388
    %390 = vrot.lane.b32.xlu0 %v256, 96
    %v391 = vpop.permute.xlu0 %390
    %392 = vrot.lane.b32.xlu0 %v257, 96
    %v393 = vpop.permute.xlu0 %392
    %394 = vrot.lane.b32.xlu0 %v258, 96
    %v395 = vpop.permute.xlu0 %394
    %396 = vrot.lane.b32.xlu0 %v259, 96
    %v397 = vpop.permute.xlu0 %396
    %398 = vrot.lane.b32.xlu0 %v260, 96
    %v399 = vpop.permute.xlu0 %398
    %400 = vrot.lane.b32.xlu0 %v261, 96
    %v401 = vpop.permute.xlu0 %400
    %402 = vrot.lane.b32.xlu0 %v262, 96
    %v403 = vpop.permute.xlu0 %402
    %404 = vrot.lane.b32.xlu0 %v263, 96
    %v405 = vpop.permute.xlu0 %404
    %406 = vrot.lane.b32.xlu0 %v264, 96
    %v407 = vpop.permute.xlu0 %406
    %408 = vrot.lane.b32.xlu0 %v265, 96
    %v409 = vpop.permute.xlu0 %408
    %410 = vrot.lane.b32.xlu0 %v266, 96
    %v411 = vpop.permute.xlu0 %410
    %v428 = vsel %vm267, %v381, 0.0
    %429 = vadd.xlane.f32.xlu0 %v428
    %v430 = vpop.xlane.xlu0 %429
    %v431 = vsel %vm267, %v383, 0.0
    %432 = vadd.xlane.f32.xlu0 %v431
    %v433 = vpop.xlane.xlu0 %432
    %v434 = vsel %vm267, %v385, 0.0
    %435 = vadd.xlane.f32.xlu0 %v434
    %v436 = vpop.xlane.xlu0 %435
    %v437 = vsel %vm267, %v387, 0.0
    %438 = vadd.xlane.f32.xlu0 %v437
    %v439 = vpop.xlane.xlu0 %438
    %v440 = vsel %vm267, %v389, 0.0
    %441 = vadd.xlane.f32.xlu0 %v440
    %v442 = vpop.xlane.xlu0 %441
    %v443 = vsel %vm267, %v391, 0.0
    %444 = vadd.xlane.f32.xlu0 %v443
    %v445 = vpop.xlane.xlu0 %444
    %v446 = vsel %vm267, %v393, 0.0
    %447 = vadd.xlane.f32.xlu0 %v446
    %v448 = vpop.xlane.xlu0 %447
    %v449 = vsel %vm267, %v395, 0.0
    %450 = vadd.xlane.f32.xlu0 %v449
    %v451 = vpop.xlane.xlu0 %450
    %v452 = vsel %vm267, %v397, 0.0
    %453 = vadd.xlane.f32.xlu0 %v452
    %v454 = vpop.xlane.xlu0 %453
    %v455 = vsel %vm267, %v399, 0.0
    %456 = vadd.xlane.f32.xlu0 %v455
    %v457 = vpop.xlane.xlu0 %456
    %v458 = vsel %vm267, %v401, 0.0
    %459 = vadd.xlane.f32.xlu0 %v458
    %v460 = vpop.xlane.xlu0 %459
    %v461 = vsel %vm267, %v403, 0.0
    %462 = vadd.xlane.f32.xlu0 %v461
    %v463 = vpop.xlane.xlu0 %462
    %v464 = vsel %vm267, %v405, 0.0
    %465 = vadd.xlane.f32.xlu0 %v464
    %v466 = vpop.xlane.xlu0 %465
    %v467 = vsel %vm267, %v407, 0.0
    %468 = vadd.xlane.f32.xlu0 %v467
    %v469 = vpop.xlane.xlu0 %468
    %v470 = vsel %vm267, %v409, 0.0
    %471 = vadd.xlane.f32.xlu0 %v470
    %v472 = vpop.xlane.xlu0 %471
    %v473 = vsel %vm267, %v411, 0.0
    %474 = vadd.xlane.f32.xlu0 %v473
    %v475 = vpop.xlane.xlu0 %474
    %v476 = vadd.f32 %v430, 1e-12
    %v477 = vadd.f32 %v433, 1e-12
    %v478 = vadd.f32 %v436, 1e-12
    %v479 = vadd.f32 %v439, 1e-12
    %v480 = vadd.f32 %v442, 1e-12
    %v481 = vadd.f32 %v445, 1e-12
    %v482 = vadd.f32 %v448, 1e-12
    %v483 = vadd.f32 %v451, 1e-12
    %v484 = vadd.f32 %v454, 1e-12
    %v485 = vadd.f32 %v457, 1e-12
    %v486 = vadd.f32 %v460, 1e-12
    %v487 = vadd.f32 %v463, 1e-12
    %v488 = vadd.f32 %v466, 1e-12
    %v489 = vadd.f32 %v469, 1e-12
    %v490 = vadd.f32 %v472, 1e-12
    %v491 = vadd.f32 %v475, 1e-12
    %v492 = vrsqrt.pop %v476
    %v493 = vrsqrt.pop %v477
    %v494 = vrsqrt.pop %v478
    %v495 = vrsqrt.pop %v479
    %v496 = vrsqrt.pop %v480
    %v497 = vrsqrt.pop %v481
    %v498 = vrsqrt.pop %v482
    %v499 = vrsqrt.pop %v483
    %v500 = vrsqrt.pop %v484
    %v501 = vrsqrt.pop %v485
    %v502 = vrsqrt.pop %v486
    %v503 = vrsqrt.pop %v487
    %v504 = vrsqrt.pop %v488
    %v505 = vrsqrt.pop %v489
    %v506 = vrsqrt.pop %v490
    %v507 = vrsqrt.pop %v491
    %v508 = vmul.f32 %v189, %v492
    %v509 = vmul.f32 %v192, %v493
    %v510 = vmul.f32 %v197, %v494
    %v511 = vmul.f32 %v200, %v495
    %v512 = vmul.f32 %v205, %v496
    %v513 = vmul.f32 %v208, %v497
    %v514 = vmul.f32 %v213, %v498
    %v515 = vmul.f32 %v216, %v499
    %v516 = vmul.f32 %v221, %v500
    %v517 = vmul.f32 %v224, %v501
    %v518 = vmul.f32 %v229, %v502
    %v519 = vmul.f32 %v232, %v503
    %v520 = vmul.f32 %v237, %v504
    %v521 = vmul.f32 %v240, %v505
    %v522 = vmul.f32 %v245, %v506
    %v523 = vmul.f32 %v248, %v507
    %s524 = sld [smem:[#allocation9]]
    %v525 = vstv %s524
    %v526 = vmul.f32 %v348, %v525
    %v527 = vmul.f32 %v349, %v525
    %v528 = vmul.f32 %v350, %v525
    %v529 = vmul.f32 %v351, %v525
    %v530 = vmul.f32 %v352, %v525
    %v531 = vmul.f32 %v353, %v525
    %v532 = vmul.f32 %v354, %v525
    %v533 = vmul.f32 %v355, %v525
    %v534 = vmul.f32 %v356, %v525
    %v535 = vmul.f32 %v357, %v525
    %v536 = vmul.f32 %v358, %v525
    %v537 = vmul.f32 %v359, %v525
    %v538 = vmul.f32 %v360, %v525
    %v539 = vmul.f32 %v361, %v525
    %v540 = vmul.f32 %v362, %v525
    %v541 = vmul.f32 %v363, %v525
    %v542 = vpack.c.bf16 %v527, %v526
    %v543 = vpack.c.bf16 %v529, %v528
    %v544 = vpack.c.bf16 %v531, %v530
    %v545 = vpack.c.bf16 %v533, %v532
    %v546 = vpack.c.bf16 %v535, %v534
    %v547 = vpack.c.bf16 %v537, %v536
    %v548 = vpack.c.bf16 %v539, %v538
    %v549 = vpack.c.bf16 %v541, %v540
    %v550 = vpack.c.bf16 %v509, %v508
    %v551 = vpack.c.bf16 %v511, %v510
    %v552 = vpack.c.bf16 %v513, %v512
    %v553 = vpack.c.bf16 %v515, %v514
    %v554 = vpack.c.bf16 %v517, %v516
    %v555 = vpack.c.bf16 %v519, %v518
    %v556 = vpack.c.bf16 %v521, %v520
    %v557 = vpack.c.bf16 %v523, %v522
    %v558 = vld [vmem:[#allocation6] sm:$0xff]
    %v559 = vld [vmem:[#allocation6 + $0x8] sm:$0xff]
    %v560 = vld [vmem:[#allocation6 + $0x40] sm:$0xff]
    %v561 = vld [vmem:[#allocation6 + $0x48] sm:$0xff]
    %v562 = vld [vmem:[#allocation6 + $0x80] sm:$0xff]
    %v563 = vld [vmem:[#allocation6 + $0x88] sm:$0xff]
    %v564 = vld [vmem:[#allocation6 + $0xc0] sm:$0xff]
    %v565 = vld [vmem:[#allocation6 + $0xc8] sm:$0xff]
    %v566 = vld [vmem:[#allocation6 + $0x100] sm:$0xff]
    %v567 = vld [vmem:[#allocation6 + $0x108] sm:$0xff]
    %v568 = vld [vmem:[#allocation6 + $0x140] sm:$0xff]
    %v569 = vld [vmem:[#allocation6 + $0x148] sm:$0xff]
    %v570 = vld [vmem:[#allocation6 + $0x180] sm:$0xff]
    %v571 = vld [vmem:[#allocation6 + $0x188] sm:$0xff]
    %v572 = vld [vmem:[#allocation6 + $0x1c0] sm:$0xff]
    %v573 = vld [vmem:[#allocation6 + $0x1c8] sm:$0xff]
    %575 = vrot.lane.b32.xlu0 %v550, 96
    %v576 = vpop.permute.xlu0 %575
    %v578 = vsel %vm267, %v542, 0
    %v581 = vsel %vm267, %v576, 0
    %583 = vmatprep.subr.bf16.mxu0 0
    %584 = vmatpush1.bf16.xpose.msra.mxu0 %v581
    %585 = vmatprep.subr.bf16.mxu0 0
    %586 = vmatpush1.bf16.xpose.msra.mxu0 0
    %587 = vmatprep.subr.bf16.mxu0 0
    %588 = vmatpush1.bf16.xpose.msra.mxu0 0
    %589 = vmatprep.subr.bf16.mxu0 0
    %590 = vmatpush1.bf16.xpose.msra.mxu0 0
    %591 = vmatprep.subr.bf16.mxu0 0
    %592 = vmatpush1.bf16.xpose.msra.mxu0 0
    %593 = vmatprep.subr.bf16.mxu0 0
    %594 = vmatpush1.bf16.xpose.msra.mxu0 0
    %595 = vmatprep.subr.bf16.mxu0 0
    %596 = vmatpush1.bf16.xpose.msra.mxu0 0
    %597 = vmatprep.subr.bf16.mxu0 0
    %598 = vmatpush1.bf16.xpose.msra.mxu0 0
    %599 = vmatprep.subr.bf16.mxu0 0
    %600 = vmatpush1.bf16.xpose.msra.mxu0 0
    %601 = vmatprep.subr.bf16.mxu0 0
    %602 = vmatpush1.bf16.xpose.msra.mxu0 0
    %603 = vmatprep.subr.bf16.mxu0 0
    %604 = vmatpush1.bf16.xpose.msra.mxu0 0
    %605 = vmatprep.subr.bf16.mxu0 0
    %606 = vmatpush1.bf16.xpose.msra.mxu0 0
    %607 = vmatprep.subr.bf16.mxu0 0
    %608 = vmatpush1.bf16.xpose.msra.mxu0 0
    %609 = vmatprep.subr.bf16.mxu0 0
    %610 = vmatpush1.bf16.xpose.msra.mxu0 0
    %611 = vmatprep.subr.bf16.mxu0 0
    %612 = vmatpush1.bf16.xpose.msra.mxu0 0
    %613 = vmatprep.subr.bf16.mxu0 0
    %614 = vmatpush1.bf16.xpose.msra.mxu0 0
    %615 = vmatprep.mubr.bf16.mxu0 0
    %616 = vmatmul.mubr.bf16.gmra.mrb[0].mxu0 %v578
    %v617 = vpop.f32.mrb[0].mxu0
    %v618 = vadd.f32 %v558, %v617
    %v619 = vpop.f32.mrb[0].mxu0
    %v620 = vpop.f32.mrb[0].mxu0
    %v621 = vadd.f32 %v559, %v620
    %v622 = vpop.f32.mrb[0].mxu0
    %623 = vdwg.mxu0
    %625 = vrot.lane.b32.xlu0 %v551, 96
    %v626 = vpop.permute.xlu0 %625
    %v628 = vsel %vm267, %v543, 0
    %v631 = vsel %vm267, %v626, 0
    %633 = vmatprep.subr.bf16.mxu0 0
    %634 = vmatpush1.bf16.xpose.msra.mxu0 %v631
    %635 = vmatprep.subr.bf16.mxu0 0
    %636 = vmatpush1.bf16.xpose.msra.mxu0 0
    %637 = vmatprep.subr.bf16.mxu0 0
    %638 = vmatpush1.bf16.xpose.msra.mxu0 0
    %639 = vmatprep.subr.bf16.mxu0 0
    %640 = vmatpush1.bf16.xpose.msra.mxu0 0
    %641 = vmatprep.subr.bf16.mxu0 0
    %642 = vmatpush1.bf16.xpose.msra.mxu0 0
    %643 = vmatprep.subr.bf16.mxu0 0
    %644 = vmatpush1.bf16.xpose.msra.mxu0 0
    %645 = vmatprep.subr.bf16.mxu0 0
    %646 = vmatpush1.bf16.xpose.msra.mxu0 0
    %647 = vmatprep.subr.bf16.mxu0 0
    %648 = vmatpush1.bf16.xpose.msra.mxu0 0
    %649 = vmatprep.subr.bf16.mxu0 0
    %650 = vmatpush1.bf16.xpose.msra.mxu0 0
    %651 = vmatprep.subr.bf16.mxu0 0
    %652 = vmatpush1.bf16.xpose.msra.mxu0 0
    %653 = vmatprep.subr.bf16.mxu0 0
    %654 = vmatpush1.bf16.xpose.msra.mxu0 0
    %655 = vmatprep.subr.bf16.mxu0 0
    %656 = vmatpush1.bf16.xpose.msra.mxu0 0
    %657 = vmatprep.subr.bf16.mxu0 0
    %658 = vmatpush1.bf16.xpose.msra.mxu0 0
    %659 = vmatprep.subr.bf16.mxu0 0
    %660 = vmatpush1.bf16.xpose.msra.mxu0 0
    %661 = vmatprep.subr.bf16.mxu0 0
    %662 = vmatpush1.bf16.xpose.msra.mxu0 0
    %663 = vmatprep.subr.bf16.mxu0 0
    %664 = vmatpush1.bf16.xpose.msra.mxu0 0
    %665 = vmatprep.mubr.bf16.mxu0 0
    %666 = vmatmul.mubr.bf16.gmra.mrb[0].mxu0 %v628
    %v667 = vpop.f32.mrb[0].mxu0
    %v668 = vadd.f32 %v560, %v667
    %v669 = vpop.f32.mrb[0].mxu0
    %v670 = vpop.f32.mrb[0].mxu0
    %v671 = vadd.f32 %v561, %v670
    %v672 = vpop.f32.mrb[0].mxu0
    %673 = vdwg.mxu0
    %675 = vrot.lane.b32.xlu0 %v552, 96
    %v676 = vpop.permute.xlu0 %675
    %v678 = vsel %vm267, %v544, 0
    %v681 = vsel %vm267, %v676, 0
    %683 = vmatprep.subr.bf16.mxu0 0
    %684 = vmatpush1.bf16.xpose.msra.mxu0 %v681
    %685 = vmatprep.subr.bf16.mxu0 0
    %686 = vmatpush1.bf16.xpose.msra.mxu0 0
    %687 = vmatprep.subr.bf16.mxu0 0
    %688 = vmatpush1.bf16.xpose.msra.mxu0 0
    %689 = vmatprep.subr.bf16.mxu0 0
    %690 = vmatpush1.bf16.xpose.msra.mxu0 0
    %691 = vmatprep.subr.bf16.mxu0 0
    %692 = vmatpush1.bf16.xpose.msra.mxu0 0
    %693 = vmatprep.subr.bf16.mxu0 0
    %694 = vmatpush1.bf16.xpose.msra.mxu0 0
    %695 = vmatprep.subr.bf16.mxu0 0
    %696 = vmatpush1.bf16.xpose.msra.mxu0 0
    %697 = vmatprep.subr.bf16.mxu0 0
    %698 = vmatpush1.bf16.xpose.msra.mxu0 0
    %699 = vmatprep.subr.bf16.mxu0 0
    %700 = vmatpush1.bf16.xpose.msra.mxu0 0
    %701 = vmatprep.subr.bf16.mxu0 0
    %702 = vmatpush1.bf16.xpose.msra.mxu0 0
    %703 = vmatprep.subr.bf16.mxu0 0
    %704 = vmatpush1.bf16.xpose.msra.mxu0 0
    %705 = vmatprep.subr.bf16.mxu0 0
    %706 = vmatpush1.bf16.xpose.msra.mxu0 0
    %707 = vmatprep.subr.bf16.mxu0 0
    %708 = vmatpush1.bf16.xpose.msra.mxu0 0
    %709 = vmatprep.subr.bf16.mxu0 0
    %710 = vmatpush1.bf16.xpose.msra.mxu0 0
    %711 = vmatprep.subr.bf16.mxu0 0
    %712 = vmatpush1.bf16.xpose.msra.mxu0 0
    %713 = vmatprep.subr.bf16.mxu0 0
    %714 = vmatpush1.bf16.xpose.msra.mxu0 0
    %715 = vmatprep.mubr.bf16.mxu0 0
    %716 = vmatmul.mubr.bf16.gmra.mrb[0].mxu0 %v678
    %v717 = vpop.f32.mrb[0].mxu0
    %v718 = vadd.f32 %v562, %v717
    %v719 = vpop.f32.mrb[0].mxu0
    %v720 = vpop.f32.mrb[0].mxu0
    %v721 = vadd.f32 %v563, %v720
    %v722 = vpop.f32.mrb[0].mxu0
    %723 = vdwg.mxu0
    %725 = vrot.lane.b32.xlu0 %v553, 96
    %v726 = vpop.permute.xlu0 %725
    %v728 = vsel %vm267, %v545, 0
    %v731 = vsel %vm267, %v726, 0
    %733 = vmatprep.subr.bf16.mxu0 0
    %734 = vmatpush1.bf16.xpose.msra.mxu0 %v731
    %735 = vmatprep.subr.bf16.mxu0 0
    %736 = vmatpush1.bf16.xpose.msra.mxu0 0
    %737 = vmatprep.subr.bf16.mxu0 0
    %738 = vmatpush1.bf16.xpose.msra.mxu0 0
    %739 = vmatprep.subr.bf16.mxu0 0
    %740 = vmatpush1.bf16.xpose.msra.mxu0 0
    %741 = vmatprep.subr.bf16.mxu0 0
    %742 = vmatpush1.bf16.xpose.msra.mxu0 0
    %743 = vmatprep.subr.bf16.mxu0 0
    %744 = vmatpush1.bf16.xpose.msra.mxu0 0
    %745 = vmatprep.subr.bf16.mxu0 0
    %746 = vmatpush1.bf16.xpose.msra.mxu0 0
    %747 = vmatprep.subr.bf16.mxu0 0
    %748 = vmatpush1.bf16.xpose.msra.mxu0 0
    %749 = vmatprep.subr.bf16.mxu0 0
    %750 = vmatpush1.bf16.xpose.msra.mxu0 0
    %751 = vmatprep.subr.bf16.mxu0 0
    %752 = vmatpush1.bf16.xpose.msra.mxu0 0
    %753 = vmatprep.subr.bf16.mxu0 0
    %754 = vmatpush1.bf16.xpose.msra.mxu0 0
    %755 = vmatprep.subr.bf16.mxu0 0
    %756 = vmatpush1.bf16.xpose.msra.mxu0 0
    %757 = vmatprep.subr.bf16.mxu0 0
    %758 = vmatpush1.bf16.xpose.msra.mxu0 0
    %759 = vmatprep.subr.bf16.mxu0 0
    %760 = vmatpush1.bf16.xpose.msra.mxu0 0
    %761 = vmatprep.subr.bf16.mxu0 0
    %762 = vmatpush1.bf16.xpose.msra.mxu0 0
    %763 = vmatprep.subr.bf16.mxu0 0
    %764 = vmatpush1.bf16.xpose.msra.mxu0 0
    %765 = vmatprep.mubr.bf16.mxu0 0
    %766 = vmatmul.mubr.bf16.gmra.mrb[0].mxu0 %v728
    %v767 = vpop.f32.mrb[0].mxu0
    %v768 = vadd.f32 %v564, %v767
    %v769 = vpop.f32.mrb[0].mxu0
    %v770 = vpop.f32.mrb[0].mxu0
    %v771 = vadd.f32 %v565, %v770
    %v772 = vpop.f32.mrb[0].mxu0
    %773 = vdwg.mxu0
    %775 = vrot.lane.b32.xlu0 %v554, 96
    %v776 = vpop.permute.xlu0 %775
    %v778 = vsel %vm267, %v546, 0
    %v781 = vsel %vm267, %v776, 0
    %783 = vmatprep.subr.bf16.mxu0 0
    %784 = vmatpush1.bf16.xpose.msra.mxu0 %v781
    %785 = vmatprep.subr.bf16.mxu0 0
    %786 = vmatpush1.bf16.xpose.msra.mxu0 0
    %787 = vmatprep.subr.bf16.mxu0 0
    %788 = vmatpush1.bf16.xpose.msra.mxu0 0
    %789 = vmatprep.subr.bf16.mxu0 0
    %790 = vmatpush1.bf16.xpose.msra.mxu0 0
    %791 = vmatprep.subr.bf16.mxu0 0
    %792 = vmatpush1.bf16.xpose.msra.mxu0 0
    %793 = vmatprep.subr.bf16.mxu0 0
    %794 = vmatpush1.bf16.xpose.msra.mxu0 0
    %795 = vmatprep.subr.bf16.mxu0 0
    %796 = vmatpush1.bf16.xpose.msra.mxu0 0
    %797 = vmatprep.subr.bf16.mxu0 0
    %798 = vmatpush1.bf16.xpose.msra.mxu0 0
    %799 = vmatprep.subr.bf16.mxu0 0
    %800 = vmatpush1.bf16.xpose.msra.mxu0 0
    %801 = vmatprep.subr.bf16.mxu0 0
    %802 = vmatpush1.bf16.xpose.msra.mxu0 0
    %803 = vmatprep.subr.bf16.mxu0 0
    %804 = vmatpush1.bf16.xpose.msra.mxu0 0
    %805 = vmatprep.subr.bf16.mxu0 0
    %806 = vmatpush1.bf16.xpose.msra.mxu0 0
    %807 = vmatprep.subr.bf16.mxu0 0
    %808 = vmatpush1.bf16.xpose.msra.mxu0 0
    %809 = vmatprep.subr.bf16.mxu0 0
    %810 = vmatpush1.bf16.xpose.msra.mxu0 0
    %811 = vmatprep.subr.bf16.mxu0 0
    %812 = vmatpush1.bf16.xpose.msra.mxu0 0
    %813 = vmatprep.subr.bf16.mxu0 0
    %814 = vmatpush1.bf16.xpose.msra.mxu0 0
    %815 = vmatprep.mubr.bf16.mxu0 0
    %816 = vmatmul.mubr.bf16.gmra.mrb[0].mxu0 %v778
    %v817 = vpop.f32.mrb[0].mxu0
    %v818 = vadd.f32 %v566, %v817
    %v819 = vpop.f32.mrb[0].mxu0
    %v820 = vpop.f32.mrb[0].mxu0
    %v821 = vadd.f32 %v567, %v820
    %v822 = vpop.f32.mrb[0].mxu0
    %823 = vdwg.mxu0
    %825 = vrot.lane.b32.xlu0 %v555, 96
    %v826 = vpop.permute.xlu0 %825
    %v828 = vsel %vm267, %v547, 0
    %v831 = vsel %vm267, %v826, 0
    %833 = vmatprep.subr.bf16.mxu0 0
    %834 = vmatpush1.bf16.xpose.msra.mxu0 %v831
    %835 = vmatprep.subr.bf16.mxu0 0
    %836 = vmatpush1.bf16.xpose.msra.mxu0 0
    %837 = vmatprep.subr.bf16.mxu0 0
    %838 = vmatpush1.bf16.xpose.msra.mxu0 0
    %839 = vmatprep.subr.bf16.mxu0 0
    %840 = vmatpush1.bf16.xpose.msra.mxu0 0
    %841 = vmatprep.subr.bf16.mxu0 0
    %842 = vmatpush1.bf16.xpose.msra.mxu0 0
    %843 = vmatprep.subr.bf16.mxu0 0
    %844 = vmatpush1.bf16.xpose.msra.mxu0 0
    %845 = vmatprep.subr.bf16.mxu0 0
    %846 = vmatpush1.bf16.xpose.msra.mxu0 0
    %847 = vmatprep.subr.bf16.mxu0 0
    %848 = vmatpush1.bf16.xpose.msra.mxu0 0
    %849 = vmatprep.subr.bf16.mxu0 0
    %850 = vmatpush1.bf16.xpose.msra.mxu0 0
    %851 = vmatprep.subr.bf16.mxu0 0
    %852 = vmatpush1.bf16.xpose.msra.mxu0 0
    %853 = vmatprep.subr.bf16.mxu0 0
    %854 = vmatpush1.bf16.xpose.msra.mxu0 0
    %855 = vmatprep.subr.bf16.mxu0 0
    %856 = vmatpush1.bf16.xpose.msra.mxu0 0
    %857 = vmatprep.subr.bf16.mxu0 0
    %858 = vmatpush1.bf16.xpose.msra.mxu0 0
    %859 = vmatprep.subr.bf16.mxu0 0
    %860 = vmatpush1.bf16.xpose.msra.mxu0 0
    %861 = vmatprep.subr.bf16.mxu0 0
    %862 = vmatpush1.bf16.xpose.msra.mxu0 0
    %863 = vmatprep.subr.bf16.mxu0 0
    %864 = vmatpush1.bf16.xpose.msra.mxu0 0
    %865 = vmatprep.mubr.bf16.mxu0 0
    %866 = vmatmul.mubr.bf16.gmra.mrb[0].mxu0 %v828
    %v867 = vpop.f32.mrb[0].mxu0
    %v868 = vadd.f32 %v568, %v867
    %v869 = vpop.f32.mrb[0].mxu0
    %v870 = vpop.f32.mrb[0].mxu0
    %v871 = vadd.f32 %v569, %v870
    %v872 = vpop.f32.mrb[0].mxu0
    %873 = vdwg.mxu0
    %875 = vrot.lane.b32.xlu0 %v556, 96
    %v876 = vpop.permute.xlu0 %875
    %v878 = vsel %vm267, %v548, 0
    %v881 = vsel %vm267, %v876, 0
    %883 = vmatprep.subr.bf16.mxu0 0
    %884 = vmatpush1.bf16.xpose.msra.mxu0 %v881
    %885 = vmatprep.subr.bf16.mxu0 0
    %886 = vmatpush1.bf16.xpose.msra.mxu0 0
    %887 = vmatprep.subr.bf16.mxu0 0
    %888 = vmatpush1.bf16.xpose.msra.mxu0 0
    %889 = vmatprep.subr.bf16.mxu0 0
    %890 = vmatpush1.bf16.xpose.msra.mxu0 0
    %891 = vmatprep.subr.bf16.mxu0 0
    %892 = vmatpush1.bf16.xpose.msra.mxu0 0
    %893 = vmatprep.subr.bf16.mxu0 0
    %894 = vmatpush1.bf16.xpose.msra.mxu0 0
    %895 = vmatprep.subr.bf16.mxu0 0
    %896 = vmatpush1.bf16.xpose.msra.mxu0 0
    %897 = vmatprep.subr.bf16.mxu0 0
    %898 = vmatpush1.bf16.xpose.msra.mxu0 0
    %899 = vmatprep.subr.bf16.mxu0 0
    %900 = vmatpush1.bf16.xpose.msra.mxu0 0
    %901 = vmatprep.subr.bf16.mxu0 0
    %902 = vmatpush1.bf16.xpose.msra.mxu0 0
    %903 = vmatprep.subr.bf16.mxu0 0
    %904 = vmatpush1.bf16.xpose.msra.mxu0 0
    %905 = vmatprep.subr.bf16.mxu0 0
    %906 = vmatpush1.bf16.xpose.msra.mxu0 0
    %907 = vmatprep.subr.bf16.mxu0 0
    %908 = vmatpush1.bf16.xpose.msra.mxu0 0
    %909 = vmatprep.subr.bf16.mxu0 0
    %910 = vmatpush1.bf16.xpose.msra.mxu0 0
    %911 = vmatprep.subr.bf16.mxu0 0
    %912 = vmatpush1.bf16.xpose.msra.mxu0 0
    %913 = vmatprep.subr.bf16.mxu0 0
    %914 = vmatpush1.bf16.xpose.msra.mxu0 0
    %915 = vmatprep.mubr.bf16.mxu0 0
    %916 = vmatmul.mubr.bf16.gmra.mrb[0].mxu0 %v878
    %v917 = vpop.f32.mrb[0].mxu0
    %v918 = vadd.f32 %v570, %v917
    %v919 = vpop.f32.mrb[0].mxu0
    %v920 = vpop.f32.mrb[0].mxu0
    %v921 = vadd.f32 %v571, %v920
    %v922 = vpop.f32.mrb[0].mxu0
    %923 = vdwg.mxu0
    %925 = vrot.lane.b32.xlu0 %v557, 96
    %v926 = vpop.permute.xlu0 %925
    %v928 = vsel %vm267, %v549, 0
    %v931 = vsel %vm267, %v926, 0
    %933 = vmatprep.subr.bf16.mxu0 0
    %934 = vmatpush1.bf16.xpose.msra.mxu0 %v931
    %935 = vmatprep.subr.bf16.mxu0 0
    %936 = vmatpush1.bf16.xpose.msra.mxu0 0
    %937 = vmatprep.subr.bf16.mxu0 0
    %938 = vmatpush1.bf16.xpose.msra.mxu0 0
    %939 = vmatprep.subr.bf16.mxu0 0
    %940 = vmatpush1.bf16.xpose.msra.mxu0 0
    %941 = vmatprep.subr.bf16.mxu0 0
    %942 = vmatpush1.bf16.xpose.msra.mxu0 0
    %943 = vmatprep.subr.bf16.mxu0 0
    %944 = vmatpush1.bf16.xpose.msra.mxu0 0
    %945 = vmatprep.subr.bf16.mxu0 0
    %946 = vmatpush1.bf16.xpose.msra.mxu0 0
    %947 = vmatprep.subr.bf16.mxu0 0
    %948 = vmatpush1.bf16.xpose.msra.mxu0 0
    %949 = vmatprep.subr.bf16.mxu0 0
    %950 = vmatpush1.bf16.xpose.msra.mxu0 0
    %951 = vmatprep.subr.bf16.mxu0 0
    %952 = vmatpush1.bf16.xpose.msra.mxu0 0
    %953 = vmatprep.subr.bf16.mxu0 0
    %954 = vmatpush1.bf16.xpose.msra.mxu0 0
    %955 = vmatprep.subr.bf16.mxu0 0
    %956 = vmatpush1.bf16.xpose.msra.mxu0 0
    %957 = vmatprep.subr.bf16.mxu0 0
    %958 = vmatpush1.bf16.xpose.msra.mxu0 0
    %959 = vmatprep.subr.bf16.mxu0 0
    %960 = vmatpush1.bf16.xpose.msra.mxu0 0
    %961 = vmatprep.subr.bf16.mxu0 0
    %962 = vmatpush1.bf16.xpose.msra.mxu0 0
    %963 = vmatprep.subr.bf16.mxu0 0
    %964 = vmatpush1.bf16.xpose.msra.mxu0 0
    %965 = vmatprep.mubr.bf16.mxu0 0
    %966 = vmatmul.mubr.bf16.gmra.mrb[0].mxu0 %v928
    %v967 = vpop.f32.mrb[0].mxu0
    %v968 = vadd.f32 %v572, %v967
    %v969 = vpop.f32.mrb[0].mxu0
    %v970 = vpop.f32.mrb[0].mxu0
    %v971 = vadd.f32 %v573, %v970
    %v972 = vpop.f32.mrb[0].mxu0
    %973 = vdwg.mxu0
    %vm974 = vcmask 130048
    %v975 = vsel %vm974, %v618, -inf
    %976 = vmax.xlane.f32.xlu0 %v975
    %v977 = vpop.xlane.xlu0 %976
    %v978 = vsel %vm974, %v621, -inf
    %979 = vmax.xlane.f32.xlu0 %v978
    %v980 = vpop.xlane.xlu0 %979
    %v981 = vsel %vm974, %v668, -inf
    %982 = vmax.xlane.f32.xlu0 %v981
    %v983 = vpop.xlane.xlu0 %982
    %v984 = vsel %vm974, %v671, -inf
    %985 = vmax.xlane.f32.xlu0 %v984
    %v986 = vpop.xlane.xlu0 %985
    %v987 = vsel %vm974, %v718, -inf
    %988 = vmax.xlane.f32.xlu0 %v987
    %v989 = vpop.xlane.xlu0 %988
    %v990 = vsel %vm974, %v721, -inf
    %991 = vmax.xlane.f32.xlu0 %v990
    %v992 = vpop.xlane.xlu0 %991
    %v993 = vsel %vm974, %v768, -inf
    %994 = vmax.xlane.f32.xlu0 %v993
    %v995 = vpop.xlane.xlu0 %994
    %v996 = vsel %vm974, %v771, -inf
    %997 = vmax.xlane.f32.xlu0 %v996
    %v998 = vpop.xlane.xlu0 %997
    %v999 = vsel %vm974, %v818, -inf
    %1000 = vmax.xlane.f32.xlu0 %v999
    %v1001 = vpop.xlane.xlu0 %1000
    %v1002 = vsel %vm974, %v821, -inf
    %1003 = vmax.xlane.f32.xlu0 %v1002
    %v1004 = vpop.xlane.xlu0 %1003
    %v1005 = vsel %vm974, %v868, -inf
    %1006 = vmax.xlane.f32.xlu0 %v1005
    %v1007 = vpop.xlane.xlu0 %1006
    %v1008 = vsel %vm974, %v871, -inf
    %1009 = vmax.xlane.f32.xlu0 %v1008
    %v1010 = vpop.xlane.xlu0 %1009
    %v1011 = vsel %vm974, %v918, -inf
    %1012 = vmax.xlane.f32.xlu0 %v1011
    %v1013 = vpop.xlane.xlu0 %1012
    %v1014 = vsel %vm974, %v921, -inf
    %1015 = vmax.xlane.f32.xlu0 %v1014
    %v1016 = vpop.xlane.xlu0 %1015
    %v1017 = vsel %vm974, %v968, -inf
    %1018 = vmax.xlane.f32.xlu0 %v1017
    %v1019 = vpop.xlane.xlu0 %1018
    %v1020 = vsel %vm974, %v971, -inf
    %1021 = vmax.xlane.f32.xlu0 %v1020
    %v1022 = vpop.xlane.xlu0 %1021
    %v1023 = vsub.f32 %v618, %v977
    %v1024 = vsub.f32 %v621, %v980
    %v1025 = vsub.f32 %v668, %v983
    %v1026 = vsub.f32 %v671, %v986
    %v1027 = vsub.f32 %v718, %v989
    %v1028 = vsub.f32 %v721, %v992
    %v1029 = vsub.f32 %v768, %v995
    %v1030 = vsub.f32 %v771, %v998
    %v1031 = vsub.f32 %v818, %v1001
    %v1032 = vsub.f32 %v821, %v1004
    %v1033 = vsub.f32 %v868, %v1007
    %v1034 = vsub.f32 %v871, %v1010
    %v1035 = vsub.f32 %v918, %v1013
    %v1036 = vsub.f32 %v921, %v1016
    %v1037 = vsub.f32 %v968, %v1019
    %v1038 = vsub.f32 %v971, %v1022
    %v1039 = vmul.f32 %v1023, 1.442695
    %v1040 = vpow.pop %v1039
    %v1041 = vmul.f32 %v1024, 1.442695
    %v1042 = vpow.pop %v1041
    %v1043 = vmul.f32 %v1025, 1.442695
    %v1044 = vpow.pop %v1043
    %v1045 = vmul.f32 %v1026, 1.442695
    %v1046 = vpow.pop %v1045
    %v1047 = vmul.f32 %v1027, 1.442695
    %v1048 = vpow.pop %v1047
    %v1049 = vmul.f32 %v1028, 1.442695
    %v1050 = vpow.pop %v1049
    %v1051 = vmul.f32 %v1029, 1.442695
    %v1052 = vpow.pop %v1051
    %v1053 = vmul.f32 %v1030, 1.442695
    %v1054 = vpow.pop %v1053
    %v1055 = vmul.f32 %v1031, 1.442695
    %v1056 = vpow.pop %v1055
    %v1057 = vmul.f32 %v1032, 1.442695
    %v1058 = vpow.pop %v1057
    %v1059 = vmul.f32 %v1033, 1.442695
    %v1060 = vpow.pop %v1059
    %v1061 = vmul.f32 %v1034, 1.442695
    %v1062 = vpow.pop %v1061
    %v1063 = vmul.f32 %v1035, 1.442695
    %v1064 = vpow.pop %v1063
    %v1065 = vmul.f32 %v1036, 1.442695
    %v1066 = vpow.pop %v1065
    %v1067 = vmul.f32 %v1037, 1.442695
    %v1068 = vpow.pop %v1067
    %v1069 = vmul.f32 %v1038, 1.442695
    %v1070 = vpow.pop %v1069
    %v1071 = vsel %vm974, %v1040, 0.0
    %1072 = vadd.xlane.f32.xlu0 %v1071
    %v1073 = vpop.xlane.xlu0 %1072
    %v1074 = vsel %vm974, %v1042, 0.0
    %1075 = vadd.xlane.f32.xlu0 %v1074
    %v1076 = vpop.xlane.xlu0 %1075
    %v1077 = vsel %vm974, %v1044, 0.0
    %1078 = vadd.xlane.f32.xlu0 %v1077
    %v1079 = vpop.xlane.xlu0 %1078
    %v1080 = vsel %vm974, %v1046, 0.0
    %1081 = vadd.xlane.f32.xlu0 %v1080
    %v1082 = vpop.xlane.xlu0 %1081
    %v1083 = vsel %vm974, %v1048, 0.0
    %1084 = vadd.xlane.f32.xlu0 %v1083
    %v1085 = vpop.xlane.xlu0 %1084
    %v1086 = vsel %vm974, %v1050, 0.0
    %1087 = vadd.xlane.f32.xlu0 %v1086
    %v1088 = vpop.xlane.xlu0 %1087
    %v1089 = vsel %vm974, %v1052, 0.0
    %1090 = vadd.xlane.f32.xlu0 %v1089
    %v1091 = vpop.xlane.xlu0 %1090
    %v1092 = vsel %vm974, %v1054, 0.0
    %1093 = vadd.xlane.f32.xlu0 %v1092
    %v1094 = vpop.xlane.xlu0 %1093
    %v1095 = vsel %vm974, %v1056, 0.0
    %1096 = vadd.xlane.f32.xlu0 %v1095
    %v1097 = vpop.xlane.xlu0 %1096
    %v1098 = vsel %vm974, %v1058, 0.0
    %1099 = vadd.xlane.f32.xlu0 %v1098
    %v1100 = vpop.xlane.xlu0 %1099
    %v1101 = vsel %vm974, %v1060, 0.0
    %1102 = vadd.xlane.f32.xlu0 %v1101
    %v1103 = vpop.xlane.xlu0 %1102
    %v1104 = vsel %vm974, %v1062, 0.0
    %1105 = vadd.xlane.f32.xlu0 %v1104
    %v1106 = vpop.xlane.xlu0 %1105
    %v1107 = vsel %vm974, %v1064, 0.0
    %1108 = vadd.xlane.f32.xlu0 %v1107
    %v1109 = vpop.xlane.xlu0 %1108
    %v1110 = vsel %vm974, %v1066, 0.0
    %1111 = vadd.xlane.f32.xlu0 %v1110
    %v1112 = vpop.xlane.xlu0 %1111
    %v1113 = vsel %vm974, %v1068, 0.0
    %1114 = vadd.xlane.f32.xlu0 %v1113
    %v1115 = vpop.xlane.xlu0 %1114
    %v1116 = vsel %vm974, %v1070, 0.0
    %1117 = vadd.xlane.f32.xlu0 %v1116
    %v1118 = vpop.xlane.xlu0 %1117
    %v1119 = vrcp.pop %v1073
    %v1120 = vrcp.pop %v1076
    %v1121 = vrcp.pop %v1079
    %v1122 = vrcp.pop %v1082
    %v1123 = vrcp.pop %v1085
    %v1124 = vrcp.pop %v1088
    %v1125 = vrcp.pop %v1091
    %v1126 = vrcp.pop %v1094
    %v1127 = vrcp.pop %v1097
    %v1128 = vrcp.pop %v1100
    %v1129 = vrcp.pop %v1103
    %v1130 = vrcp.pop %v1106
    %v1131 = vrcp.pop %v1109
    %v1132 = vrcp.pop %v1112
    %v1133 = vrcp.pop %v1115
    %v1134 = vrcp.pop %v1118
    %v1135 = vmul.f32 %v1040, %v1119
    %v1136 = vmul.f32 %v1042, %v1120
    %v1137 = vmul.f32 %v1044, %v1121
    %v1138 = vmul.f32 %v1046, %v1122
    %v1139 = vmul.f32 %v1048, %v1123
    %v1140 = vmul.f32 %v1050, %v1124
    %v1141 = vmul.f32 %v1052, %v1125
    %v1142 = vmul.f32 %v1054, %v1126
    %v1143 = vmul.f32 %v1056, %v1127
    %v1144 = vmul.f32 %v1058, %v1128
    %v1145 = vmul.f32 %v1060, %v1129
    %v1146 = vmul.f32 %v1062, %v1130
    %v1147 = vmul.f32 %v1064, %v1131
    %v1148 = vmul.f32 %v1066, %v1132
    %v1149 = vmul.f32 %v1068, %v1133
    %v1150 = vmul.f32 %v1070, %v1134
    %v1151 = vpack.c.bf16 %v1136, %v1135
    %v1152 = vpack.c.bf16 %v1138, %v1137
    %v1153 = vpack.c.bf16 %v1140, %v1139
    %v1154 = vpack.c.bf16 %v1142, %v1141
    %v1155 = vpack.c.bf16 %v1144, %v1143
    %v1156 = vpack.c.bf16 %v1146, %v1145
    %v1157 = vpack.c.bf16 %v1148, %v1147
    %v1158 = vpack.c.bf16 %v1150, %v1149
    %v1159 = vpack.c.bf16 %v192, %v189
    %v1160 = vpack.c.bf16 %v200, %v197
    %v1161 = vpack.c.bf16 %v208, %v205
    %v1162 = vpack.c.bf16 %v216, %v213
    %v1163 = vpack.c.bf16 %v224, %v221
    %v1164 = vpack.c.bf16 %v232, %v229
    %v1165 = vpack.c.bf16 %v240, %v237
    %v1166 = vpack.c.bf16 %v248, %v245
    %1168 = vrot.lane.b32.xlu0 %v1159, 64
    %v1169 = vpop.permute.xlu0 %1168
    %v1172 = vsel %vm974, %v1151, 0
    %1174 = vmatprep.subr.bf16.mxu0 0
    %1175 = vmatpush1.bf16.msra.mxu0 %v1169
    %1176 = vmatprep.subr.bf16.mxu0 0
    %1177 = vmatpush1.bf16.msra.mxu0 0
    %1178 = vmatprep.subr.bf16.mxu0 0
    %1179 = vmatpush1.bf16.msra.mxu0 0
    %1180 = vmatprep.subr.bf16.mxu0 0
    %1181 = vmatpush1.bf16.msra.mxu0 0
    %1182 = vmatprep.subr.bf16.mxu0 0
    %1183 = vmatpush1.bf16.msra.mxu0 0
    %1184 = vmatprep.subr.bf16.mxu0 0
    %1185 = vmatpush1.bf16.msra.mxu0 0
    %1186 = vmatprep.subr.bf16.mxu0 0
    %1187 = vmatpush1.bf16.msra.mxu0 0
    %1188 = vmatprep.subr.bf16.mxu0 0
    %1189 = vmatpush1.bf16.msra.mxu0 0
    %1190 = vmatprep.subr.bf16.mxu0 0
    %1191 = vmatpush1.bf16.msra.mxu0 0
    %1192 = vmatprep.subr.bf16.mxu0 0
    %1193 = vmatpush1.bf16.msra.mxu0 0
    %1194 = vmatprep.subr.bf16.mxu0 0
    %1195 = vmatpush1.bf16.msra.mxu0 0
    %1196 = vmatprep.subr.bf16.mxu0 0
    %1197 = vmatpush1.bf16.msra.mxu0 0
    %1198 = vmatprep.subr.bf16.mxu0 0
    %1199 = vmatpush1.bf16.msra.mxu0 0
    %1200 = vmatprep.subr.bf16.mxu0 0
    %1201 = vmatpush1.bf16.msra.mxu0 0
    %1202 = vmatprep.subr.bf16.mxu0 0
    %1203 = vmatpush1.bf16.msra.mxu0 0
    %1204 = vmatprep.subr.bf16.mxu0 0
    %1205 = vmatpush1.bf16.msra.mxu0 0
    %1206 = vmatprep.mubr.bf16.mxu0 0
    %1207 = vmatmul.mubr.bf16.gmra.mrb[0].mxu0 %v1172
    %v1208 = vpop.f32.mrb[0].mxu0
    %v1209 = vadd.f32 0.0, %v1208
    %v1210 = vpop.f32.mrb[0].mxu0
    %v1211 = vpop.f32.mrb[0].mxu0
    %v1212 = vadd.f32 0.0, %v1211
    %v1213 = vpop.f32.mrb[0].mxu0
    %1214 = vdwg.mxu0
    %1216 = vrot.lane.b32.xlu0 %v1160, 64
    %v1217 = vpop.permute.xlu0 %1216
    %v1220 = vsel %vm974, %v1152, 0
    %1222 = vmatprep.subr.bf16.mxu0 0
    %1223 = vmatpush1.bf16.msra.mxu0 %v1217
    %1224 = vmatprep.subr.bf16.mxu0 0
    %1225 = vmatpush1.bf16.msra.mxu0 0
    %1226 = vmatprep.subr.bf16.mxu0 0
    %1227 = vmatpush1.bf16.msra.mxu0 0
    %1228 = vmatprep.subr.bf16.mxu0 0
    %1229 = vmatpush1.bf16.msra.mxu0 0
    %1230 = vmatprep.subr.bf16.mxu0 0
    %1231 = vmatpush1.bf16.msra.mxu0 0
    %1232 = vmatprep.subr.bf16.mxu0 0
    %1233 = vmatpush1.bf16.msra.mxu0 0
    %1234 = vmatprep.subr.bf16.mxu0 0
    %1235 = vmatpush1.bf16.msra.mxu0 0
    %1236 = vmatprep.subr.bf16.mxu0 0
    %1237 = vmatpush1.bf16.msra.mxu0 0
    %1238 = vmatprep.subr.bf16.mxu0 0
    %1239 = vmatpush1.bf16.msra.mxu0 0
    %1240 = vmatprep.subr.bf16.mxu0 0
    %1241 = vmatpush1.bf16.msra.mxu0 0
    %1242 = vmatprep.subr.bf16.mxu0 0
    %1243 = vmatpush1.bf16.msra.mxu0 0
    %1244 = vmatprep.subr.bf16.mxu0 0
    %1245 = vmatpush1.bf16.msra.mxu0 0
    %1246 = vmatprep.subr.bf16.mxu0 0
    %1247 = vmatpush1.bf16.msra.mxu0 0
    %1248 = vmatprep.subr.bf16.mxu0 0
    %1249 = vmatpush1.bf16.msra.mxu0 0
    %1250 = vmatprep.subr.bf16.mxu0 0
    %1251 = vmatpush1.bf16.msra.mxu0 0
    %1252 = vmatprep.subr.bf16.mxu0 0
    %1253 = vmatpush1.bf16.msra.mxu0 0
    %1254 = vmatprep.mubr.bf16.mxu0 0
    %1255 = vmatmul.mubr.bf16.gmra.mrb[0].mxu0 %v1220
    %v1256 = vpop.f32.mrb[0].mxu0
    %v1257 = vadd.f32 0.0, %v1256
    %v1258 = vpop.f32.mrb[0].mxu0
    %v1259 = vpop.f32.mrb[0].mxu0
    %v1260 = vadd.f32 0.0, %v1259
    %v1261 = vpop.f32.mrb[0].mxu0
    %1262 = vdwg.mxu0
    %1264 = vrot.lane.b32.xlu0 %v1161, 64
    %v1265 = vpop.permute.xlu0 %1264
    %v1268 = vsel %vm974, %v1153, 0
    %1270 = vmatprep.subr.bf16.mxu0 0
    %1271 = vmatpush1.bf16.msra.mxu0 %v1265
    %1272 = vmatprep.subr.bf16.mxu0 0
    %1273 = vmatpush1.bf16.msra.mxu0 0
    %1274 = vmatprep.subr.bf16.mxu0 0
    %1275 = vmatpush1.bf16.msra.mxu0 0
    %1276 = vmatprep.subr.bf16.mxu0 0
    %1277 = vmatpush1.bf16.msra.mxu0 0
    %1278 = vmatprep.subr.bf16.mxu0 0
    %1279 = vmatpush1.bf16.msra.mxu0 0
    %1280 = vmatprep.subr.bf16.mxu0 0
    %1281 = vmatpush1.bf16.msra.mxu0 0
    %1282 = vmatprep.subr.bf16.mxu0 0
    %1283 = vmatpush1.bf16.msra.mxu0 0
    %1284 = vmatprep.subr.bf16.mxu0 0
    %1285 = vmatpush1.bf16.msra.mxu0 0
    %1286 = vmatprep.subr.bf16.mxu0 0
    %1287 = vmatpush1.bf16.msra.mxu0 0
    %1288 = vmatprep.subr.bf16.mxu0 0
    %1289 = vmatpush1.bf16.msra.mxu0 0
    %1290 = vmatprep.subr.bf16.mxu0 0
    %1291 = vmatpush1.bf16.msra.mxu0 0
    %1292 = vmatprep.subr.bf16.mxu0 0
    %1293 = vmatpush1.bf16.msra.mxu0 0
    %1294 = vmatprep.subr.bf16.mxu0 0
    %1295 = vmatpush1.bf16.msra.mxu0 0
    %1296 = vmatprep.subr.bf16.mxu0 0
    %1297 = vmatpush1.bf16.msra.mxu0 0
    %1298 = vmatprep.subr.bf16.mxu0 0
    %1299 = vmatpush1.bf16.msra.mxu0 0
    %1300 = vmatprep.subr.bf16.mxu0 0
    %1301 = vmatpush1.bf16.msra.mxu0 0
    %1302 = vmatprep.mubr.bf16.mxu0 0
    %1303 = vmatmul.mubr.bf16.gmra.mrb[0].mxu0 %v1268
    %v1304 = vpop.f32.mrb[0].mxu0
    %v1305 = vadd.f32 0.0, %v1304
    %v1306 = vpop.f32.mrb[0].mxu0
    %v1307 = vpop.f32.mrb[0].mxu0
    %v1308 = vadd.f32 0.0, %v1307
    %v1309 = vpop.f32.mrb[0].mxu0
    %1310 = vdwg.mxu0
    %1312 = vrot.lane.b32.xlu0 %v1162, 64
    %v1313 = vpop.permute.xlu0 %1312
    %v1316 = vsel %vm974, %v1154, 0
    %1318 = vmatprep.subr.bf16.mxu0 0
    %1319 = vmatpush1.bf16.msra.mxu0 %v1313
    %1320 = vmatprep.subr.bf16.mxu0 0
    %1321 = vmatpush1.bf16.msra.mxu0 0
    %1322 = vmatprep.subr.bf16.mxu0 0
    %1323 = vmatpush1.bf16.msra.mxu0 0
    %1324 = vmatprep.subr.bf16.mxu0 0
    %1325 = vmatpush1.bf16.msra.mxu0 0
    %1326 = vmatprep.subr.bf16.mxu0 0
    %1327 = vmatpush1.bf16.msra.mxu0 0
    %1328 = vmatprep.subr.bf16.mxu0 0
    %1329 = vmatpush1.bf16.msra.mxu0 0
    %1330 = vmatprep.subr.bf16.mxu0 0
    %1331 = vmatpush1.bf16.msra.mxu0 0
    %1332 = vmatprep.subr.bf16.mxu0 0
    %1333 = vmatpush1.bf16.msra.mxu0 0
    %1334 = vmatprep.subr.bf16.mxu0 0
    %1335 = vmatpush1.bf16.msra.mxu0 0
    %1336 = vmatprep.subr.bf16.mxu0 0
    %1337 = vmatpush1.bf16.msra.mxu0 0
    %1338 = vmatprep.subr.bf16.mxu0 0
    %1339 = vmatpush1.bf16.msra.mxu0 0
    %1340 = vmatprep.subr.bf16.mxu0 0
    %1341 = vmatpush1.bf16.msra.mxu0 0
    %1342 = vmatprep.subr.bf16.mxu0 0
    %1343 = vmatpush1.bf16.msra.mxu0 0
    %1344 = vmatprep.subr.bf16.mxu0 0
    %1345 = vmatpush1.bf16.msra.mxu0 0
    %1346 = vmatprep.subr.bf16.mxu0 0
    %1347 = vmatpush1.bf16.msra.mxu0 0
    %1348 = vmatprep.subr.bf16.mxu0 0
    %1349 = vmatpush1.bf16.msra.mxu0 0
    %1350 = vmatprep.mubr.bf16.mxu0 0
    %1351 = vmatmul.mubr.bf16.gmra.mrb[0].mxu0 %v1316
    %v1352 = vpop.f32.mrb[0].mxu0
    %v1353 = vadd.f32 0.0, %v1352
    %v1354 = vpop.f32.mrb[0].mxu0
    %v1355 = vpop.f32.mrb[0].mxu0
    %v1356 = vadd.f32 0.0, %v1355
    %v1357 = vpop.f32.mrb[0].mxu0
    %1358 = vdwg.mxu0
    %1360 = vrot.lane.b32.xlu0 %v1163, 64
    %v1361 = vpop.permute.xlu0 %1360
    %v1364 = vsel %vm974, %v1155, 0
    %1366 = vmatprep.subr.bf16.mxu0 0
    %1367 = vmatpush1.bf16.msra.mxu0 %v1361
    %1368 = vmatprep.subr.bf16.mxu0 0
    %1369 = vmatpush1.bf16.msra.mxu0 0
    %1370 = vmatprep.subr.bf16.mxu0 0
    %1371 = vmatpush1.bf16.msra.mxu0 0
    %1372 = vmatprep.subr.bf16.mxu0 0
    %1373 = vmatpush1.bf16.msra.mxu0 0
    %1374 = vmatprep.subr.bf16.mxu0 0
    %1375 = vmatpush1.bf16.msra.mxu0 0
    %1376 = vmatprep.subr.bf16.mxu0 0
    %1377 = vmatpush1.bf16.msra.mxu0 0
    %1378 = vmatprep.subr.bf16.mxu0 0
    %1379 = vmatpush1.bf16.msra.mxu0 0
    %1380 = vmatprep.subr.bf16.mxu0 0
    %1381 = vmatpush1.bf16.msra.mxu0 0
    %1382 = vmatprep.subr.bf16.mxu0 0
    %1383 = vmatpush1.bf16.msra.mxu0 0
    %1384 = vmatprep.subr.bf16.mxu0 0
    %1385 = vmatpush1.bf16.msra.mxu0 0
    %1386 = vmatprep.subr.bf16.mxu0 0
    %1387 = vmatpush1.bf16.msra.mxu0 0
    %1388 = vmatprep.subr.bf16.mxu0 0
    %1389 = vmatpush1.bf16.msra.mxu0 0
    %1390 = vmatprep.subr.bf16.mxu0 0
    %1391 = vmatpush1.bf16.msra.mxu0 0
    %1392 = vmatprep.subr.bf16.mxu0 0
    %1393 = vmatpush1.bf16.msra.mxu0 0
    %1394 = vmatprep.subr.bf16.mxu0 0
    %1395 = vmatpush1.bf16.msra.mxu0 0
    %1396 = vmatprep.subr.bf16.mxu0 0
    %1397 = vmatpush1.bf16.msra.mxu0 0
    %1398 = vmatprep.mubr.bf16.mxu0 0
    %1399 = vmatmul.mubr.bf16.gmra.mrb[0].mxu0 %v1364
    %v1400 = vpop.f32.mrb[0].mxu0
    %v1401 = vadd.f32 0.0, %v1400
    %v1402 = vpop.f32.mrb[0].mxu0
    %v1403 = vpop.f32.mrb[0].mxu0
    %v1404 = vadd.f32 0.0, %v1403
    %v1405 = vpop.f32.mrb[0].mxu0
    %1406 = vdwg.mxu0
    %1408 = vrot.lane.b32.xlu0 %v1164, 64
    %v1409 = vpop.permute.xlu0 %1408
    %v1412 = vsel %vm974, %v1156, 0
    %1414 = vmatprep.subr.bf16.mxu0 0
    %1415 = vmatpush1.bf16.msra.mxu0 %v1409
    %1416 = vmatprep.subr.bf16.mxu0 0
    %1417 = vmatpush1.bf16.msra.mxu0 0
    %1418 = vmatprep.subr.bf16.mxu0 0
    %1419 = vmatpush1.bf16.msra.mxu0 0
    %1420 = vmatprep.subr.bf16.mxu0 0
    %1421 = vmatpush1.bf16.msra.mxu0 0
    %1422 = vmatprep.subr.bf16.mxu0 0
    %1423 = vmatpush1.bf16.msra.mxu0 0
    %1424 = vmatprep.subr.bf16.mxu0 0
    %1425 = vmatpush1.bf16.msra.mxu0 0
    %1426 = vmatprep.subr.bf16.mxu0 0
    %1427 = vmatpush1.bf16.msra.mxu0 0
    %1428 = vmatprep.subr.bf16.mxu0 0
    %1429 = vmatpush1.bf16.msra.mxu0 0
    %1430 = vmatprep.subr.bf16.mxu0 0
    %1431 = vmatpush1.bf16.msra.mxu0 0
    %1432 = vmatprep.subr.bf16.mxu0 0
    %1433 = vmatpush1.bf16.msra.mxu0 0
    %1434 = vmatprep.subr.bf16.mxu0 0
    %1435 = vmatpush1.bf16.msra.mxu0 0
    %1436 = vmatprep.subr.bf16.mxu0 0
    %1437 = vmatpush1.bf16.msra.mxu0 0
    %1438 = vmatprep.subr.bf16.mxu0 0
    %1439 = vmatpush1.bf16.msra.mxu0 0
    %1440 = vmatprep.subr.bf16.mxu0 0
    %1441 = vmatpush1.bf16.msra.mxu0 0
    %1442 = vmatprep.subr.bf16.mxu0 0
    %1443 = vmatpush1.bf16.msra.mxu0 0
    %1444 = vmatprep.subr.bf16.mxu0 0
    %1445 = vmatpush1.bf16.msra.mxu0 0
    %1446 = vmatprep.mubr.bf16.mxu0 0
    %1447 = vmatmul.mubr.bf16.gmra.mrb[0].mxu0 %v1412
    %v1448 = vpop.f32.mrb[0].mxu0
    %v1449 = vadd.f32 0.0, %v1448
    %v1450 = vpop.f32.mrb[0].mxu0
    %v1451 = vpop.f32.mrb[0].mxu0
    %v1452 = vadd.f32 0.0, %v1451
    %v1453 = vpop.f32.mrb[0].mxu0
    %1454 = vdwg.mxu0
    %1456 = vrot.lane.b32.xlu0 %v1165, 64
    %v1457 = vpop.permute.xlu0 %1456
    %v1460 = vsel %vm974, %v1157, 0
    %1462 = vmatprep.subr.bf16.mxu0 0
    %1463 = vmatpush1.bf16.msra.mxu0 %v1457
    %1464 = vmatprep.subr.bf16.mxu0 0
    %1465 = vmatpush1.bf16.msra.mxu0 0
    %1466 = vmatprep.subr.bf16.mxu0 0
    %1467 = vmatpush1.bf16.msra.mxu0 0
    %1468 = vmatprep.subr.bf16.mxu0 0
    %1469 = vmatpush1.bf16.msra.mxu0 0
    %1470 = vmatprep.subr.bf16.mxu0 0
    %1471 = vmatpush1.bf16.msra.mxu0 0
    %1472 = vmatprep.subr.bf16.mxu0 0
    %1473 = vmatpush1.bf16.msra.mxu0 0
    %1474 = vmatprep.subr.bf16.mxu0 0
    %1475 = vmatpush1.bf16.msra.mxu0 0
    %1476 = vmatprep.subr.bf16.mxu0 0
    %1477 = vmatpush1.bf16.msra.mxu0 0
    %1478 = vmatprep.subr.bf16.mxu0 0
    %1479 = vmatpush1.bf16.msra.mxu0 0
    %1480 = vmatprep.subr.bf16.mxu0 0
    %1481 = vmatpush1.bf16.msra.mxu0 0
    %1482 = vmatprep.subr.bf16.mxu0 0
    %1483 = vmatpush1.bf16.msra.mxu0 0
    %1484 = vmatprep.subr.bf16.mxu0 0
    %1485 = vmatpush1.bf16.msra.mxu0 0
    %1486 = vmatprep.subr.bf16.mxu0 0
    %1487 = vmatpush1.bf16.msra.mxu0 0
    %1488 = vmatprep.subr.bf16.mxu0 0
    %1489 = vmatpush1.bf16.msra.mxu0 0
    %1490 = vmatprep.subr.bf16.mxu0 0
    %1491 = vmatpush1.bf16.msra.mxu0 0
    %1492 = vmatprep.subr.bf16.mxu0 0
    %1493 = vmatpush1.bf16.msra.mxu0 0
    %1494 = vmatprep.mubr.bf16.mxu0 0
    %1495 = vmatmul.mubr.bf16.gmra.mrb[0].mxu0 %v1460
    %v1496 = vpop.f32.mrb[0].mxu0
    %v1497 = vadd.f32 0.0, %v1496
    %v1498 = vpop.f32.mrb[0].mxu0
    %v1499 = vpop.f32.mrb[0].mxu0
    %v1500 = vadd.f32 0.0, %v1499
    %v1501 = vpop.f32.mrb[0].mxu0
    %1502 = vdwg.mxu0
    %1504 = vrot.lane.b32.xlu0 %v1166, 64
    %v1505 = vpop.permute.xlu0 %1504
    %v1508 = vsel %vm974, %v1158, 0
    %1510 = vmatprep.subr.bf16.mxu0 0
    %1511 = vmatpush1.bf16.msra.mxu0 %v1505
    %1512 = vmatprep.subr.bf16.mxu0 0
    %1513 = vmatpush1.bf16.msra.mxu0 0
    %1514 = vmatprep.subr.bf16.mxu0 0
    %1515 = vmatpush1.bf16.msra.mxu0 0
    %1516 = vmatprep.subr.bf16.mxu0 0
    %1517 = vmatpush1.bf16.msra.mxu0 0
    %1518 = vmatprep.subr.bf16.mxu0 0
    %1519 = vmatpush1.bf16.msra.mxu0 0
    %1520 = vmatprep.subr.bf16.mxu0 0
    %1521 = vmatpush1.bf16.msra.mxu0 0
    %1522 = vmatprep.subr.bf16.mxu0 0
    %1523 = vmatpush1.bf16.msra.mxu0 0
    %1524 = vmatprep.subr.bf16.mxu0 0
    %1525 = vmatpush1.bf16.msra.mxu0 0
    %1526 = vmatprep.subr.bf16.mxu0 0
    %1527 = vmatpush1.bf16.msra.mxu0 0
    %1528 = vmatprep.subr.bf16.mxu0 0
    %1529 = vmatpush1.bf16.msra.mxu0 0
    %1530 = vmatprep.subr.bf16.mxu0 0
    %1531 = vmatpush1.bf16.msra.mxu0 0
    %1532 = vmatprep.subr.bf16.mxu0 0
    %1533 = vmatpush1.bf16.msra.mxu0 0
    %1534 = vmatprep.subr.bf16.mxu0 0
    %1535 = vmatpush1.bf16.msra.mxu0 0
    %1536 = vmatprep.subr.bf16.mxu0 0
    %1537 = vmatpush1.bf16.msra.mxu0 0
    %1538 = vmatprep.subr.bf16.mxu0 0
    %1539 = vmatpush1.bf16.msra.mxu0 0
    %1540 = vmatprep.subr.bf16.mxu0 0
    %1541 = vmatpush1.bf16.msra.mxu0 0
    %1542 = vmatprep.mubr.bf16.mxu0 0
    %1543 = vmatmul.mubr.bf16.gmra.mrb[0].mxu0 %v1508
    %v1544 = vpop.f32.mrb[0].mxu0
    %v1545 = vadd.f32 0.0, %v1544
    %v1546 = vpop.f32.mrb[0].mxu0
    %v1547 = vpop.f32.mrb[0].mxu0
    %v1548 = vadd.f32 0.0, %v1547
    %v1549 = vpop.f32.mrb[0].mxu0
    %1550 = vdwg.mxu0
    %v1551 = vpack.c.bf16 %v1212, %v1209
    %v1552 = vpack.c.bf16 %v1260, %v1257
    %v1553 = vpack.c.bf16 %v1308, %v1305
    %v1554 = vpack.c.bf16 %v1356, %v1353
    %v1555 = vpack.c.bf16 %v1404, %v1401
    %v1556 = vpack.c.bf16 %v1452, %v1449
    %v1557 = vpack.c.bf16 %v1500, %v1497
    %v1558 = vpack.c.bf16 %v1548, %v1545
    %v1559 = vld [vmem:[%s5] sm:$0xf]
    %1560 = vrot.lane.b32.xlu0 %v251, 120
    %v1561 = vpop.permute.xlu0 %1560
    %1562 = vrot.lane.b32.xlu0 %v252, 120
    %v1563 = vpop.permute.xlu0 %1562
    %1564 = vrot.lane.b32.xlu0 %v253, 120
    %v1565 = vpop.permute.xlu0 %1564
    %1566 = vrot.lane.b32.xlu0 %v254, 120
    %v1567 = vpop.permute.xlu0 %1566
    %1568 = vrot.lane.b32.xlu0 %v255, 120
    %v1569 = vpop.permute.xlu0 %1568
    %1570 = vrot.lane.b32.xlu0 %v256, 120
    %v1571 = vpop.permute.xlu0 %1570
    %1572 = vrot.lane.b32.xlu0 %v257, 120
    %v1573 = vpop.permute.xlu0 %1572
    %1574 = vrot.lane.b32.xlu0 %v258, 120
    %v1575 = vpop.permute.xlu0 %1574
    %1576 = vrot.lane.b32.xlu0 %v259, 120
    %v1577 = vpop.permute.xlu0 %1576
    %1578 = vrot.lane.b32.xlu0 %v260, 120
    %v1579 = vpop.permute.xlu0 %1578
    %1580 = vrot.lane.b32.xlu0 %v261, 120
    %v1581 = vpop.permute.xlu0 %1580
    %1582 = vrot.lane.b32.xlu0 %v262, 120
    %v1583 = vpop.permute.xlu0 %1582
    %1584 = vrot.lane.b32.xlu0 %v263, 120
    %v1585 = vpop.permute.xlu0 %1584
    %1586 = vrot.lane.b32.xlu0 %v264, 120
    %v1587 = vpop.permute.xlu0 %1586
    %1588 = vrot.lane.b32.xlu0 %v265, 120
    %v1589 = vpop.permute.xlu0 %1588
    %1590 = vrot.lane.b32.xlu0 %v266, 120
    %v1591 = vpop.permute.xlu0 %1590
    %v1608 = vsel %vm267, %v1561, 0.0
    %1609 = vadd.xlane.f32.xlu0 %v1608
    %v1610 = vpop.xlane.xlu0 %1609
    %v1611 = vsel %vm267, %v1563, 0.0
    %1612 = vadd.xlane.f32.xlu0 %v1611
    %v1613 = vpop.xlane.xlu0 %1612
    %v1614 = vsel %vm267, %v1565, 0.0
    %1615 = vadd.xlane.f32.xlu0 %v1614
    %v1616 = vpop.xlane.xlu0 %1615
    %v1617 = vsel %vm267, %v1567, 0.0
    %1618 = vadd.xlane.f32.xlu0 %v1617
    %v1619 = vpop.xlane.xlu0 %1618
    %v1620 = vsel %vm267, %v1569, 0.0
    %1621 = vadd.xlane.f32.xlu0 %v1620
    %v1622 = vpop.xlane.xlu0 %1621
    %v1623 = vsel %vm267, %v1571, 0.0
    %1624 = vadd.xlane.f32.xlu0 %v1623
    %v1625 = vpop.xlane.xlu0 %1624
    %v1626 = vsel %vm267, %v1573, 0.0
    %1627 = vadd.xlane.f32.xlu0 %v1626
    %v1628 = vpop.xlane.xlu0 %1627
    %v1629 = vsel %vm267, %v1575, 0.0
    %1630 = vadd.xlane.f32.xlu0 %v1629
    %v1631 = vpop.xlane.xlu0 %1630
    %v1632 = vsel %vm267, %v1577, 0.0
    %1633 = vadd.xlane.f32.xlu0 %v1632
    %v1634 = vpop.xlane.xlu0 %1633
    %v1635 = vsel %vm267, %v1579, 0.0
    %1636 = vadd.xlane.f32.xlu0 %v1635
    %v1637 = vpop.xlane.xlu0 %1636
    %v1638 = vsel %vm267, %v1581, 0.0
    %1639 = vadd.xlane.f32.xlu0 %v1638
    %v1640 = vpop.xlane.xlu0 %1639
    %v1641 = vsel %vm267, %v1583, 0.0
    %1642 = vadd.xlane.f32.xlu0 %v1641
    %v1643 = vpop.xlane.xlu0 %1642
    %v1644 = vsel %vm267, %v1585, 0.0
    %1645 = vadd.xlane.f32.xlu0 %v1644
    %v1646 = vpop.xlane.xlu0 %1645
    %v1647 = vsel %vm267, %v1587, 0.0
    %1648 = vadd.xlane.f32.xlu0 %v1647
    %v1649 = vpop.xlane.xlu0 %1648
    %v1650 = vsel %vm267, %v1589, 0.0
    %1651 = vadd.xlane.f32.xlu0 %v1650
    %v1652 = vpop.xlane.xlu0 %1651
    %v1653 = vsel %vm267, %v1591, 0.0
    %1654 = vadd.xlane.f32.xlu0 %v1653
    %v1655 = vpop.xlane.xlu0 %1654
    %v1656 = vadd.f32 %v1610, 1e-12
    %v1657 = vadd.f32 %v1613, 1e-12
    %v1658 = vadd.f32 %v1616, 1e-12
    %v1659 = vadd.f32 %v1619, 1e-12
    %v1660 = vadd.f32 %v1622, 1e-12
    %v1661 = vadd.f32 %v1625, 1e-12
    %v1662 = vadd.f32 %v1628, 1e-12
    %v1663 = vadd.f32 %v1631, 1e-12
    %v1664 = vadd.f32 %v1634, 1e-12
    %v1665 = vadd.f32 %v1637, 1e-12
    %v1666 = vadd.f32 %v1640, 1e-12
    %v1667 = vadd.f32 %v1643, 1e-12
    %v1668 = vadd.f32 %v1646, 1e-12
    %v1669 = vadd.f32 %v1649, 1e-12
    %v1670 = vadd.f32 %v1652, 1e-12
    %v1671 = vadd.f32 %v1655, 1e-12
    %v1672 = vrsqrt.pop %v1656
    %v1673 = vrsqrt.pop %v1657
    %v1674 = vrsqrt.pop %v1658
    %v1675 = vrsqrt.pop %v1659
    %v1676 = vrsqrt.pop %v1660
    %v1677 = vrsqrt.pop %v1661
    %v1678 = vrsqrt.pop %v1662
    %v1679 = vrsqrt.pop %v1663
    %v1680 = vrsqrt.pop %v1664
    %v1681 = vrsqrt.pop %v1665
    %v1682 = vrsqrt.pop %v1666
    %v1683 = vrsqrt.pop %v1667
    %v1684 = vrsqrt.pop %v1668
    %v1685 = vrsqrt.pop %v1669
    %v1686 = vrsqrt.pop %v1670
    %v1687 = vrsqrt.pop %v1671
    %v1688 = vmul.f32 %v189, %v1672
    %v1689 = vmul.f32 %v192, %v1673
    %v1690 = vmul.f32 %v197, %v1674
    %v1691 = vmul.f32 %v200, %v1675
    %v1692 = vmul.f32 %v205, %v1676
    %v1693 = vmul.f32 %v208, %v1677
    %v1694 = vmul.f32 %v213, %v1678
    %v1695 = vmul.f32 %v216, %v1679
    %v1696 = vmul.f32 %v221, %v1680
    %v1697 = vmul.f32 %v224, %v1681
    %v1698 = vmul.f32 %v229, %v1682
    %v1699 = vmul.f32 %v232, %v1683
    %v1700 = vmul.f32 %v237, %v1684
    %v1701 = vmul.f32 %v240, %v1685
    %v1702 = vmul.f32 %v245, %v1686
    %v1703 = vmul.f32 %v248, %v1687
    %1704 = vrot.lane.b32.xlu0 %v251, 88
    %v1705 = vpop.permute.xlu0 %1704
    %1706 = vrot.lane.b32.xlu0 %v252, 88
    %v1707 = vpop.permute.xlu0 %1706
    %1708 = vrot.lane.b32.xlu0 %v253, 88
    %v1709 = vpop.permute.xlu0 %1708
    %1710 = vrot.lane.b32.xlu0 %v254, 88
    %v1711 = vpop.permute.xlu0 %1710
    %1712 = vrot.lane.b32.xlu0 %v255, 88
    %v1713 = vpop.permute.xlu0 %1712
    %1714 = vrot.lane.b32.xlu0 %v256, 88
    %v1715 = vpop.permute.xlu0 %1714
    %1716 = vrot.lane.b32.xlu0 %v257, 88
    %v1717 = vpop.permute.xlu0 %1716
    %1718 = vrot.lane.b32.xlu0 %v258, 88
    %v1719 = vpop.permute.xlu0 %1718
    %1720 = vrot.lane.b32.xlu0 %v259, 88
    %v1721 = vpop.permute.xlu0 %1720
    %1722 = vrot.lane.b32.xlu0 %v260, 88
    %v1723 = vpop.permute.xlu0 %1722
    %1724 = vrot.lane.b32.xlu0 %v261, 88
    %v1725 = vpop.permute.xlu0 %1724
    %1726 = vrot.lane.b32.xlu0 %v262, 88
    %v1727 = vpop.permute.xlu0 %1726
    %1728 = vrot.lane.b32.xlu0 %v263, 88
    %v1729 = vpop.permute.xlu0 %1728
    %1730 = vrot.lane.b32.xlu0 %v264, 88
    %v1731 = vpop.permute.xlu0 %1730
    %1732 = vrot.lane.b32.xlu0 %v265, 88
    %v1733 = vpop.permute.xlu0 %1732
    %1734 = vrot.lane.b32.xlu0 %v266, 88
    %v1735 = vpop.permute.xlu0 %1734
    %v1752 = vsel %vm267, %v1705, 0.0
    %1753 = vadd.xlane.f32.xlu0 %v1752
    %v1754 = vpop.xlane.xlu0 %1753
    %v1755 = vsel %vm267, %v1707, 0.0
    %1756 = vadd.xlane.f32.xlu0 %v1755
    %v1757 = vpop.xlane.xlu0 %1756
    %v1758 = vsel %vm267, %v1709, 0.0
    %1759 = vadd.xlane.f32.xlu0 %v1758
    %v1760 = vpop.xlane.xlu0 %1759
    %v1761 = vsel %vm267, %v1711, 0.0
    %1762 = vadd.xlane.f32.xlu0 %v1761
    %v1763 = vpop.xlane.xlu0 %1762
    %v1764 = vsel %vm267, %v1713, 0.0
    %1765 = vadd.xlane.f32.xlu0 %v1764
    %v1766 = vpop.xlane.xlu0 %1765
    %v1767 = vsel %vm267, %v1715, 0.0
    %1768 = vadd.xlane.f32.xlu0 %v1767
    %v1769 = vpop.xlane.xlu0 %1768
    %v1770 = vsel %vm267, %v1717, 0.0
    %1771 = vadd.xlane.f32.xlu0 %v1770
    %v1772 = vpop.xlane.xlu0 %1771
    %v1773 = vsel %vm267, %v1719, 0.0
    %1774 = vadd.xlane.f32.xlu0 %v1773
    %v1775 = vpop.xlane.xlu0 %1774
    %v1776 = vsel %vm267, %v1721, 0.0
    %1777 = vadd.xlane.f32.xlu0 %v1776
    %v1778 = vpop.xlane.xlu0 %1777
    %v1779 = vsel %vm267, %v1723, 0.0
    %1780 = vadd.xlane.f32.xlu0 %v1779
    %v1781 = vpop.xlane.xlu0 %1780
    %v1782 = vsel %vm267, %v1725, 0.0
    %1783 = vadd.xlane.f32.xlu0 %v1782
    %v1784 = vpop.xlane.xlu0 %1783
    %v1785 = vsel %vm267, %v1727, 0.0
    %1786 = vadd.xlane.f32.xlu0 %v1785
    %v1787 = vpop.xlane.xlu0 %1786
    %v1788 = vsel %vm267, %v1729, 0.0
    %1789 = vadd.xlane.f32.xlu0 %v1788
    %v1790 = vpop.xlane.xlu0 %1789
    %v1791 = vsel %vm267, %v1731, 0.0
    %1792 = vadd.xlane.f32.xlu0 %v1791
    %v1793 = vpop.xlane.xlu0 %1792
    %v1794 = vsel %vm267, %v1733, 0.0
    %1795 = vadd.xlane.f32.xlu0 %v1794
    %v1796 = vpop.xlane.xlu0 %1795
    %v1797 = vsel %vm267, %v1735, 0.0
    %1798 = vadd.xlane.f32.xlu0 %v1797
    %v1799 = vpop.xlane.xlu0 %1798
    %v1800 = vadd.f32 %v1754, 1e-12
    %v1801 = vadd.f32 %v1757, 1e-12
    %v1802 = vadd.f32 %v1760, 1e-12
    %v1803 = vadd.f32 %v1763, 1e-12
    %v1804 = vadd.f32 %v1766, 1e-12
    %v1805 = vadd.f32 %v1769, 1e-12
    %v1806 = vadd.f32 %v1772, 1e-12
    %v1807 = vadd.f32 %v1775, 1e-12
    %v1808 = vadd.f32 %v1778, 1e-12
    %v1809 = vadd.f32 %v1781, 1e-12
    %v1810 = vadd.f32 %v1784, 1e-12
    %v1811 = vadd.f32 %v1787, 1e-12
    %v1812 = vadd.f32 %v1790, 1e-12
    %v1813 = vadd.f32 %v1793, 1e-12
    %v1814 = vadd.f32 %v1796, 1e-12
    %v1815 = vadd.f32 %v1799, 1e-12
    %v1816 = vrsqrt.pop %v1800
    %v1817 = vrsqrt.pop %v1801
    %v1818 = vrsqrt.pop %v1802
    %v1819 = vrsqrt.pop %v1803
    %v1820 = vrsqrt.pop %v1804
    %v1821 = vrsqrt.pop %v1805
    %v1822 = vrsqrt.pop %v1806
    %v1823 = vrsqrt.pop %v1807
    %v1824 = vrsqrt.pop %v1808
    %v1825 = vrsqrt.pop %v1809
    %v1826 = vrsqrt.pop %v1810
    %v1827 = vrsqrt.pop %v1811
    %v1828 = vrsqrt.pop %v1812
    %v1829 = vrsqrt.pop %v1813
    %v1830 = vrsqrt.pop %v1814
    %v1831 = vrsqrt.pop %v1815
    %v1832 = vmul.f32 %v189, %v1816
    %v1833 = vmul.f32 %v192, %v1817
    %v1834 = vmul.f32 %v197, %v1818
    %v1835 = vmul.f32 %v200, %v1819
    %v1836 = vmul.f32 %v205, %v1820
    %v1837 = vmul.f32 %v208, %v1821
    %v1838 = vmul.f32 %v213, %v1822
    %v1839 = vmul.f32 %v216, %v1823
    %v1840 = vmul.f32 %v221, %v1824
    %v1841 = vmul.f32 %v224, %v1825
    %v1842 = vmul.f32 %v229, %v1826
    %v1843 = vmul.f32 %v232, %v1827
    %v1844 = vmul.f32 %v237, %v1828
    %v1845 = vmul.f32 %v240, %v1829
    %v1846 = vmul.f32 %v245, %v1830
    %v1847 = vmul.f32 %v248, %v1831
    %s1848 = sld [smem:[#allocation9 + $0x1]]
    %v1849 = vstv %s1848
    %v1850 = vmul.f32 %v1688, %v1849
    %v1851 = vmul.f32 %v1689, %v1849
    %v1852 = vmul.f32 %v1690, %v1849
    %v1853 = vmul.f32 %v1691, %v1849
    %v1854 = vmul.f32 %v1692, %v1849
    %v1855 = vmul.f32 %v1693, %v1849
    %v1856 = vmul.f32 %v1694, %v1849
    %v1857 = vmul.f32 %v1695, %v1849
    %v1858 = vmul.f32 %v1696, %v1849
    %v1859 = vmul.f32 %v1697, %v1849
    %v1860 = vmul.f32 %v1698, %v1849
    %v1861 = vmul.f32 %v1699, %v1849
    %v1862 = vmul.f32 %v1700, %v1849
    %v1863 = vmul.f32 %v1701, %v1849
    %v1864 = vmul.f32 %v1702, %v1849
    %v1865 = vmul.f32 %v1703, %v1849
    %v1866 = vpack.c.bf16 %v1851, %v1850
    %v1867 = vpack.c.bf16 %v1853, %v1852
    %v1868 = vpack.c.bf16 %v1855, %v1854
    %v1869 = vpack.c.bf16 %v1857, %v1856
    %v1870 = vpack.c.bf16 %v1859, %v1858
    %v1871 = vpack.c.bf16 %v1861, %v1860
    %v1872 = vpack.c.bf16 %v1863, %v1862
    %v1873 = vpack.c.bf16 %v1865, %v1864
    %v1874 = vpack.c.bf16 %v1833, %v1832
    %v1875 = vpack.c.bf16 %v1835, %v1834
    %v1876 = vpack.c.bf16 %v1837, %v1836
    %v1877 = vpack.c.bf16 %v1839, %v1838
    %v1878 = vpack.c.bf16 %v1841, %v1840
    %v1879 = vpack.c.bf16 %v1843, %v1842
    %v1880 = vpack.c.bf16 %v1845, %v1844
    %v1881 = vpack.c.bf16 %v1847, %v1846
    %s1882 = scalar_lea.vmem [#allocation6], 16
    %v1883 = vld [vmem:[%s1882] sm:$0xff]
    %v1884 = vld [vmem:[%s1882 + $0x8] sm:$0xff]
    %v1885 = vld [vmem:[%s1882 + $0x40] sm:$0xff]
    %v1886 = vld [vmem:[%s1882 + $0x48] sm:$0xff]
    %v1887 = vld [vmem:[%s1882 + $0x80] sm:$0xff]
    %v1888 = vld [vmem:[%s1882 + $0x88] sm:$0xff]
    %v1889 = vld [vmem:[%s1882 + $0xc0] sm:$0xff]
    %v1890 = vld [vmem:[%s1882 + $0xc8] sm:$0xff]
    %v1891 = vld [vmem:[%s1882 + $0x100] sm:$0xff]
    %v1892 = vld [vmem:[%s1882 + $0x108] sm:$0xff]
    %v1893 = vld [vmem:[%s1882 + $0x140] sm:$0xff]
    %v1894 = vld [vmem:[%s1882 + $0x148] sm:$0xff]
    %v1895 = vld [vmem:[%s1882 + $0x180] sm:$0xff]
    %v1896 = vld [vmem:[%s1882 + $0x188] sm:$0xff]
    %v1897 = vld [vmem:[%s1882 + $0x1c0] sm:$0xff]
    %v1898 = vld [vmem:[%s1882 + $0x1c8] sm:$0xff]
    %1900 = vrot.lane.b32.xlu0 %v1866, 120
    %v1901 = vpop.permute.xlu0 %1900
    %1903 = vrot.lane.b32.xlu0 %v1874, 88
    %v1904 = vpop.permute.xlu0 %1903
    %v1906 = vsel %vm267, %v1901, 0
    %v1909 = vsel %vm267, %v1904, 0
    %1911 = vmatprep.subr.bf16.mxu0 0
    %1912 = vmatpush1.bf16.xpose.msra.mxu0 %v1909
    %1913 = vmatprep.subr.bf16.mxu0 0
    %1914 = vmatpush1.bf16.xpose.msra.mxu0 0
    %1915 = vmatprep.subr.bf16.mxu0 0
    %1916 = vmatpush1.bf16.xpose.msra.mxu0 0
    %1917 = vmatprep.subr.bf16.mxu0 0
    %1918 = vmatpush1.bf16.xpose.msra.mxu0 0
    %1919 = vmatprep.subr.bf16.mxu0 0
    %1920 = vmatpush1.bf16.xpose.msra.mxu0 0
    %1921 = vmatprep.subr.bf16.mxu0 0
    %1922 = vmatpush1.bf16.xpose.msra.mxu0 0
    %1923 = vmatprep.subr.bf16.mxu0 0
    %1924 = vmatpush1.bf16.xpose.msra.mxu0 0
    %1925 = vmatprep.subr.bf16.mxu0 0
    %1926 = vmatpush1.bf16.xpose.msra.mxu0 0
    %1927 = vmatprep.subr.bf16.mxu0 0
    %1928 = vmatpush1.bf16.xpose.msra.mxu0 0
    %1929 = vmatprep.subr.bf16.mxu0 0
    %1930 = vmatpush1.bf16.xpose.msra.mxu0 0
    %1931 = vmatprep.subr.bf16.mxu0 0
    %1932 = vmatpush1.bf16.xpose.msra.mxu0 0
    %1933 = vmatprep.subr.bf16.mxu0 0
    %1934 = vmatpush1.bf16.xpose.msra.mxu0 0
    %1935 = vmatprep.subr.bf16.mxu0 0
    %1936 = vmatpush1.bf16.xpose.msra.mxu0 0
    %1937 = vmatprep.subr.bf16.mxu0 0
    %1938 = vmatpush1.bf16.xpose.msra.mxu0 0
    %1939 = vmatprep.subr.bf16.mxu0 0
    %1940 = vmatpush1.bf16.xpose.msra.mxu0 0
    %1941 = vmatprep.subr.bf16.mxu0 0
    %1942 = vmatpush1.bf16.xpose.msra.mxu0 0
    %1943 = vmatprep.mubr.bf16.mxu0 0
    %1944 = vmatmul.mubr.bf16.gmra.mrb[0].mxu0 %v1906
    %v1945 = vpop.f32.mrb[0].mxu0
    %v1946 = vadd.f32 %v1883, %v1945
    %v1947 = vpop.f32.mrb[0].mxu0
    %v1948 = vpop.f32.mrb[0].mxu0
    %v1949 = vadd.f32 %v1884, %v1948
    %v1950 = vpop.f32.mrb[0].mxu0
    %1951 = vdwg.mxu0
    %1953 = vrot.lane.b32.xlu0 %v1867, 120
    %v1954 = vpop.permute.xlu0 %1953
    %1956 = vrot.lane.b32.xlu0 %v1875, 88
    %v1957 = vpop.permute.xlu0 %1956
    %v1959 = vsel %vm267, %v1954, 0
    %v1962 = vsel %vm267, %v1957, 0
    %1964 = vmatprep.subr.bf16.mxu0 0
    %1965 = vmatpush1.bf16.xpose.msra.mxu0 %v1962
    %1966 = vmatprep.subr.bf16.mxu0 0
    %1967 = vmatpush1.bf16.xpose.msra.mxu0 0
    %1968 = vmatprep.subr.bf16.mxu0 0
    %1969 = vmatpush1.bf16.xpose.msra.mxu0 0
    %1970 = vmatprep.subr.bf16.mxu0 0
    %1971 = vmatpush1.bf16.xpose.msra.mxu0 0
    %1972 = vmatprep.subr.bf16.mxu0 0
    %1973 = vmatpush1.bf16.xpose.msra.mxu0 0
    %1974 = vmatprep.subr.bf16.mxu0 0
    %1975 = vmatpush1.bf16.xpose.msra.mxu0 0
    %1976 = vmatprep.subr.bf16.mxu0 0
    %1977 = vmatpush1.bf16.xpose.msra.mxu0 0
    %1978 = vmatprep.subr.bf16.mxu0 0
    %1979 = vmatpush1.bf16.xpose.msra.mxu0 0
    %1980 = vmatprep.subr.bf16.mxu0 0
    %1981 = vmatpush1.bf16.xpose.msra.mxu0 0
    %1982 = vmatprep.subr.bf16.mxu0 0
    %1983 = vmatpush1.bf16.xpose.msra.mxu0 0
    %1984 = vmatprep.subr.bf16.mxu0 0
    %1985 = vmatpush1.bf16.xpose.msra.mxu0 0
    %1986 = vmatprep.subr.bf16.mxu0 0
    %1987 = vmatpush1.bf16.xpose.msra.mxu0 0
    %1988 = vmatprep.subr.bf16.mxu0 0
    %1989 = vmatpush1.bf16.xpose.msra.mxu0 0
    %1990 = vmatprep.subr.bf16.mxu0 0
    %1991 = vmatpush1.bf16.xpose.msra.mxu0 0
    %1992 = vmatprep.subr.bf16.mxu0 0
    %1993 = vmatpush1.bf16.xpose.msra.mxu0 0
    %1994 = vmatprep.subr.bf16.mxu0 0
    %1995 = vmatpush1.bf16.xpose.msra.mxu0 0
    %1996 = vmatprep.mubr.bf16.mxu0 0
    %1997 = vmatmul.mubr.bf16.gmra.mrb[0].mxu0 %v1959
    %v1998 = vpop.f32.mrb[0].mxu0
    %v1999 = vadd.f32 %v1885, %v1998
    %v2000 = vpop.f32.mrb[0].mxu0
    %v2001 = vpop.f32.mrb[0].mxu0
    %v2002 = vadd.f32 %v1886, %v2001
    %v2003 = vpop.f32.mrb[0].mxu0
    %2004 = vdwg.mxu0
    %2006 = vrot.lane.b32.xlu0 %v1868, 120
    %v2007 = vpop.permute.xlu0 %2006
    %2009 = vrot.lane.b32.xlu0 %v1876, 88
    %v2010 = vpop.permute.xlu0 %2009
    %v2012 = vsel %vm267, %v2007, 0
    %v2015 = vsel %vm267, %v2010, 0
    %2017 = vmatprep.subr.bf16.mxu0 0
    %2018 = vmatpush1.bf16.xpose.msra.mxu0 %v2015
    %2019 = vmatprep.subr.bf16.mxu0 0
    %2020 = vmatpush1.bf16.xpose.msra.mxu0 0
    %2021 = vmatprep.subr.bf16.mxu0 0
    %2022 = vmatpush1.bf16.xpose.msra.mxu0 0
    %2023 = vmatprep.subr.bf16.mxu0 0
    %2024 = vmatpush1.bf16.xpose.msra.mxu0 0
    %2025 = vmatprep.subr.bf16.mxu0 0
    %2026 = vmatpush1.bf16.xpose.msra.mxu0 0
    %2027 = vmatprep.subr.bf16.mxu0 0
    %2028 = vmatpush1.bf16.xpose.msra.mxu0 0
    %2029 = vmatprep.subr.bf16.mxu0 0
    %2030 = vmatpush1.bf16.xpose.msra.mxu0 0
    %2031 = vmatprep.subr.bf16.mxu0 0
    %2032 = vmatpush1.bf16.xpose.msra.mxu0 0
    %2033 = vmatprep.subr.bf16.mxu0 0
    %2034 = vmatpush1.bf16.xpose.msra.mxu0 0
    %2035 = vmatprep.subr.bf16.mxu0 0
    %2036 = vmatpush1.bf16.xpose.msra.mxu0 0
    %2037 = vmatprep.subr.bf16.mxu0 0
    %2038 = vmatpush1.bf16.xpose.msra.mxu0 0
    %2039 = vmatprep.subr.bf16.mxu0 0
    %2040 = vmatpush1.bf16.xpose.msra.mxu0 0
    %2041 = vmatprep.subr.bf16.mxu0 0
    %2042 = vmatpush1.bf16.xpose.msra.mxu0 0
    %2043 = vmatprep.subr.bf16.mxu0 0
    %2044 = vmatpush1.bf16.xpose.msra.mxu0 0
    %2045 = vmatprep.subr.bf16.mxu0 0
    %2046 = vmatpush1.bf16.xpose.msra.mxu0 0
    %2047 = vmatprep.subr.bf16.mxu0 0
    %2048 = vmatpush1.bf16.xpose.msra.mxu0 0
    %2049 = vmatprep.mubr.bf16.mxu0 0
    %2050 = vmatmul.mubr.bf16.gmra.mrb[0].mxu0 %v2012
    %v2051 = vpop.f32.mrb[0].mxu0
    %v2052 = vadd.f32 %v1887, %v2051
    %v2053 = vpop.f32.mrb[0].mxu0
    %v2054 = vpop.f32.mrb[0].mxu0
    %v2055 = vadd.f32 %v1888, %v2054
    %v2056 = vpop.f32.mrb[0].mxu0
    %2057 = vdwg.mxu0
    %2059 = vrot.lane.b32.xlu0 %v1869, 120
    %v2060 = vpop.permute.xlu0 %2059
    %2062 = vrot.lane.b32.xlu0 %v1877, 88
    %v2063 = vpop.permute.xlu0 %2062
    %v2065 = vsel %vm267, %v2060, 0
    %v2068 = vsel %vm267, %v2063, 0
    %2070 = vmatprep.subr.bf16.mxu0 0
    %2071 = vmatpush1.bf16.xpose.msra.mxu0 %v2068
    %2072 = vmatprep.subr.bf16.mxu0 0
    %2073 = vmatpush1.bf16.xpose.msra.mxu0 0
    %2074 = vmatprep.subr.bf16.mxu0 0
    %2075 = vmatpush1.bf16.xpose.msra.mxu0 0
    %2076 = vmatprep.subr.bf16.mxu0 0
    %2077 = vmatpush1.bf16.xpose.msra.mxu0 0
    %2078 = vmatprep.subr.bf16.mxu0 0
    %2079 = vmatpush1.bf16.xpose.msra.mxu0 0
    %2080 = vmatprep.subr.bf16.mxu0 0
    %2081 = vmatpush1.bf16.xpose.msra.mxu0 0
    %2082 = vmatprep.subr.bf16.mxu0 0
    %2083 = vmatpush1.bf16.xpose.msra.mxu0 0
    %2084 = vmatprep.subr.bf16.mxu0 0
    %2085 = vmatpush1.bf16.xpose.msra.mxu0 0
    %2086 = vmatprep.subr.bf16.mxu0 0
    %2087 = vmatpush1.bf16.xpose.msra.mxu0 0
    %2088 = vmatprep.subr.bf16.mxu0 0
    %2089 = vmatpush1.bf16.xpose.msra.mxu0 0
    %2090 = vmatprep.subr.bf16.mxu0 0
    %2091 = vmatpush1.bf16.xpose.msra.mxu0 0
    %2092 = vmatprep.subr.bf16.mxu0 0
    %2093 = vmatpush1.bf16.xpose.msra.mxu0 0
    %2094 = vmatprep.subr.bf16.mxu0 0
    %2095 = vmatpush1.bf16.xpose.msra.mxu0 0
    %2096 = vmatprep.subr.bf16.mxu0 0
    %2097 = vmatpush1.bf16.xpose.msra.mxu0 0
    %2098 = vmatprep.subr.bf16.mxu0 0
    %2099 = vmatpush1.bf16.xpose.msra.mxu0 0
    %2100 = vmatprep.subr.bf16.mxu0 0
    %2101 = vmatpush1.bf16.xpose.msra.mxu0 0
    %2102 = vmatprep.mubr.bf16.mxu0 0
    %2103 = vmatmul.mubr.bf16.gmra.mrb[0].mxu0 %v2065
    %v2104 = vpop.f32.mrb[0].mxu0
    %v2105 = vadd.f32 %v1889, %v2104
    %v2106 = vpop.f32.mrb[0].mxu0
    %v2107 = vpop.f32.mrb[0].mxu0
    %v2108 = vadd.f32 %v1890, %v2107
    %v2109 = vpop.f32.mrb[0].mxu0
    %2110 = vdwg.mxu0
    %2112 = vrot.lane.b32.xlu0 %v1870, 120
    %v2113 = vpop.permute.xlu0 %2112
    %2115 = vrot.lane.b32.xlu0 %v1878, 88
    %v2116 = vpop.permute.xlu0 %2115
    %v2118 = vsel %vm267, %v2113, 0
    %v2121 = vsel %vm267, %v2116, 0
    %2123 = vmatprep.subr.bf16.mxu0 0
    %2124 = vmatpush1.bf16.xpose.msra.mxu0 %v2121
    %2125 = vmatprep.subr.bf16.mxu0 0
    %2126 = vmatpush1.bf16.xpose.msra.mxu0 0
    %2127 = vmatprep.subr.bf16.mxu0 0
    %2128 = vmatpush1.bf16.xpose.msra.mxu0 0
    %2129 = vmatprep.subr.bf16.mxu0 0
    %2130 = vmatpush1.bf16.xpose.msra.mxu0 0
    %2131 = vmatprep.subr.bf16.mxu0 0
    %2132 = vmatpush1.bf16.xpose.msra.mxu0 0
    %2133 = vmatprep.subr.bf16.mxu0 0
    %2134 = vmatpush1.bf16.xpose.msra.mxu0 0
    %2135 = vmatprep.subr.bf16.mxu0 0
    %2136 = vmatpush1.bf16.xpose.msra.mxu0 0
    %2137 = vmatprep.subr.bf16.mxu0 0
    %2138 = vmatpush1.bf16.xpose.msra.mxu0 0
    %2139 = vmatprep.subr.bf16.mxu0 0
    %2140 = vmatpush1.bf16.xpose.msra.mxu0 0
    %2141 = vmatprep.subr.bf16.mxu0 0
    %2142 = vmatpush1.bf16.xpose.msra.mxu0 0
    %2143 = vmatprep.subr.bf16.mxu0 0
    %2144 = vmatpush1.bf16.xpose.msra.mxu0 0
    %2145 = vmatprep.subr.bf16.mxu0 0
    %2146 = vmatpush1.bf16.xpose.msra.mxu0 0
    %2147 = vmatprep.subr.bf16.mxu0 0
    %2148 = vmatpush1.bf16.xpose.msra.mxu0 0
    %2149 = vmatprep.subr.bf16.mxu0 0
    %2150 = vmatpush1.bf16.xpose.msra.mxu0 0
    %2151 = vmatprep.subr.bf16.mxu0 0
    %2152 = vmatpush1.bf16.xpose.msra.mxu0 0
    %2153 = vmatprep.subr.bf16.mxu0 0
    %2154 = vmatpush1.bf16.xpose.msra.mxu0 0
    %2155 = vmatprep.mubr.bf16.mxu0 0
    %2156 = vmatmul.mubr.bf16.gmra.mrb[0].mxu0 %v2118
    %v2157 = vpop.f32.mrb[0].mxu0
    %v2158 = vadd.f32 %v1891, %v2157
    %v2159 = vpop.f32.mrb[0].mxu0
    %v2160 = vpop.f32.mrb[0].mxu0
    %v2161 = vadd.f32 %v1892, %v2160
    %v2162 = vpop.f32.mrb[0].mxu0
    %2163 = vdwg.mxu0
    %2165 = vrot.lane.b32.xlu0 %v1871, 120
    %v2166 = vpop.permute.xlu0 %2165
    %2168 = vrot.lane.b32.xlu0 %v1879, 88
    %v2169 = vpop.permute.xlu0 %2168
    %v2171 = vsel %vm267, %v2166, 0
    %v2174 = vsel %vm267, %v2169, 0
    %2176 = vmatprep.subr.bf16.mxu0 0
    %2177 = vmatpush1.bf16.xpose.msra.mxu0 %v2174
    %2178 = vmatprep.subr.bf16.mxu0 0
    %2179 = vmatpush1.bf16.xpose.msra.mxu0 0
    %2180 = vmatprep.subr.bf16.mxu0 0
    %2181 = vmatpush1.bf16.xpose.msra.mxu0 0
    %2182 = vmatprep.subr.bf16.mxu0 0
    %2183 = vmatpush1.bf16.xpose.msra.mxu0 0
    %2184 = vmatprep.subr.bf16.mxu0 0
    %2185 = vmatpush1.bf16.xpose.msra.mxu0 0
    %2186 = vmatprep.subr.bf16.mxu0 0
    %2187 = vmatpush1.bf16.xpose.msra.mxu0 0
    %2188 = vmatprep.subr.bf16.mxu0 0
    %2189 = vmatpush1.bf16.xpose.msra.mxu0 0
    %2190 = vmatprep.subr.bf16.mxu0 0
    %2191 = vmatpush1.bf16.xpose.msra.mxu0 0
    %2192 = vmatprep.subr.bf16.mxu0 0
    %2193 = vmatpush1.bf16.xpose.msra.mxu0 0
    %2194 = vmatprep.subr.bf16.mxu0 0
    %2195 = vmatpush1.bf16.xpose.msra.mxu0 0
    %2196 = vmatprep.subr.bf16.mxu0 0
    %2197 = vmatpush1.bf16.xpose.msra.mxu0 0
    %2198 = vmatprep.subr.bf16.mxu0 0
    %2199 = vmatpush1.bf16.xpose.msra.mxu0 0
    %2200 = vmatprep.subr.bf16.mxu0 0
    %2201 = vmatpush1.bf16.xpose.msra.mxu0 0
    %2202 = vmatprep.subr.bf16.mxu0 0
    %2203 = vmatpush1.bf16.xpose.msra.mxu0 0
    %2204 = vmatprep.subr.bf16.mxu0 0
    %2205 = vmatpush1.bf16.xpose.msra.mxu0 0
    %2206 = vmatprep.subr.bf16.mxu0 0
    %2207 = vmatpush1.bf16.xpose.msra.mxu0 0
    %2208 = vmatprep.mubr.bf16.mxu0 0
    %2209 = vmatmul.mubr.bf16.gmra.mrb[0].mxu0 %v2171
    %v2210 = vpop.f32.mrb[0].mxu0
    %v2211 = vadd.f32 %v1893, %v2210
    %v2212 = vpop.f32.mrb[0].mxu0
    %v2213 = vpop.f32.mrb[0].mxu0
    %v2214 = vadd.f32 %v1894, %v2213
    %v2215 = vpop.f32.mrb[0].mxu0
    %2216 = vdwg.mxu0
    %2218 = vrot.lane.b32.xlu0 %v1872, 120
    %v2219 = vpop.permute.xlu0 %2218
    %2221 = vrot.lane.b32.xlu0 %v1880, 88
    %v2222 = vpop.permute.xlu0 %2221
    %v2224 = vsel %vm267, %v2219, 0
    %v2227 = vsel %vm267, %v2222, 0
    %2229 = vmatprep.subr.bf16.mxu0 0
    %2230 = vmatpush1.bf16.xpose.msra.mxu0 %v2227
    %2231 = vmatprep.subr.bf16.mxu0 0
    %2232 = vmatpush1.bf16.xpose.msra.mxu0 0
    %2233 = vmatprep.subr.bf16.mxu0 0
    %2234 = vmatpush1.bf16.xpose.msra.mxu0 0
    %2235 = vmatprep.subr.bf16.mxu0 0
    %2236 = vmatpush1.bf16.xpose.msra.mxu0 0
    %2237 = vmatprep.subr.bf16.mxu0 0
    %2238 = vmatpush1.bf16.xpose.msra.mxu0 0
    %2239 = vmatprep.subr.bf16.mxu0 0
    %2240 = vmatpush1.bf16.xpose.msra.mxu0 0
    %2241 = vmatprep.subr.bf16.mxu0 0
    %2242 = vmatpush1.bf16.xpose.msra.mxu0 0
    %2243 = vmatprep.subr.bf16.mxu0 0
    %2244 = vmatpush1.bf16.xpose.msra.mxu0 0
    %2245 = vmatprep.subr.bf16.mxu0 0
    %2246 = vmatpush1.bf16.xpose.msra.mxu0 0
    %2247 = vmatprep.subr.bf16.mxu0 0
    %2248 = vmatpush1.bf16.xpose.msra.mxu0 0
    %2249 = vmatprep.subr.bf16.mxu0 0
    %2250 = vmatpush1.bf16.xpose.msra.mxu0 0
    %2251 = vmatprep.subr.bf16.mxu0 0
    %2252 = vmatpush1.bf16.xpose.msra.mxu0 0
    %2253 = vmatprep.subr.bf16.mxu0 0
    %2254 = vmatpush1.bf16.xpose.msra.mxu0 0
    %2255 = vmatprep.subr.bf16.mxu0 0
    %2256 = vmatpush1.bf16.xpose.msra.mxu0 0
    %2257 = vmatprep.subr.bf16.mxu0 0
    %2258 = vmatpush1.bf16.xpose.msra.mxu0 0
    %2259 = vmatprep.subr.bf16.mxu0 0
    %2260 = vmatpush1.bf16.xpose.msra.mxu0 0
    %2261 = vmatprep.mubr.bf16.mxu0 0
    %2262 = vmatmul.mubr.bf16.gmra.mrb[0].mxu0 %v2224
    %v2263 = vpop.f32.mrb[0].mxu0
    %v2264 = vadd.f32 %v1895, %v2263
    %v2265 = vpop.f32.mrb[0].mxu0
    %v2266 = vpop.f32.mrb[0].mxu0
    %v2267 = vadd.f32 %v1896, %v2266
    %v2268 = vpop.f32.mrb[0].mxu0
    %2269 = vdwg.mxu0
    %2271 = vrot.lane.b32.xlu0 %v1873, 120
    %v2272 = vpop.permute.xlu0 %2271
    %2274 = vrot.lane.b32.xlu0 %v1881, 88
    %v2275 = vpop.permute.xlu0 %2274
    %v2277 = vsel %vm267, %v2272, 0
    %v2280 = vsel %vm267, %v2275, 0
    %2282 = vmatprep.subr.bf16.mxu0 0
    %2283 = vmatpush1.bf16.xpose.msra.mxu0 %v2280
    %2284 = vmatprep.subr.bf16.mxu0 0
    %2285 = vmatpush1.bf16.xpose.msra.mxu0 0
    %2286 = vmatprep.subr.bf16.mxu0 0
    %2287 = vmatpush1.bf16.xpose.msra.mxu0 0
    %2288 = vmatprep.subr.bf16.mxu0 0
    %2289 = vmatpush1.bf16.xpose.msra.mxu0 0
    %2290 = vmatprep.subr.bf16.mxu0 0
    %2291 = vmatpush1.bf16.xpose.msra.mxu0 0
    %2292 = vmatprep.subr.bf16.mxu0 0
    %2293 = vmatpush1.bf16.xpose.msra.mxu0 0
    %2294 = vmatprep.subr.bf16.mxu0 0
    %2295 = vmatpush1.bf16.xpose.msra.mxu0 0
    %2296 = vmatprep.subr.bf16.mxu0 0
    %2297 = vmatpush1.bf16.xpose.msra.mxu0 0
    %2298 = vmatprep.subr.bf16.mxu0 0
    %2299 = vmatpush1.bf16.xpose.msra.mxu0 0
    %2300 = vmatprep.subr.bf16.mxu0 0
    %2301 = vmatpush1.bf16.xpose.msra.mxu0 0
    %2302 = vmatprep.subr.bf16.mxu0 0
    %2303 = vmatpush1.bf16.xpose.msra.mxu0 0
    %2304 = vmatprep.subr.bf16.mxu0 0
    %2305 = vmatpush1.bf16.xpose.msra.mxu0 0
    %2306 = vmatprep.subr.bf16.mxu0 0
    %2307 = vmatpush1.bf16.xpose.msra.mxu0 0
    %2308 = vmatprep.subr.bf16.mxu0 0
    %2309 = vmatpush1.bf16.xpose.msra.mxu0 0
    %2310 = vmatprep.subr.bf16.mxu0 0
    %2311 = vmatpush1.bf16.xpose.msra.mxu0 0
    %2312 = vmatprep.subr.bf16.mxu0 0
    %2313 = vmatpush1.bf16.xpose.msra.mxu0 0
    %2314 = vmatprep.mubr.bf16.mxu0 0
    %2315 = vmatmul.mubr.bf16.gmra.mrb[0].mxu0 %v2277
    %v2316 = vpop.f32.mrb[0].mxu0
    %v2317 = vadd.f32 %v1897, %v2316
    %v2318 = vpop.f32.mrb[0].mxu0
    %v2319 = vpop.f32.mrb[0].mxu0
    %v2320 = vadd.f32 %v1898, %v2319
    %v2321 = vpop.f32.mrb[0].mxu0
    %2322 = vdwg.mxu0
    %v2323 = vsel %vm974, %v1946, -inf
    %2324 = vmax.xlane.f32.xlu0 %v2323
    %v2325 = vpop.xlane.xlu0 %2324
    %v2326 = vsel %vm974, %v1949, -inf
    %2327 = vmax.xlane.f32.xlu0 %v2326
    %v2328 = vpop.xlane.xlu0 %2327
    %v2329 = vsel %vm974, %v1999, -inf
    %2330 = vmax.xlane.f32.xlu0 %v2329
    %v2331 = vpop.xlane.xlu0 %2330
    %v2332 = vsel %vm974, %v2002, -inf
    %2333 = vmax.xlane.f32.xlu0 %v2332
    %v2334 = vpop.xlane.xlu0 %2333
    %v2335 = vsel %vm974, %v2052, -inf
    %2336 = vmax.xlane.f32.xlu0 %v2335
    %v2337 = vpop.xlane.xlu0 %2336
    %v2338 = vsel %vm974, %v2055, -inf
    %2339 = vmax.xlane.f32.xlu0 %v2338
    %v2340 = vpop.xlane.xlu0 %2339
    %v2341 = vsel %vm974, %v2105, -inf
    %2342 = vmax.xlane.f32.xlu0 %v2341
    %v2343 = vpop.xlane.xlu0 %2342
    %v2344 = vsel %vm974, %v2108, -inf
    %2345 = vmax.xlane.f32.xlu0 %v2344
    %v2346 = vpop.xlane.xlu0 %2345
    %v2347 = vsel %vm974, %v2158, -inf
    %2348 = vmax.xlane.f32.xlu0 %v2347
    %v2349 = vpop.xlane.xlu0 %2348
    %v2350 = vsel %vm974, %v2161, -inf
    %2351 = vmax.xlane.f32.xlu0 %v2350
    %v2352 = vpop.xlane.xlu0 %2351
    %v2353 = vsel %vm974, %v2211, -inf
    %2354 = vmax.xlane.f32.xlu0 %v2353
    %v2355 = vpop.xlane.xlu0 %2354
    %v2356 = vsel %vm974, %v2214, -inf
    %2357 = vmax.xlane.f32.xlu0 %v2356
    %v2358 = vpop.xlane.xlu0 %2357
    %v2359 = vsel %vm974, %v2264, -inf
    %2360 = vmax.xlane.f32.xlu0 %v2359
    %v2361 = vpop.xlane.xlu0 %2360
    %v2362 = vsel %vm974, %v2267, -inf
    %2363 = vmax.xlane.f32.xlu0 %v2362
    %v2364 = vpop.xlane.xlu0 %2363
    %v2365 = vsel %vm974, %v2317, -inf
    %2366 = vmax.xlane.f32.xlu0 %v2365
    %v2367 = vpop.xlane.xlu0 %2366
    %v2368 = vsel %vm974, %v2320, -inf
    %2369 = vmax.xlane.f32.xlu0 %v2368
    %v2370 = vpop.xlane.xlu0 %2369
    %v2371 = vsub.f32 %v1946, %v2325
    %v2372 = vsub.f32 %v1949, %v2328
    %v2373 = vsub.f32 %v1999, %v2331
    %v2374 = vsub.f32 %v2002, %v2334
    %v2375 = vsub.f32 %v2052, %v2337
    %v2376 = vsub.f32 %v2055, %v2340
    %v2377 = vsub.f32 %v2105, %v2343
    %v2378 = vsub.f32 %v2108, %v2346
    %v2379 = vsub.f32 %v2158, %v2349
    %v2380 = vsub.f32 %v2161, %v2352
    %v2381 = vsub.f32 %v2211, %v2355
    %v2382 = vsub.f32 %v2214, %v2358
    %v2383 = vsub.f32 %v2264, %v2361
    %v2384 = vsub.f32 %v2267, %v2364
    %v2385 = vsub.f32 %v2317, %v2367
    %v2386 = vsub.f32 %v2320, %v2370
    %v2387 = vmul.f32 %v2371, 1.442695
    %v2388 = vpow.pop %v2387
    %v2389 = vmul.f32 %v2372, 1.442695
    %v2390 = vpow.pop %v2389
    %v2391 = vmul.f32 %v2373, 1.442695
    %v2392 = vpow.pop %v2391
    %v2393 = vmul.f32 %v2374, 1.442695
    %v2394 = vpow.pop %v2393
    %v2395 = vmul.f32 %v2375, 1.442695
    %v2396 = vpow.pop %v2395
    %v2397 = vmul.f32 %v2376, 1.442695
    %v2398 = vpow.pop %v2397
    %v2399 = vmul.f32 %v2377, 1.442695
    %v2400 = vpow.pop %v2399
    %v2401 = vmul.f32 %v2378, 1.442695
    %v2402 = vpow.pop %v2401
    %v2403 = vmul.f32 %v2379, 1.442695
    %v2404 = vpow.pop %v2403
    %v2405 = vmul.f32 %v2380, 1.442695
    %v2406 = vpow.pop %v2405
    %v2407 = vmul.f32 %v2381, 1.442695
    %v2408 = vpow.pop %v2407
    %v2409 = vmul.f32 %v2382, 1.442695
    %v2410 = vpow.pop %v2409
    %v2411 = vmul.f32 %v2383, 1.442695
    %v2412 = vpow.pop %v2411
    %v2413 = vmul.f32 %v2384, 1.442695
    %v2414 = vpow.pop %v2413
    %v2415 = vmul.f32 %v2385, 1.442695
    %v2416 = vpow.pop %v2415
    %v2417 = vmul.f32 %v2386, 1.442695
    %v2418 = vpow.pop %v2417
    %v2419 = vsel %vm974, %v2388, 0.0
    %2420 = vadd.xlane.f32.xlu0 %v2419
    %v2421 = vpop.xlane.xlu0 %2420
    %v2422 = vsel %vm974, %v2390, 0.0
    %2423 = vadd.xlane.f32.xlu0 %v2422
    %v2424 = vpop.xlane.xlu0 %2423
    %v2425 = vsel %vm974, %v2392, 0.0
    %2426 = vadd.xlane.f32.xlu0 %v2425
    %v2427 = vpop.xlane.xlu0 %2426
    %v2428 = vsel %vm974, %v2394, 0.0
    %2429 = vadd.xlane.f32.xlu0 %v2428
    %v2430 = vpop.xlane.xlu0 %2429
    %v2431 = vsel %vm974, %v2396, 0.0
    %2432 = vadd.xlane.f32.xlu0 %v2431
    %v2433 = vpop.xlane.xlu0 %2432
    %v2434 = vsel %vm974, %v2398, 0.0
    %2435 = vadd.xlane.f32.xlu0 %v2434
    %v2436 = vpop.xlane.xlu0 %2435
    %v2437 = vsel %vm974, %v2400, 0.0
    %2438 = vadd.xlane.f32.xlu0 %v2437
    %v2439 = vpop.xlane.xlu0 %2438
    %v2440 = vsel %vm974, %v2402, 0.0
    %2441 = vadd.xlane.f32.xlu0 %v2440
    %v2442 = vpop.xlane.xlu0 %2441
    %v2443 = vsel %vm974, %v2404, 0.0
    %2444 = vadd.xlane.f32.xlu0 %v2443
    %v2445 = vpop.xlane.xlu0 %2444
    %v2446 = vsel %vm974, %v2406, 0.0
    %2447 = vadd.xlane.f32.xlu0 %v2446
    %v2448 = vpop.xlane.xlu0 %2447
    %v2449 = vsel %vm974, %v2408, 0.0
    %2450 = vadd.xlane.f32.xlu0 %v2449
    %v2451 = vpop.xlane.xlu0 %2450
    %v2452 = vsel %vm974, %v2410, 0.0
    %2453 = vadd.xlane.f32.xlu0 %v2452
    %v2454 = vpop.xlane.xlu0 %2453
    %v2455 = vsel %vm974, %v2412, 0.0
    %2456 = vadd.xlane.f32.xlu0 %v2455
    %v2457 = vpop.xlane.xlu0 %2456
    %v2458 = vsel %vm974, %v2414, 0.0
    %2459 = vadd.xlane.f32.xlu0 %v2458
    %v2460 = vpop.xlane.xlu0 %2459
    %v2461 = vsel %vm974, %v2416, 0.0
    %2462 = vadd.xlane.f32.xlu0 %v2461
    %v2463 = vpop.xlane.xlu0 %2462
    %v2464 = vsel %vm974, %v2418, 0.0
    %2465 = vadd.xlane.f32.xlu0 %v2464
    %v2466 = vpop.xlane.xlu0 %2465
    %v2467 = vrcp.pop %v2421
    %v2468 = vrcp.pop %v2424
    %v2469 = vrcp.pop %v2427
    %v2470 = vrcp.pop %v2430
    %v2471 = vrcp.pop %v2433
    %v2472 = vrcp.pop %v2436
    %v2473 = vrcp.pop %v2439
    %v2474 = vrcp.pop %v2442
    %v2475 = vrcp.pop %v2445
    %v2476 = vrcp.pop %v2448
    %v2477 = vrcp.pop %v2451
    %v2478 = vrcp.pop %v2454
    %v2479 = vrcp.pop %v2457
    %v2480 = vrcp.pop %v2460
    %v2481 = vrcp.pop %v2463
    %v2482 = vrcp.pop %v2466
    %v2483 = vmul.f32 %v2388, %v2467
    %v2484 = vmul.f32 %v2390, %v2468
    %v2485 = vmul.f32 %v2392, %v2469
    %v2486 = vmul.f32 %v2394, %v2470
    %v2487 = vmul.f32 %v2396, %v2471
    %v2488 = vmul.f32 %v2398, %v2472
    %v2489 = vmul.f32 %v2400, %v2473
    %v2490 = vmul.f32 %v2402, %v2474
    %v2491 = vmul.f32 %v2404, %v2475
    %v2492 = vmul.f32 %v2406, %v2476
    %v2493 = vmul.f32 %v2408, %v2477
    %v2494 = vmul.f32 %v2410, %v2478
    %v2495 = vmul.f32 %v2412, %v2479
    %v2496 = vmul.f32 %v2414, %v2480
    %v2497 = vmul.f32 %v2416, %v2481
    %v2498 = vmul.f32 %v2418, %v2482
    %v2499 = vpack.c.bf16 %v2484, %v2483
    %v2500 = vpack.c.bf16 %v2486, %v2485
    %v2501 = vpack.c.bf16 %v2488, %v2487
    %v2502 = vpack.c.bf16 %v2490, %v2489
    %v2503 = vpack.c.bf16 %v2492, %v2491
    %v2504 = vpack.c.bf16 %v2494, %v2493
    %v2505 = vpack.c.bf16 %v2496, %v2495
    %v2506 = vpack.c.bf16 %v2498, %v2497
    %2507 = vrot.lane.b32.xlu0 %v1159, 56
    %v2508 = vpop.permute.xlu0 %2507
    %v2511 = vsel %vm974, %v2499, 0
    %2513 = vmatprep.subr.bf16.mxu0 0
    %2514 = vmatpush1.bf16.msra.mxu0 %v2508
    %2515 = vmatprep.subr.bf16.mxu0 0
    %2516 = vmatpush1.bf16.msra.mxu0 0
    %2517 = vmatprep.subr.bf16.mxu0 0
    %2518 = vmatpush1.bf16.msra.mxu0 0
    %2519 = vmatprep.subr.bf16.mxu0 0
    %2520 = vmatpush1.bf16.msra.mxu0 0
    %2521 = vmatprep.subr.bf16.mxu0 0
    %2522 = vmatpush1.bf16.msra.mxu0 0
    %2523 = vmatprep.subr.bf16.mxu0 0
    %2524 = vmatpush1.bf16.msra.mxu0 0
    %2525 = vmatprep.subr.bf16.mxu0 0
    %2526 = vmatpush1.bf16.msra.mxu0 0
    %2527 = vmatprep.subr.bf16.mxu0 0
    %2528 = vmatpush1.bf16.msra.mxu0 0
    %2529 = vmatprep.subr.bf16.mxu0 0
    %2530 = vmatpush1.bf16.msra.mxu0 0
    %2531 = vmatprep.subr.bf16.mxu0 0
    %2532 = vmatpush1.bf16.msra.mxu0 0
    %2533 = vmatprep.subr.bf16.mxu0 0
    %2534 = vmatpush1.bf16.msra.mxu0 0
    %2535 = vmatprep.subr.bf16.mxu0 0
    %2536 = vmatpush1.bf16.msra.mxu0 0
    %2537 = vmatprep.subr.bf16.mxu0 0
    %2538 = vmatpush1.bf16.msra.mxu0 0
    %2539 = vmatprep.subr.bf16.mxu0 0
    %2540 = vmatpush1.bf16.msra.mxu0 0
    %2541 = vmatprep.subr.bf16.mxu0 0
    %2542 = vmatpush1.bf16.msra.mxu0 0
    %2543 = vmatprep.subr.bf16.mxu0 0
    %2544 = vmatpush1.bf16.msra.mxu0 0
    %2545 = vmatprep.mubr.bf16.mxu0 0
    %2546 = vmatmul.mubr.bf16.gmra.mrb[0].mxu0 %v2511
    %v2547 = vpop.f32.mrb[0].mxu0
    %v2548 = vadd.f32 0.0, %v2547
    %v2549 = vpop.f32.mrb[0].mxu0
    %v2550 = vpop.f32.mrb[0].mxu0
    %v2551 = vadd.f32 0.0, %v2550
    %v2552 = vpop.f32.mrb[0].mxu0
    %2553 = vdwg.mxu0
    %2554 = vrot.lane.b32.xlu0 %v1160, 56
    %v2555 = vpop.permute.xlu0 %2554
    %v2558 = vsel %vm974, %v2500, 0
    %2560 = vmatprep.subr.bf16.mxu0 0
    %2561 = vmatpush1.bf16.msra.mxu0 %v2555
    %2562 = vmatprep.subr.bf16.mxu0 0
    %2563 = vmatpush1.bf16.msra.mxu0 0
    %2564 = vmatprep.subr.bf16.mxu0 0
    %2565 = vmatpush1.bf16.msra.mxu0 0
    %2566 = vmatprep.subr.bf16.mxu0 0
    %2567 = vmatpush1.bf16.msra.mxu0 0
    %2568 = vmatprep.subr.bf16.mxu0 0
    %2569 = vmatpush1.bf16.msra.mxu0 0
    %2570 = vmatprep.subr.bf16.mxu0 0
    %2571 = vmatpush1.bf16.msra.mxu0 0
    %2572 = vmatprep.subr.bf16.mxu0 0
    %2573 = vmatpush1.bf16.msra.mxu0 0
    %2574 = vmatprep.subr.bf16.mxu0 0
    %2575 = vmatpush1.bf16.msra.mxu0 0
    %2576 = vmatprep.subr.bf16.mxu0 0
    %2577 = vmatpush1.bf16.msra.mxu0 0
    %2578 = vmatprep.subr.bf16.mxu0 0
    %2579 = vmatpush1.bf16.msra.mxu0 0
    %2580 = vmatprep.subr.bf16.mxu0 0
    %2581 = vmatpush1.bf16.msra.mxu0 0
    %2582 = vmatprep.subr.bf16.mxu0 0
    %2583 = vmatpush1.bf16.msra.mxu0 0
    %2584 = vmatprep.subr.bf16.mxu0 0
    %2585 = vmatpush1.bf16.msra.mxu0 0
    %2586 = vmatprep.subr.bf16.mxu0 0
    %2587 = vmatpush1.bf16.msra.mxu0 0
    %2588 = vmatprep.subr.bf16.mxu0 0
    %2589 = vmatpush1.bf16.msra.mxu0 0
    %2590 = vmatprep.subr.bf16.mxu0 0
    %2591 = vmatpush1.bf16.msra.mxu0 0
    %2592 = vmatprep.mubr.bf16.mxu0 0
    %2593 = vmatmul.mubr.bf16.gmra.mrb[0].mxu0 %v2558
    %v2594 = vpop.f32.mrb[0].mxu0
    %v2595 = vadd.f32 0.0, %v2594
    %v2596 = vpop.f32.mrb[0].mxu0
    %v2597 = vpop.f32.mrb[0].mxu0
    %v2598 = vadd.f32 0.0, %v2597
    %v2599 = vpop.f32.mrb[0].mxu0
    %2600 = vdwg.mxu0
    %2601 = vrot.lane.b32.xlu0 %v1161, 56
    %v2602 = vpop.permute.xlu0 %2601
    %v2605 = vsel %vm974, %v2501, 0
    %2607 = vmatprep.subr.bf16.mxu0 0
    %2608 = vmatpush1.bf16.msra.mxu0 %v2602
    %2609 = vmatprep.subr.bf16.mxu0 0
    %2610 = vmatpush1.bf16.msra.mxu0 0
    %2611 = vmatprep.subr.bf16.mxu0 0
    %2612 = vmatpush1.bf16.msra.mxu0 0
    %2613 = vmatprep.subr.bf16.mxu0 0
    %2614 = vmatpush1.bf16.msra.mxu0 0
    %2615 = vmatprep.subr.bf16.mxu0 0
    %2616 = vmatpush1.bf16.msra.mxu0 0
    %2617 = vmatprep.subr.bf16.mxu0 0
    %2618 = vmatpush1.bf16.msra.mxu0 0
    %2619 = vmatprep.subr.bf16.mxu0 0
    %2620 = vmatpush1.bf16.msra.mxu0 0
    %2621 = vmatprep.subr.bf16.mxu0 0
    %2622 = vmatpush1.bf16.msra.mxu0 0
    %2623 = vmatprep.subr.bf16.mxu0 0
    %2624 = vmatpush1.bf16.msra.mxu0 0
    %2625 = vmatprep.subr.bf16.mxu0 0
    %2626 = vmatpush1.bf16.msra.mxu0 0
    %2627 = vmatprep.subr.bf16.mxu0 0
    %2628 = vmatpush1.bf16.msra.mxu0 0
    %2629 = vmatprep.subr.bf16.mxu0 0
    %2630 = vmatpush1.bf16.msra.mxu0 0
    %2631 = vmatprep.subr.bf16.mxu0 0
    %2632 = vmatpush1.bf16.msra.mxu0 0
    %2633 = vmatprep.subr.bf16.mxu0 0
    %2634 = vmatpush1.bf16.msra.mxu0 0
    %2635 = vmatprep.subr.bf16.mxu0 0
    %2636 = vmatpush1.bf16.msra.mxu0 0
    %2637 = vmatprep.subr.bf16.mxu0 0
    %2638 = vmatpush1.bf16.msra.mxu0 0
    %2639 = vmatprep.mubr.bf16.mxu0 0
    %2640 = vmatmul.mubr.bf16.gmra.mrb[0].mxu0 %v2605
    %v2641 = vpop.f32.mrb[0].mxu0
    %v2642 = vadd.f32 0.0, %v2641
    %v2643 = vpop.f32.mrb[0].mxu0
    %v2644 = vpop.f32.mrb[0].mxu0
    %v2645 = vadd.f32 0.0, %v2644
    %v2646 = vpop.f32.mrb[0].mxu0
    %2647 = vdwg.mxu0
    %2648 = vrot.lane.b32.xlu0 %v1162, 56
    %v2649 = vpop.permute.xlu0 %2648
    %v2652 = vsel %vm974, %v2502, 0
    %2654 = vmatprep.subr.bf16.mxu0 0
    %2655 = vmatpush1.bf16.msra.mxu0 %v2649
    %2656 = vmatprep.subr.bf16.mxu0 0
    %2657 = vmatpush1.bf16.msra.mxu0 0
    %2658 = vmatprep.subr.bf16.mxu0 0
    %2659 = vmatpush1.bf16.msra.mxu0 0
    %2660 = vmatprep.subr.bf16.mxu0 0
    %2661 = vmatpush1.bf16.msra.mxu0 0
    %2662 = vmatprep.subr.bf16.mxu0 0
    %2663 = vmatpush1.bf16.msra.mxu0 0
    %2664 = vmatprep.subr.bf16.mxu0 0
    %2665 = vmatpush1.bf16.msra.mxu0 0
    %2666 = vmatprep.subr.bf16.mxu0 0
    %2667 = vmatpush1.bf16.msra.mxu0 0
    %2668 = vmatprep.subr.bf16.mxu0 0
    %2669 = vmatpush1.bf16.msra.mxu0 0
    %2670 = vmatprep.subr.bf16.mxu0 0
    %2671 = vmatpush1.bf16.msra.mxu0 0
    %2672 = vmatprep.subr.bf16.mxu0 0
    %2673 = vmatpush1.bf16.msra.mxu0 0
    %2674 = vmatprep.subr.bf16.mxu0 0
    %2675 = vmatpush1.bf16.msra.mxu0 0
    %2676 = vmatprep.subr.bf16.mxu0 0
    %2677 = vmatpush1.bf16.msra.mxu0 0
    %2678 = vmatprep.subr.bf16.mxu0 0
    %2679 = vmatpush1.bf16.msra.mxu0 0
    %2680 = vmatprep.subr.bf16.mxu0 0
    %2681 = vmatpush1.bf16.msra.mxu0 0
    %2682 = vmatprep.subr.bf16.mxu0 0
    %2683 = vmatpush1.bf16.msra.mxu0 0
    %2684 = vmatprep.subr.bf16.mxu0 0
    %2685 = vmatpush1.bf16.msra.mxu0 0
    %2686 = vmatprep.mubr.bf16.mxu0 0
    %2687 = vmatmul.mubr.bf16.gmra.mrb[0].mxu0 %v2652
    %v2688 = vpop.f32.mrb[0].mxu0
    %v2689 = vadd.f32 0.0, %v2688
    %v2690 = vpop.f32.mrb[0].mxu0
    %v2691 = vpop.f32.mrb[0].mxu0
    %v2692 = vadd.f32 0.0, %v2691
    %v2693 = vpop.f32.mrb[0].mxu0
    %2694 = vdwg.mxu0
    %2695 = vrot.lane.b32.xlu0 %v1163, 56
    %v2696 = vpop.permute.xlu0 %2695
    %v2699 = vsel %vm974, %v2503, 0
    %2701 = vmatprep.subr.bf16.mxu0 0
    %2702 = vmatpush1.bf16.msra.mxu0 %v2696
    %2703 = vmatprep.subr.bf16.mxu0 0
    %2704 = vmatpush1.bf16.msra.mxu0 0
    %2705 = vmatprep.subr.bf16.mxu0 0
    %2706 = vmatpush1.bf16.msra.mxu0 0
    %2707 = vmatprep.subr.bf16.mxu0 0
    %2708 = vmatpush1.bf16.msra.mxu0 0
    %2709 = vmatprep.subr.bf16.mxu0 0
    %2710 = vmatpush1.bf16.msra.mxu0 0
    %2711 = vmatprep.subr.bf16.mxu0 0
    %2712 = vmatpush1.bf16.msra.mxu0 0
    %2713 = vmatprep.subr.bf16.mxu0 0
    %2714 = vmatpush1.bf16.msra.mxu0 0
    %2715 = vmatprep.subr.bf16.mxu0 0
    %2716 = vmatpush1.bf16.msra.mxu0 0
    %2717 = vmatprep.subr.bf16.mxu0 0
    %2718 = vmatpush1.bf16.msra.mxu0 0
    %2719 = vmatprep.subr.bf16.mxu0 0
    %2720 = vmatpush1.bf16.msra.mxu0 0
    %2721 = vmatprep.subr.bf16.mxu0 0
    %2722 = vmatpush1.bf16.msra.mxu0 0
    %2723 = vmatprep.subr.bf16.mxu0 0
    %2724 = vmatpush1.bf16.msra.mxu0 0
    %2725 = vmatprep.subr.bf16.mxu0 0
    %2726 = vmatpush1.bf16.msra.mxu0 0
    %2727 = vmatprep.subr.bf16.mxu0 0
    %2728 = vmatpush1.bf16.msra.mxu0 0
    %2729 = vmatprep.subr.bf16.mxu0 0
    %2730 = vmatpush1.bf16.msra.mxu0 0
    %2731 = vmatprep.subr.bf16.mxu0 0
    %2732 = vmatpush1.bf16.msra.mxu0 0
    %2733 = vmatprep.mubr.bf16.mxu0 0
    %2734 = vmatmul.mubr.bf16.gmra.mrb[0].mxu0 %v2699
    %v2735 = vpop.f32.mrb[0].mxu0
    %v2736 = vadd.f32 0.0, %v2735
    %v2737 = vpop.f32.mrb[0].mxu0
    %v2738 = vpop.f32.mrb[0].mxu0
    %v2739 = vadd.f32 0.0, %v2738
    %v2740 = vpop.f32.mrb[0].mxu0
    %2741 = vdwg.mxu0
    %2742 = vrot.lane.b32.xlu0 %v1164, 56
    %v2743 = vpop.permute.xlu0 %2742
    %v2746 = vsel %vm974, %v2504, 0
    %2748 = vmatprep.subr.bf16.mxu0 0
    %2749 = vmatpush1.bf16.msra.mxu0 %v2743
    %2750 = vmatprep.subr.bf16.mxu0 0
    %2751 = vmatpush1.bf16.msra.mxu0 0
    %2752 = vmatprep.subr.bf16.mxu0 0
    %2753 = vmatpush1.bf16.msra.mxu0 0
    %2754 = vmatprep.subr.bf16.mxu0 0
    %2755 = vmatpush1.bf16.msra.mxu0 0
    %2756 = vmatprep.subr.bf16.mxu0 0
    %2757 = vmatpush1.bf16.msra.mxu0 0
    %2758 = vmatprep.subr.bf16.mxu0 0
    %2759 = vmatpush1.bf16.msra.mxu0 0
    %2760 = vmatprep.subr.bf16.mxu0 0
    %2761 = vmatpush1.bf16.msra.mxu0 0
    %2762 = vmatprep.subr.bf16.mxu0 0
    %2763 = vmatpush1.bf16.msra.mxu0 0
    %2764 = vmatprep.subr.bf16.mxu0 0
    %2765 = vmatpush1.bf16.msra.mxu0 0
    %2766 = vmatprep.subr.bf16.mxu0 0
    %2767 = vmatpush1.bf16.msra.mxu0 0
    %2768 = vmatprep.subr.bf16.mxu0 0
    %2769 = vmatpush1.bf16.msra.mxu0 0
    %2770 = vmatprep.subr.bf16.mxu0 0
    %2771 = vmatpush1.bf16.msra.mxu0 0
    %2772 = vmatprep.subr.bf16.mxu0 0
    %2773 = vmatpush1.bf16.msra.mxu0 0
    %2774 = vmatprep.subr.bf16.mxu0 0
    %2775 = vmatpush1.bf16.msra.mxu0 0
    %2776 = vmatprep.subr.bf16.mxu0 0
    %2777 = vmatpush1.bf16.msra.mxu0 0
    %2778 = vmatprep.subr.bf16.mxu0 0
    %2779 = vmatpush1.bf16.msra.mxu0 0
    %2780 = vmatprep.mubr.bf16.mxu0 0
    %2781 = vmatmul.mubr.bf16.gmra.mrb[0].mxu0 %v2746
    %v2782 = vpop.f32.mrb[0].mxu0
    %v2783 = vadd.f32 0.0, %v2782
    %v2784 = vpop.f32.mrb[0].mxu0
    %v2785 = vpop.f32.mrb[0].mxu0
    %v2786 = vadd.f32 0.0, %v2785
    %v2787 = vpop.f32.mrb[0].mxu0
    %2788 = vdwg.mxu0
    %2789 = vrot.lane.b32.xlu0 %v1165, 56
    %v2790 = vpop.permute.xlu0 %2789
    %v2793 = vsel %vm974, %v2505, 0
    %2795 = vmatprep.subr.bf16.mxu0 0
    %2796 = vmatpush1.bf16.msra.mxu0 %v2790
    %2797 = vmatprep.subr.bf16.mxu0 0
    %2798 = vmatpush1.bf16.msra.mxu0 0
    %2799 = vmatprep.subr.bf16.mxu0 0
    %2800 = vmatpush1.bf16.msra.mxu0 0
    %2801 = vmatprep.subr.bf16.mxu0 0
    %2802 = vmatpush1.bf16.msra.mxu0 0
    %2803 = vmatprep.subr.bf16.mxu0 0
    %2804 = vmatpush1.bf16.msra.mxu0 0
    %2805 = vmatprep.subr.bf16.mxu0 0
    %2806 = vmatpush1.bf16.msra.mxu0 0
    %2807 = vmatprep.subr.bf16.mxu0 0
    %2808 = vmatpush1.bf16.msra.mxu0 0
    %2809 = vmatprep.subr.bf16.mxu0 0
    %2810 = vmatpush1.bf16.msra.mxu0 0
    %2811 = vmatprep.subr.bf16.mxu0 0
    %2812 = vmatpush1.bf16.msra.mxu0 0
    %2813 = vmatprep.subr.bf16.mxu0 0
    %2814 = vmatpush1.bf16.msra.mxu0 0
    %2815 = vmatprep.subr.bf16.mxu0 0
    %2816 = vmatpush1.bf16.msra.mxu0 0
    %2817 = vmatprep.subr.bf16.mxu0 0
    %2818 = vmatpush1.bf16.msra.mxu0 0
    %2819 = vmatprep.subr.bf16.mxu0 0
    %2820 = vmatpush1.bf16.msra.mxu0 0
    %2821 = vmatprep.subr.bf16.mxu0 0
    %2822 = vmatpush1.bf16.msra.mxu0 0
    %2823 = vmatprep.subr.bf16.mxu0 0
    %2824 = vmatpush1.bf16.msra.mxu0 0
    %2825 = vmatprep.subr.bf16.mxu0 0
    %2826 = vmatpush1.bf16.msra.mxu0 0
    %2827 = vmatprep.mubr.bf16.mxu0 0
    %2828 = vmatmul.mubr.bf16.gmra.mrb[0].mxu0 %v2793
    %v2829 = vpop.f32.mrb[0].mxu0
    %v2830 = vadd.f32 0.0, %v2829
    %v2831 = vpop.f32.mrb[0].mxu0
    %v2832 = vpop.f32.mrb[0].mxu0
    %v2833 = vadd.f32 0.0, %v2832
    %v2834 = vpop.f32.mrb[0].mxu0
    %2835 = vdwg.mxu0
    %2836 = vrot.lane.b32.xlu0 %v1166, 56
    %v2837 = vpop.permute.xlu0 %2836
    %v2840 = vsel %vm974, %v2506, 0
    %2842 = vmatprep.subr.bf16.mxu0 0
    %2843 = vmatpush1.bf16.msra.mxu0 %v2837
    %2844 = vmatprep.subr.bf16.mxu0 0
    %2845 = vmatpush1.bf16.msra.mxu0 0
    %2846 = vmatprep.subr.bf16.mxu0 0
    %2847 = vmatpush1.bf16.msra.mxu0 0
    %2848 = vmatprep.subr.bf16.mxu0 0
    %2849 = vmatpush1.bf16.msra.mxu0 0
    %2850 = vmatprep.subr.bf16.mxu0 0
    %2851 = vmatpush1.bf16.msra.mxu0 0
    %2852 = vmatprep.subr.bf16.mxu0 0
    %2853 = vmatpush1.bf16.msra.mxu0 0
    %2854 = vmatprep.subr.bf16.mxu0 0
    %2855 = vmatpush1.bf16.msra.mxu0 0
    %2856 = vmatprep.subr.bf16.mxu0 0
    %2857 = vmatpush1.bf16.msra.mxu0 0
    %2858 = vmatprep.subr.bf16.mxu0 0
    %2859 = vmatpush1.bf16.msra.mxu0 0
    %2860 = vmatprep.subr.bf16.mxu0 0
    %2861 = vmatpush1.bf16.msra.mxu0 0
    %2862 = vmatprep.subr.bf16.mxu0 0
    %2863 = vmatpush1.bf16.msra.mxu0 0
    %2864 = vmatprep.subr.bf16.mxu0 0
    %2865 = vmatpush1.bf16.msra.mxu0 0
    %2866 = vmatprep.subr.bf16.mxu0 0
    %2867 = vmatpush1.bf16.msra.mxu0 0
    %2868 = vmatprep.subr.bf16.mxu0 0
    %2869 = vmatpush1.bf16.msra.mxu0 0
    %2870 = vmatprep.subr.bf16.mxu0 0
    %2871 = vmatpush1.bf16.msra.mxu0 0
    %2872 = vmatprep.subr.bf16.mxu0 0
    %2873 = vmatpush1.bf16.msra.mxu0 0
    %2874 = vmatprep.mubr.bf16.mxu0 0
    %2875 = vmatmul.mubr.bf16.gmra.mrb[0].mxu0 %v2840
    %v2876 = vpop.f32.mrb[0].mxu0
    %v2877 = vadd.f32 0.0, %v2876
    %v2878 = vpop.f32.mrb[0].mxu0
    %v2879 = vpop.f32.mrb[0].mxu0
    %v2880 = vadd.f32 0.0, %v2879
    %v2881 = vpop.f32.mrb[0].mxu0
    %2882 = vdwg.mxu0
    %v2883 = vpack.c.bf16 %v2551, %v2548
    %v2884 = vpack.c.bf16 %v2598, %v2595
    %v2885 = vpack.c.bf16 %v2645, %v2642
    %v2886 = vpack.c.bf16 %v2692, %v2689
    %v2887 = vpack.c.bf16 %v2739, %v2736
    %v2888 = vpack.c.bf16 %v2786, %v2783
    %v2889 = vpack.c.bf16 %v2833, %v2830
    %v2890 = vpack.c.bf16 %v2880, %v2877
    %s2891 = scalar_lea.vmem %s5, 4
    %v2892 = vld [vmem:[%s2891] sm:$0xf]
    %v2894 = vsel %vm267, %v2883, 0
    %v2897 = vsel %vm267, %v2884, 0
    %v2900 = vsel %vm267, %v2885, 0
    %v2903 = vsel %vm267, %v2886, 0
    %v2906 = vsel %vm267, %v2887, 0
    %v2909 = vsel %vm267, %v2888, 0
    %v2912 = vsel %vm267, %v2889, 0
    %v2915 = vsel %vm267, %v2890, 0
    %vm2917 = vcmask 1043456
    %v2919 = vsel %vm2917, %v2892, 0
    %2921 = vmatprep.subr.bf16.mxu0 0
    %2922 = vmatpush1.bf16.msra.mxu0 %v2919
    %2923 = vmatprep.subr.bf16.mxu0 0
    %2924 = vmatpush1.bf16.msra.mxu0 0
    %2925 = vmatprep.subr.bf16.mxu0 0
    %2926 = vmatpush1.bf16.msra.mxu0 0
    %2927 = vmatprep.subr.bf16.mxu0 0
    %2928 = vmatpush1.bf16.msra.mxu0 0
    %2929 = vmatprep.subr.bf16.mxu0 0
    %2930 = vmatpush1.bf16.msra.mxu0 0
    %2931 = vmatprep.subr.bf16.mxu0 0
    %2932 = vmatpush1.bf16.msra.mxu0 0
    %2933 = vmatprep.subr.bf16.mxu0 0
    %2934 = vmatpush1.bf16.msra.mxu0 0
    %2935 = vmatprep.subr.bf16.mxu0 0
    %2936 = vmatpush1.bf16.msra.mxu0 0
    %2937 = vmatprep.subr.bf16.mxu0 0
    %2938 = vmatpush1.bf16.msra.mxu0 0
    %2939 = vmatprep.subr.bf16.mxu0 0
    %2940 = vmatpush1.bf16.msra.mxu0 0
    %2941 = vmatprep.subr.bf16.mxu0 0
    %2942 = vmatpush1.bf16.msra.mxu0 0
    %2943 = vmatprep.subr.bf16.mxu0 0
    %2944 = vmatpush1.bf16.msra.mxu0 0
    %2945 = vmatprep.subr.bf16.mxu0 0
    %2946 = vmatpush1.bf16.msra.mxu0 0
    %2947 = vmatprep.subr.bf16.mxu0 0
    %2948 = vmatpush1.bf16.msra.mxu0 0
    %2949 = vmatprep.subr.bf16.mxu0 0
    %2950 = vmatpush1.bf16.msra.mxu0 0
    %2951 = vmatprep.subr.bf16.mxu0 0
    %2952 = vmatpush1.bf16.msra.mxu0 0
    %2953 = vmatprep.mubr.bf16.mxu0 0
    %2954 = vmatmul.mubr.bf16.gmra.mrb[0].mxu0 %v2894
    %v2955 = vpop.f32.mrb[0].mxu0
    %v2956 = vadd.f32 0.0, %v2955
    %v2957 = vpop.f32.mrb[0].mxu0
    %v2958 = vpop.f32.mrb[0].mxu0
    %v2959 = vadd.f32 0.0, %v2958
    %v2960 = vpop.f32.mrb[0].mxu0
    %2961 = vmatprep.mubr.bf16.mxu0 0
    %2962 = vmatmul.mubr.bf16.gmra.mrb[0].mxu0 %v2897
    %v2963 = vpop.f32.mrb[0].mxu0
    %v2964 = vadd.f32 0.0, %v2963
    %v2965 = vpop.f32.mrb[0].mxu0
    %v2966 = vpop.f32.mrb[0].mxu0
    %v2967 = vadd.f32 0.0, %v2966
    %v2968 = vpop.f32.mrb[0].mxu0
    %2969 = vmatprep.mubr.bf16.mxu0 0
    %2970 = vmatmul.mubr.bf16.gmra.mrb[0].mxu0 %v2900
    %v2971 = vpop.f32.mrb[0].mxu0
    %v2972 = vadd.f32 0.0, %v2971
    %v2973 = vpop.f32.mrb[0].mxu0
    %v2974 = vpop.f32.mrb[0].mxu0
    %v2975 = vadd.f32 0.0, %v2974
    %v2976 = vpop.f32.mrb[0].mxu0
    %2977 = vmatprep.mubr.bf16.mxu0 0
    %2978 = vmatmul.mubr.bf16.gmra.mrb[0].mxu0 %v2903
    %v2979 = vpop.f32.mrb[0].mxu0
    %v2980 = vadd.f32 0.0, %v2979
    %v2981 = vpop.f32.mrb[0].mxu0
    %v2982 = vpop.f32.mrb[0].mxu0
    %v2983 = vadd.f32 0.0, %v2982
    %v2984 = vpop.f32.mrb[0].mxu0
    %2985 = vmatprep.mubr.bf16.mxu0 0
    %2986 = vmatmul.mubr.bf16.gmra.mrb[0].mxu0 %v2906
    %v2987 = vpop.f32.mrb[0].mxu0
    %v2988 = vadd.f32 0.0, %v2987
    %v2989 = vpop.f32.mrb[0].mxu0
    %v2990 = vpop.f32.mrb[0].mxu0
    %v2991 = vadd.f32 0.0, %v2990
    %v2992 = vpop.f32.mrb[0].mxu0
    %2993 = vmatprep.mubr.bf16.mxu0 0
    %2994 = vmatmul.mubr.bf16.gmra.mrb[0].mxu0 %v2909
    %v2995 = vpop.f32.mrb[0].mxu0
    %v2996 = vadd.f32 0.0, %v2995
    %v2997 = vpop.f32.mrb[0].mxu0
    %v2998 = vpop.f32.mrb[0].mxu0
    %v2999 = vadd.f32 0.0, %v2998
    %v3000 = vpop.f32.mrb[0].mxu0
    %3001 = vmatprep.mubr.bf16.mxu0 0
    %3002 = vmatmul.mubr.bf16.gmra.mrb[0].mxu0 %v2912
    %v3003 = vpop.f32.mrb[0].mxu0
    %v3004 = vadd.f32 0.0, %v3003
    %v3005 = vpop.f32.mrb[0].mxu0
    %v3006 = vpop.f32.mrb[0].mxu0
    %v3007 = vadd.f32 0.0, %v3006
    %v3008 = vpop.f32.mrb[0].mxu0
    %3009 = vmatprep.mubr.bf16.mxu0 0
    %3010 = vmatmul.mubr.bf16.gmra.mrb[0].mxu0 %v2915
    %v3011 = vpop.f32.mrb[0].mxu0
    %v3012 = vadd.f32 0.0, %v3011
    %v3013 = vpop.f32.mrb[0].mxu0
    %v3014 = vpop.f32.mrb[0].mxu0
    %v3015 = vadd.f32 0.0, %v3014
    %v3016 = vpop.f32.mrb[0].mxu0
    %3017 = vdwg.mxu0
    %v3019 = vsel %vm267, %v1551, 0
    %v3022 = vsel %vm267, %v1552, 0
    %v3025 = vsel %vm267, %v1553, 0
    %v3028 = vsel %vm267, %v1554, 0
    %v3031 = vsel %vm267, %v1555, 0
    %v3034 = vsel %vm267, %v1556, 0
    %v3037 = vsel %vm267, %v1557, 0
    %v3040 = vsel %vm267, %v1558, 0
    %v3043 = vsel %vm2917, %v1559, 0
    %3045 = vmatprep.subr.bf16.mxu0 0
    %3046 = vmatpush1.bf16.msra.mxu0 %v3043
    %3047 = vmatprep.subr.bf16.mxu0 0
    %3048 = vmatpush1.bf16.msra.mxu0 0
    %3049 = vmatprep.subr.bf16.mxu0 0
    %3050 = vmatpush1.bf16.msra.mxu0 0
    %3051 = vmatprep.subr.bf16.mxu0 0
    %3052 = vmatpush1.bf16.msra.mxu0 0
    %3053 = vmatprep.subr.bf16.mxu0 0
    %3054 = vmatpush1.bf16.msra.mxu0 0
    %3055 = vmatprep.subr.bf16.mxu0 0
    %3056 = vmatpush1.bf16.msra.mxu0 0
    %3057 = vmatprep.subr.bf16.mxu0 0
    %3058 = vmatpush1.bf16.msra.mxu0 0
    %3059 = vmatprep.subr.bf16.mxu0 0
    %3060 = vmatpush1.bf16.msra.mxu0 0
    %3061 = vmatprep.subr.bf16.mxu0 0
    %3062 = vmatpush1.bf16.msra.mxu0 0
    %3063 = vmatprep.subr.bf16.mxu0 0
    %3064 = vmatpush1.bf16.msra.mxu0 0
    %3065 = vmatprep.subr.bf16.mxu0 0
    %3066 = vmatpush1.bf16.msra.mxu0 0
    %3067 = vmatprep.subr.bf16.mxu0 0
    %3068 = vmatpush1.bf16.msra.mxu0 0
    %3069 = vmatprep.subr.bf16.mxu0 0
    %3070 = vmatpush1.bf16.msra.mxu0 0
    %3071 = vmatprep.subr.bf16.mxu0 0
    %3072 = vmatpush1.bf16.msra.mxu0 0
    %3073 = vmatprep.subr.bf16.mxu0 0
    %3074 = vmatpush1.bf16.msra.mxu0 0
    %3075 = vmatprep.subr.bf16.mxu0 0
    %3076 = vmatpush1.bf16.msra.mxu0 0
    %3077 = vmatprep.mubr.bf16.mxu0 0
    %3078 = vmatmul.mubr.bf16.gmra.mrb[0].mxu0 %v3019
    %v3079 = vpop.f32.mrb[0].mxu0
    %v3080 = vadd.f32 %v2956, %v3079
    %v3081 = vpop.f32.mrb[0].mxu0
    %v3082 = vpop.f32.mrb[0].mxu0
    %v3083 = vadd.f32 %v2959, %v3082
    %v3084 = vpop.f32.mrb[0].mxu0
    %3085 = vmatprep.mubr.bf16.mxu0 0
    %3086 = vmatmul.mubr.bf16.gmra.mrb[0].mxu0 %v3022
    %v3087 = vpop.f32.mrb[0].mxu0
    %v3088 = vadd.f32 %v2964, %v3087
    %v3089 = vpop.f32.mrb[0].mxu0
    %v3090 = vpop.f32.mrb[0].mxu0
    %v3091 = vadd.f32 %v2967, %v3090
    %v3092 = vpop.f32.mrb[0].mxu0
    %3093 = vmatprep.mubr.bf16.mxu0 0
    %3094 = vmatmul.mubr.bf16.gmra.mrb[0].mxu0 %v3025
    %v3095 = vpop.f32.mrb[0].mxu0
    %v3096 = vadd.f32 %v2972, %v3095
    %v3097 = vpop.f32.mrb[0].mxu0
    %v3098 = vpop.f32.mrb[0].mxu0
    %v3099 = vadd.f32 %v2975, %v3098
    %v3100 = vpop.f32.mrb[0].mxu0
    %3101 = vmatprep.mubr.bf16.mxu0 0
    %3102 = vmatmul.mubr.bf16.gmra.mrb[0].mxu0 %v3028
    %v3103 = vpop.f32.mrb[0].mxu0
    %v3104 = vadd.f32 %v2980, %v3103
    %v3105 = vpop.f32.mrb[0].mxu0
    %v3106 = vpop.f32.mrb[0].mxu0
    %v3107 = vadd.f32 %v2983, %v3106
    %v3108 = vpop.f32.mrb[0].mxu0
    %3109 = vmatprep.mubr.bf16.mxu0 0
    %3110 = vmatmul.mubr.bf16.gmra.mrb[0].mxu0 %v3031
    %v3111 = vpop.f32.mrb[0].mxu0
    %v3112 = vadd.f32 %v2988, %v3111
    %v3113 = vpop.f32.mrb[0].mxu0
    %v3114 = vpop.f32.mrb[0].mxu0
    %v3115 = vadd.f32 %v2991, %v3114
    %v3116 = vpop.f32.mrb[0].mxu0
    %3117 = vmatprep.mubr.bf16.mxu0 0
    %3118 = vmatmul.mubr.bf16.gmra.mrb[0].mxu0 %v3034
    %v3119 = vpop.f32.mrb[0].mxu0
    %v3120 = vadd.f32 %v2996, %v3119
    %v3121 = vpop.f32.mrb[0].mxu0
    %v3122 = vpop.f32.mrb[0].mxu0
    %v3123 = vadd.f32 %v2999, %v3122
    %v3124 = vpop.f32.mrb[0].mxu0
    %3125 = vmatprep.mubr.bf16.mxu0 0
    %3126 = vmatmul.mubr.bf16.gmra.mrb[0].mxu0 %v3037
    %v3127 = vpop.f32.mrb[0].mxu0
    %v3128 = vadd.f32 %v3004, %v3127
    %v3129 = vpop.f32.mrb[0].mxu0
    %v3130 = vpop.f32.mrb[0].mxu0
    %v3131 = vadd.f32 %v3007, %v3130
    %v3132 = vpop.f32.mrb[0].mxu0
    %3133 = vmatprep.mubr.bf16.mxu0 0
    %3134 = vmatmul.mubr.bf16.gmra.mrb[0].mxu0 %v3040
    %v3135 = vpop.f32.mrb[0].mxu0
    %v3136 = vadd.f32 %v3012, %v3135
    %v3137 = vpop.f32.mrb[0].mxu0
    %v3138 = vpop.f32.mrb[0].mxu0
    %v3139 = vadd.f32 %v3015, %v3138
    %v3140 = vpop.f32.mrb[0].mxu0
    %3141 = vdwg.mxu0
    %3142 = vrot.lane.b32.xlu0 %v251, 112
    %v3143 = vpop.permute.xlu0 %3142
    %3144 = vrot.lane.b32.xlu0 %v252, 112
    %v3145 = vpop.permute.xlu0 %3144
    %3146 = vrot.lane.b32.xlu0 %v253, 112
    %v3147 = vpop.permute.xlu0 %3146
    %3148 = vrot.lane.b32.xlu0 %v254, 112
    %v3149 = vpop.permute.xlu0 %3148
    %3150 = vrot.lane.b32.xlu0 %v255, 112
    %v3151 = vpop.permute.xlu0 %3150
    %3152 = vrot.lane.b32.xlu0 %v256, 112
    %v3153 = vpop.permute.xlu0 %3152
    %3154 = vrot.lane.b32.xlu0 %v257, 112
    %v3155 = vpop.permute.xlu0 %3154
    %3156 = vrot.lane.b32.xlu0 %v258, 112
    %v3157 = vpop.permute.xlu0 %3156
    %3158 = vrot.lane.b32.xlu0 %v259, 112
    %v3159 = vpop.permute.xlu0 %3158
    %3160 = vrot.lane.b32.xlu0 %v260, 112
    %v3161 = vpop.permute.xlu0 %3160
    %3162 = vrot.lane.b32.xlu0 %v261, 112
    %v3163 = vpop.permute.xlu0 %3162
    %3164 = vrot.lane.b32.xlu0 %v262, 112
    %v3165 = vpop.permute.xlu0 %3164
    %3166 = vrot.lane.b32.xlu0 %v263, 112
    %v3167 = vpop.permute.xlu0 %3166
    %3168 = vrot.lane.b32.xlu0 %v264, 112
    %v3169 = vpop.permute.xlu0 %3168
    %3170 = vrot.lane.b32.xlu0 %v265, 112
    %v3171 = vpop.permute.xlu0 %3170
    %3172 = vrot.lane.b32.xlu0 %v266, 112
    %v3173 = vpop.permute.xlu0 %3172
    %v3190 = vsel %vm267, %v3143, 0.0
    %3191 = vadd.xlane.f32.xlu0 %v3190
    %v3192 = vpop.xlane.xlu0 %3191
    %v3193 = vsel %vm267, %v3145, 0.0
    %3194 = vadd.xlane.f32.xlu0 %v3193
    %v3195 = vpop.xlane.xlu0 %3194
    %v3196 = vsel %vm267, %v3147, 0.0
    %3197 = vadd.xlane.f32.xlu0 %v3196
    %v3198 = vpop.xlane.xlu0 %3197
    %v3199 = vsel %vm267, %v3149, 0.0
    %3200 = vadd.xlane.f32.xlu0 %v3199
    %v3201 = vpop.xlane.xlu0 %3200
    %v3202 = vsel %vm267, %v3151, 0.0
    %3203 = vadd.xlane.f32.xlu0 %v3202
    %v3204 = vpop.xlane.xlu0 %3203
    %v3205 = vsel %vm267, %v3153, 0.0
    %3206 = vadd.xlane.f32.xlu0 %v3205
    %v3207 = vpop.xlane.xlu0 %3206
    %v3208 = vsel %vm267, %v3155, 0.0
    %3209 = vadd.xlane.f32.xlu0 %v3208
    %v3210 = vpop.xlane.xlu0 %3209
    %v3211 = vsel %vm267, %v3157, 0.0
    %3212 = vadd.xlane.f32.xlu0 %v3211
    %v3213 = vpop.xlane.xlu0 %3212
    %v3214 = vsel %vm267, %v3159, 0.0
    %3215 = vadd.xlane.f32.xlu0 %v3214
    %v3216 = vpop.xlane.xlu0 %3215
    %v3217 = vsel %vm267, %v3161, 0.0
    %3218 = vadd.xlane.f32.xlu0 %v3217
    %v3219 = vpop.xlane.xlu0 %3218
    %v3220 = vsel %vm267, %v3163, 0.0
    %3221 = vadd.xlane.f32.xlu0 %v3220
    %v3222 = vpop.xlane.xlu0 %3221
    %v3223 = vsel %vm267, %v3165, 0.0
    %3224 = vadd.xlane.f32.xlu0 %v3223
    %v3225 = vpop.xlane.xlu0 %3224
    %v3226 = vsel %vm267, %v3167, 0.0
    %3227 = vadd.xlane.f32.xlu0 %v3226
    %v3228 = vpop.xlane.xlu0 %3227
    %v3229 = vsel %vm267, %v3169, 0.0
    %3230 = vadd.xlane.f32.xlu0 %v3229
    %v3231 = vpop.xlane.xlu0 %3230
    %v3232 = vsel %vm267, %v3171, 0.0
    %3233 = vadd.xlane.f32.xlu0 %v3232
    %v3234 = vpop.xlane.xlu0 %3233
    %v3235 = vsel %vm267, %v3173, 0.0
    %3236 = vadd.xlane.f32.xlu0 %v3235
    %v3237 = vpop.xlane.xlu0 %3236
    %v3238 = vadd.f32 %v3192, 1e-12
    %v3239 = vadd.f32 %v3195, 1e-12
    %v3240 = vadd.f32 %v3198, 1e-12
    %v3241 = vadd.f32 %v3201, 1e-12
    %v3242 = vadd.f32 %v3204, 1e-12
    %v3243 = vadd.f32 %v3207, 1e-12
    %v3244 = vadd.f32 %v3210, 1e-12
    %v3245 = vadd.f32 %v3213, 1e-12
    %v3246 = vadd.f32 %v3216, 1e-12
    %v3247 = vadd.f32 %v3219, 1e-12
    %v3248 = vadd.f32 %v3222, 1e-12
    %v3249 = vadd.f32 %v3225, 1e-12
    %v3250 = vadd.f32 %v3228, 1e-12
    %v3251 = vadd.f32 %v3231, 1e-12
    %v3252 = vadd.f32 %v3234, 1e-12
    %v3253 = vadd.f32 %v3237, 1e-12
    %v3254 = vrsqrt.pop %v3238
    %v3255 = vrsqrt.pop %v3239
    %v3256 = vrsqrt.pop %v3240
    %v3257 = vrsqrt.pop %v3241
    %v3258 = vrsqrt.pop %v3242
    %v3259 = vrsqrt.pop %v3243
    %v3260 = vrsqrt.pop %v3244
    %v3261 = vrsqrt.pop %v3245
    %v3262 = vrsqrt.pop %v3246
    %v3263 = vrsqrt.pop %v3247
    %v3264 = vrsqrt.pop %v3248
    %v3265 = vrsqrt.pop %v3249
    %v3266 = vrsqrt.pop %v3250
    %v3267 = vrsqrt.pop %v3251
    %v3268 = vrsqrt.pop %v3252
    %v3269 = vrsqrt.pop %v3253
    %v3270 = vmul.f32 %v189, %v3254
    %v3271 = vmul.f32 %v192, %v3255
    %v3272 = vmul.f32 %v197, %v3256
    %v3273 = vmul.f32 %v200, %v3257
    %v3274 = vmul.f32 %v205, %v3258
    %v3275 = vmul.f32 %v208, %v3259
    %v3276 = vmul.f32 %v213, %v3260
    %v3277 = vmul.f32 %v216, %v3261
    %v3278 = vmul.f32 %v221, %v3262
    %v3279 = vmul.f32 %v224, %v3263
    %v3280 = vmul.f32 %v229, %v3264
    %v3281 = vmul.f32 %v232, %v3265
    %v3282 = vmul.f32 %v237, %v3266
    %v3283 = vmul.f32 %v240, %v3267
    %v3284 = vmul.f32 %v245, %v3268
    %v3285 = vmul.f32 %v248, %v3269
    %3286 = vrot.lane.b32.xlu0 %v251, 80
    %v3287 = vpop.permute.xlu0 %3286
    %3288 = vrot.lane.b32.xlu0 %v252, 80
    %v3289 = vpop.permute.xlu0 %3288
    %3290 = vrot.lane.b32.xlu0 %v253, 80
    %v3291 = vpop.permute.xlu0 %3290
    %3292 = vrot.lane.b32.xlu0 %v254, 80
    %v3293 = vpop.permute.xlu0 %3292
    %3294 = vrot.lane.b32.xlu0 %v255, 80
    %v3295 = vpop.permute.xlu0 %3294
    %3296 = vrot.lane.b32.xlu0 %v256, 80
    %v3297 = vpop.permute.xlu0 %3296
    %3298 = vrot.lane.b32.xlu0 %v257, 80
    %v3299 = vpop.permute.xlu0 %3298
    %3300 = vrot.lane.b32.xlu0 %v258, 80
    %v3301 = vpop.permute.xlu0 %3300
    %3302 = vrot.lane.b32.xlu0 %v259, 80
    %v3303 = vpop.permute.xlu0 %3302
    %3304 = vrot.lane.b32.xlu0 %v260, 80
    %v3305 = vpop.permute.xlu0 %3304
    %3306 = vrot.lane.b32.xlu0 %v261, 80
    %v3307 = vpop.permute.xlu0 %3306
    %3308 = vrot.lane.b32.xlu0 %v262, 80
    %v3309 = vpop.permute.xlu0 %3308
    %3310 = vrot.lane.b32.xlu0 %v263, 80
    %v3311 = vpop.permute.xlu0 %3310
    %3312 = vrot.lane.b32.xlu0 %v264, 80
    %v3313 = vpop.permute.xlu0 %3312
    %3314 = vrot.lane.b32.xlu0 %v265, 80
    %v3315 = vpop.permute.xlu0 %3314
    %3316 = vrot.lane.b32.xlu0 %v266, 80
    %v3317 = vpop.permute.xlu0 %3316
    %v3334 = vsel %vm267, %v3287, 0.0
    %3335 = vadd.xlane.f32.xlu0 %v3334
    %v3336 = vpop.xlane.xlu0 %3335
    %v3337 = vsel %vm267, %v3289, 0.0
    %3338 = vadd.xlane.f32.xlu0 %v3337
    %v3339 = vpop.xlane.xlu0 %3338
    %v3340 = vsel %vm267, %v3291, 0.0
    %3341 = vadd.xlane.f32.xlu0 %v3340
    %v3342 = vpop.xlane.xlu0 %3341
    %v3343 = vsel %vm267, %v3293, 0.0
    %3344 = vadd.xlane.f32.xlu0 %v3343
    %v3345 = vpop.xlane.xlu0 %3344
    %v3346 = vsel %vm267, %v3295, 0.0
    %3347 = vadd.xlane.f32.xlu0 %v3346
    %v3348 = vpop.xlane.xlu0 %3347
    %v3349 = vsel %vm267, %v3297, 0.0
    %3350 = vadd.xlane.f32.xlu0 %v3349
    %v3351 = vpop.xlane.xlu0 %3350
    %v3352 = vsel %vm267, %v3299, 0.0
    %3353 = vadd.xlane.f32.xlu0 %v3352
    %v3354 = vpop.xlane.xlu0 %3353
    %v3355 = vsel %vm267, %v3301, 0.0
    %3356 = vadd.xlane.f32.xlu0 %v3355
    %v3357 = vpop.xlane.xlu0 %3356
    %v3358 = vsel %vm267, %v3303, 0.0
    %3359 = vadd.xlane.f32.xlu0 %v3358
    %v3360 = vpop.xlane.xlu0 %3359
    %v3361 = vsel %vm267, %v3305, 0.0
    %3362 = vadd.xlane.f32.xlu0 %v3361
    %v3363 = vpop.xlane.xlu0 %3362
    %v3364 = vsel %vm267, %v3307, 0.0
    %3365 = vadd.xlane.f32.xlu0 %v3364
    %v3366 = vpop.xlane.xlu0 %3365
    %v3367 = vsel %vm267, %v3309, 0.0
    %3368 = vadd.xlane.f32.xlu0 %v3367
    %v3369 = vpop.xlane.xlu0 %3368
    %v3370 = vsel %vm267, %v3311, 0.0
    %3371 = vadd.xlane.f32.xlu0 %v3370
    %v3372 = vpop.xlane.xlu0 %3371
    %v3373 = vsel %vm267, %v3313, 0.0
    %3374 = vadd.xlane.f32.xlu0 %v3373
    %v3375 = vpop.xlane.xlu0 %3374
    %v3376 = vsel %vm267, %v3315, 0.0
    %3377 = vadd.xlane.f32.xlu0 %v3376
    %v3378 = vpop.xlane.xlu0 %3377
    %v3379 = vsel %vm267, %v3317, 0.0
    %3380 = vadd.xlane.f32.xlu0 %v3379
    %v3381 = vpop.xlane.xlu0 %3380
    %v3382 = vadd.f32 %v3336, 1e-12
    %v3383 = vadd.f32 %v3339, 1e-12
    %v3384 = vadd.f32 %v3342, 1e-12
    %v3385 = vadd.f32 %v3345, 1e-12
    %v3386 = vadd.f32 %v3348, 1e-12
    %v3387 = vadd.f32 %v3351, 1e-12
    %v3388 = vadd.f32 %v3354, 1e-12
    %v3389 = vadd.f32 %v3357, 1e-12
    %v3390 = vadd.f32 %v3360, 1e-12
    %v3391 = vadd.f32 %v3363, 1e-12
    %v3392 = vadd.f32 %v3366, 1e-12
    %v3393 = vadd.f32 %v3369, 1e-12
    %v3394 = vadd.f32 %v3372, 1e-12
    %v3395 = vadd.f32 %v3375, 1e-12
    %v3396 = vadd.f32 %v3378, 1e-12
    %v3397 = vadd.f32 %v3381, 1e-12
    %v3398 = vrsqrt.pop %v3382
    %v3399 = vrsqrt.pop %v3383
    %v3400 = vrsqrt.pop %v3384
    %v3401 = vrsqrt.pop %v3385
    %v3402 = vrsqrt.pop %v3386
    %v3403 = vrsqrt.pop %v3387
    %v3404 = vrsqrt.pop %v3388
    %v3405 = vrsqrt.pop %v3389
    %v3406 = vrsqrt.pop %v3390
    %v3407 = vrsqrt.pop %v3391
    %v3408 = vrsqrt.pop %v3392
    %v3409 = vrsqrt.pop %v3393
    %v3410 = vrsqrt.pop %v3394
    %v3411 = vrsqrt.pop %v3395
    %v3412 = vrsqrt.pop %v3396
    %v3413 = vrsqrt.pop %v3397
    %v3414 = vmul.f32 %v189, %v3398
    %v3415 = vmul.f32 %v192, %v3399
    %v3416 = vmul.f32 %v197, %v3400
    %v3417 = vmul.f32 %v200, %v3401
    %v3418 = vmul.f32 %v205, %v3402
    %v3419 = vmul.f32 %v208, %v3403
    %v3420 = vmul.f32 %v213, %v3404
    %v3421 = vmul.f32 %v216, %v3405
    %v3422 = vmul.f32 %v221, %v3406
    %v3423 = vmul.f32 %v224, %v3407
    %v3424 = vmul.f32 %v229, %v3408
    %v3425 = vmul.f32 %v232, %v3409
    %v3426 = vmul.f32 %v237, %v3410
    %v3427 = vmul.f32 %v240, %v3411
    %v3428 = vmul.f32 %v245, %v3412
    %v3429 = vmul.f32 %v248, %v3413
    %s3430 = sld [smem:[#allocation9 + $0x2]]
    %v3431 = vstv %s3430
    %v3432 = vmul.f32 %v3270, %v3431
    %v3433 = vmul.f32 %v3271, %v3431
    %v3434 = vmul.f32 %v3272, %v3431
    %v3435 = vmul.f32 %v3273, %v3431
    %v3436 = vmul.f32 %v3274, %v3431
    %v3437 = vmul.f32 %v3275, %v3431
    %v3438 = vmul.f32 %v3276, %v3431
    %v3439 = vmul.f32 %v3277, %v3431
    %v3440 = vmul.f32 %v3278, %v3431
    %v3441 = vmul.f32 %v3279, %v3431
    %v3442 = vmul.f32 %v3280, %v3431
    %v3443 = vmul.f32 %v3281, %v3431
    %v3444 = vmul.f32 %v3282, %v3431
    %v3445 = vmul.f32 %v3283, %v3431
    %v3446 = vmul.f32 %v3284, %v3431
    %v3447 = vmul.f32 %v3285, %v3431
    %v3448 = vpack.c.bf16 %v3433, %v3432
    %v3449 = vpack.c.bf16 %v3435, %v3434
    %v3450 = vpack.c.bf16 %v3437, %v3436
    %v3451 = vpack.c.bf16 %v3439, %v3438
    %v3452 = vpack.c.bf16 %v3441, %v3440
    %v3453 = vpack.c.bf16 %v3443, %v3442
    %v3454 = vpack.c.bf16 %v3445, %v3444
    %v3455 = vpack.c.bf16 %v3447, %v3446
    %v3456 = vpack.c.bf16 %v3415, %v3414
    %v3457 = vpack.c.bf16 %v3417, %v3416
    %v3458 = vpack.c.bf16 %v3419, %v3418
    %v3459 = vpack.c.bf16 %v3421, %v3420
    %v3460 = vpack.c.bf16 %v3423, %v3422
    %v3461 = vpack.c.bf16 %v3425, %v3424
    %v3462 = vpack.c.bf16 %v3427, %v3426
    %v3463 = vpack.c.bf16 %v3429, %v3428
    %s3464 = scalar_lea.vmem [#allocation6], 32
    %v3465 = vld [vmem:[%s3464] sm:$0xff]
    %v3466 = vld [vmem:[%s3464 + $0x8] sm:$0xff]
    %v3467 = vld [vmem:[%s3464 + $0x40] sm:$0xff]
    %v3468 = vld [vmem:[%s3464 + $0x48] sm:$0xff]
    %v3469 = vld [vmem:[%s3464 + $0x80] sm:$0xff]
    %v3470 = vld [vmem:[%s3464 + $0x88] sm:$0xff]
    %v3471 = vld [vmem:[%s3464 + $0xc0] sm:$0xff]
    %v3472 = vld [vmem:[%s3464 + $0xc8] sm:$0xff]
    %v3473 = vld [vmem:[%s3464 + $0x100] sm:$0xff]
    %v3474 = vld [vmem:[%s3464 + $0x108] sm:$0xff]
    %v3475 = vld [vmem:[%s3464 + $0x140] sm:$0xff]
    %v3476 = vld [vmem:[%s3464 + $0x148] sm:$0xff]
    %v3477 = vld [vmem:[%s3464 + $0x180] sm:$0xff]
    %v3478 = vld [vmem:[%s3464 + $0x188] sm:$0xff]
    %v3479 = vld [vmem:[%s3464 + $0x1c0] sm:$0xff]
    %v3480 = vld [vmem:[%s3464 + $0x1c8] sm:$0xff]
    %3482 = vrot.lane.b32.xlu0 %v3448, 112
    %v3483 = vpop.permute.xlu0 %3482
    %3485 = vrot.lane.b32.xlu0 %v3456, 80
    %v3486 = vpop.permute.xlu0 %3485
    %v3488 = vsel %vm267, %v3483, 0
    %v3491 = vsel %vm267, %v3486, 0
    %3493 = vmatprep.subr.bf16.mxu0 0
    %3494 = vmatpush1.bf16.xpose.msra.mxu0 %v3491
    %3495 = vmatprep.subr.bf16.mxu0 0
    %3496 = vmatpush1.bf16.xpose.msra.mxu0 0
    %3497 = vmatprep.subr.bf16.mxu0 0
    %3498 = vmatpush1.bf16.xpose.msra.mxu0 0
    %3499 = vmatprep.subr.bf16.mxu0 0
    %3500 = vmatpush1.bf16.xpose.msra.mxu0 0
    %3501 = vmatprep.subr.bf16.mxu0 0
    %3502 = vmatpush1.bf16.xpose.msra.mxu0 0
    %3503 = vmatprep.subr.bf16.mxu0 0
    %3504 = vmatpush1.bf16.xpose.msra.mxu0 0
    %3505 = vmatprep.subr.bf16.mxu0 0
    %3506 = vmatpush1.bf16.xpose.msra.mxu0 0
    %3507 = vmatprep.subr.bf16.mxu0 0
    %3508 = vmatpush1.bf16.xpose.msra.mxu0 0
    %3509 = vmatprep.subr.bf16.mxu0 0
    %3510 = vmatpush1.bf16.xpose.msra.mxu0 0
    %3511 = vmatprep.subr.bf16.mxu0 0
    %3512 = vmatpush1.bf16.xpose.msra.mxu0 0
    %3513 = vmatprep.subr.bf16.mxu0 0
    %3514 = vmatpush1.bf16.xpose.msra.mxu0 0
    %3515 = vmatprep.subr.bf16.mxu0 0
    %3516 = vmatpush1.bf16.xpose.msra.mxu0 0
    %3517 = vmatprep.subr.bf16.mxu0 0
    %3518 = vmatpush1.bf16.xpose.msra.mxu0 0
    %3519 = vmatprep.subr.bf16.mxu0 0
    %3520 = vmatpush1.bf16.xpose.msra.mxu0 0
    %3521 = vmatprep.subr.bf16.mxu0 0
    %3522 = vmatpush1.bf16.xpose.msra.mxu0 0
    %3523 = vmatprep.subr.bf16.mxu0 0
    %3524 = vmatpush1.bf16.xpose.msra.mxu0 0
    %3525 = vmatprep.mubr.bf16.mxu0 0
    %3526 = vmatmul.mubr.bf16.gmra.mrb[0].mxu0 %v3488
    %v3527 = vpop.f32.mrb[0].mxu0
    %v3528 = vadd.f32 %v3465, %v3527
    %v3529 = vpop.f32.mrb[0].mxu0
    %v3530 = vpop.f32.mrb[0].mxu0
    %v3531 = vadd.f32 %v3466, %v3530
    %v3532 = vpop.f32.mrb[0].mxu0
    %3533 = vdwg.mxu0
    %3535 = vrot.lane.b32.xlu0 %v3449, 112
    %v3536 = vpop.permute.xlu0 %3535
    %3538 = vrot.lane.b32.xlu0 %v3457, 80
    %v3539 = vpop.permute.xlu0 %3538
    %v3541 = vsel %vm267, %v3536, 0
    %v3544 = vsel %vm267, %v3539, 0
    %3546 = vmatprep.subr.bf16.mxu0 0
    %3547 = vmatpush1.bf16.xpose.msra.mxu0 %v3544
    %3548 = vmatprep.subr.bf16.mxu0 0
    %3549 = vmatpush1.bf16.xpose.msra.mxu0 0
    %3550 = vmatprep.subr.bf16.mxu0 0
    %3551 = vmatpush1.bf16.xpose.msra.mxu0 0
    %3552 = vmatprep.subr.bf16.mxu0 0
    %3553 = vmatpush1.bf16.xpose.msra.mxu0 0
    %3554 = vmatprep.subr.bf16.mxu0 0
    %3555 = vmatpush1.bf16.xpose.msra.mxu0 0
    %3556 = vmatprep.subr.bf16.mxu0 0
    %3557 = vmatpush1.bf16.xpose.msra.mxu0 0
    %3558 = vmatprep.subr.bf16.mxu0 0
    %3559 = vmatpush1.bf16.xpose.msra.mxu0 0
    %3560 = vmatprep.subr.bf16.mxu0 0
    %3561 = vmatpush1.bf16.xpose.msra.mxu0 0
    %3562 = vmatprep.subr.bf16.mxu0 0
    %3563 = vmatpush1.bf16.xpose.msra.mxu0 0
    %3564 = vmatprep.subr.bf16.mxu0 0
    %3565 = vmatpush1.bf16.xpose.msra.mxu0 0
    %3566 = vmatprep.subr.bf16.mxu0 0
    %3567 = vmatpush1.bf16.xpose.msra.mxu0 0
    %3568 = vmatprep.subr.bf16.mxu0 0
    %3569 = vmatpush1.bf16.xpose.msra.mxu0 0
    %3570 = vmatprep.subr.bf16.mxu0 0
    %3571 = vmatpush1.bf16.xpose.msra.mxu0 0
    %3572 = vmatprep.subr.bf16.mxu0 0
    %3573 = vmatpush1.bf16.xpose.msra.mxu0 0
    %3574 = vmatprep.subr.bf16.mxu0 0
    %3575 = vmatpush1.bf16.xpose.msra.mxu0 0
    %3576 = vmatprep.subr.bf16.mxu0 0
    %3577 = vmatpush1.bf16.xpose.msra.mxu0 0
    %3578 = vmatprep.mubr.bf16.mxu0 0
    %3579 = vmatmul.mubr.bf16.gmra.mrb[0].mxu0 %v3541
    %v3580 = vpop.f32.mrb[0].mxu0
    %v3581 = vadd.f32 %v3467, %v3580
    %v3582 = vpop.f32.mrb[0].mxu0
    %v3583 = vpop.f32.mrb[0].mxu0
    %v3584 = vadd.f32 %v3468, %v3583
    %v3585 = vpop.f32.mrb[0].mxu0
    %3586 = vdwg.mxu0
    %3588 = vrot.lane.b32.xlu0 %v3450, 112
    %v3589 = vpop.permute.xlu0 %3588
    %3591 = vrot.lane.b32.xlu0 %v3458, 80
    %v3592 = vpop.permute.xlu0 %3591
    %v3594 = vsel %vm267, %v3589, 0
    %v3597 = vsel %vm267, %v3592, 0
    %3599 = vmatprep.subr.bf16.mxu0 0
    %3600 = vmatpush1.bf16.xpose.msra.mxu0 %v3597
    %3601 = vmatprep.subr.bf16.mxu0 0
    %3602 = vmatpush1.bf16.xpose.msra.mxu0 0
    %3603 = vmatprep.subr.bf16.mxu0 0
    %3604 = vmatpush1.bf16.xpose.msra.mxu0 0
    %3605 = vmatprep.subr.bf16.mxu0 0
    %3606 = vmatpush1.bf16.xpose.msra.mxu0 0
    %3607 = vmatprep.subr.bf16.mxu0 0
    %3608 = vmatpush1.bf16.xpose.msra.mxu0 0
    %3609 = vmatprep.subr.bf16.mxu0 0
    %3610 = vmatpush1.bf16.xpose.msra.mxu0 0
    %3611 = vmatprep.subr.bf16.mxu0 0
    %3612 = vmatpush1.bf16.xpose.msra.mxu0 0
    %3613 = vmatprep.subr.bf16.mxu0 0
    %3614 = vmatpush1.bf16.xpose.msra.mxu0 0
    %3615 = vmatprep.subr.bf16.mxu0 0
    %3616 = vmatpush1.bf16.xpose.msra.mxu0 0
    %3617 = vmatprep.subr.bf16.mxu0 0
    %3618 = vmatpush1.bf16.xpose.msra.mxu0 0
    %3619 = vmatprep.subr.bf16.mxu0 0
    %3620 = vmatpush1.bf16.xpose.msra.mxu0 0
    %3621 = vmatprep.subr.bf16.mxu0 0
    %3622 = vmatpush1.bf16.xpose.msra.mxu0 0
    %3623 = vmatprep.subr.bf16.mxu0 0
    %3624 = vmatpush1.bf16.xpose.msra.mxu0 0
    %3625 = vmatprep.subr.bf16.mxu0 0
    %3626 = vmatpush1.bf16.xpose.msra.mxu0 0
    %3627 = vmatprep.subr.bf16.mxu0 0
    %3628 = vmatpush1.bf16.xpose.msra.mxu0 0
    %3629 = vmatprep.subr.bf16.mxu0 0
    %3630 = vmatpush1.bf16.xpose.msra.mxu0 0
    %3631 = vmatprep.mubr.bf16.mxu0 0
    %3632 = vmatmul.mubr.bf16.gmra.mrb[0].mxu0 %v3594
    %v3633 = vpop.f32.mrb[0].mxu0
    %v3634 = vadd.f32 %v3469, %v3633
    %v3635 = vpop.f32.mrb[0].mxu0
    %v3636 = vpop.f32.mrb[0].mxu0
    %v3637 = vadd.f32 %v3470, %v3636
    %v3638 = vpop.f32.mrb[0].mxu0
    %3639 = vdwg.mxu0
    %3641 = vrot.lane.b32.xlu0 %v3451, 112
    %v3642 = vpop.permute.xlu0 %3641
    %3644 = vrot.lane.b32.xlu0 %v3459, 80
    %v3645 = vpop.permute.xlu0 %3644
    %v3647 = vsel %vm267, %v3642, 0
    %v3650 = vsel %vm267, %v3645, 0
    %3652 = vmatprep.subr.bf16.mxu0 0
    %3653 = vmatpush1.bf16.xpose.msra.mxu0 %v3650
    %3654 = vmatprep.subr.bf16.mxu0 0
    %3655 = vmatpush1.bf16.xpose.msra.mxu0 0
    %3656 = vmatprep.subr.bf16.mxu0 0
    %3657 = vmatpush1.bf16.xpose.msra.mxu0 0
    %3658 = vmatprep.subr.bf16.mxu0 0
    %3659 = vmatpush1.bf16.xpose.msra.mxu0 0
    %3660 = vmatprep.subr.bf16.mxu0 0
    %3661 = vmatpush1.bf16.xpose.msra.mxu0 0
    %3662 = vmatprep.subr.bf16.mxu0 0
    %3663 = vmatpush1.bf16.xpose.msra.mxu0 0
    %3664 = vmatprep.subr.bf16.mxu0 0
    %3665 = vmatpush1.bf16.xpose.msra.mxu0 0
    %3666 = vmatprep.subr.bf16.mxu0 0
    %3667 = vmatpush1.bf16.xpose.msra.mxu0 0
    %3668 = vmatprep.subr.bf16.mxu0 0
    %3669 = vmatpush1.bf16.xpose.msra.mxu0 0
    %3670 = vmatprep.subr.bf16.mxu0 0
    %3671 = vmatpush1.bf16.xpose.msra.mxu0 0
    %3672 = vmatprep.subr.bf16.mxu0 0
    %3673 = vmatpush1.bf16.xpose.msra.mxu0 0
    %3674 = vmatprep.subr.bf16.mxu0 0
    %3675 = vmatpush1.bf16.xpose.msra.mxu0 0
    %3676 = vmatprep.subr.bf16.mxu0 0
    %3677 = vmatpush1.bf16.xpose.msra.mxu0 0
    %3678 = vmatprep.subr.bf16.mxu0 0
    %3679 = vmatpush1.bf16.xpose.msra.mxu0 0
    %3680 = vmatprep.subr.bf16.mxu0 0
    %3681 = vmatpush1.bf16.xpose.msra.mxu0 0
    %3682 = vmatprep.subr.bf16.mxu0 0
    %3683 = vmatpush1.bf16.xpose.msra.mxu0 0
    %3684 = vmatprep.mubr.bf16.mxu0 0
    %3685 = vmatmul.mubr.bf16.gmra.mrb[0].mxu0 %v3647
    %v3686 = vpop.f32.mrb[0].mxu0
    %v3687 = vadd.f32 %v3471, %v3686
    %v3688 = vpop.f32.mrb[0].mxu0
    %v3689 = vpop.f32.mrb[0].mxu0
    %v3690 = vadd.f32 %v3472, %v3689
    %v3691 = vpop.f32.mrb[0].mxu0
    %3692 = vdwg.mxu0
    %3694 = vrot.lane.b32.xlu0 %v3452, 112
    %v3695 = vpop.permute.xlu0 %3694
    %3697 = vrot.lane.b32.xlu0 %v3460, 80
    %v3698 = vpop.permute.xlu0 %3697
    %v3700 = vsel %vm267, %v3695, 0
    %v3703 = vsel %vm267, %v3698, 0
    %3705 = vmatprep.subr.bf16.mxu0 0
    %3706 = vmatpush1.bf16.xpose.msra.mxu0 %v3703
    %3707 = vmatprep.subr.bf16.mxu0 0
    %3708 = vmatpush1.bf16.xpose.msra.mxu0 0
    %3709 = vmatprep.subr.bf16.mxu0 0
    %3710 = vmatpush1.bf16.xpose.msra.mxu0 0
    %3711 = vmatprep.subr.bf16.mxu0 0
    %3712 = vmatpush1.bf16.xpose.msra.mxu0 0
    %3713 = vmatprep.subr.bf16.mxu0 0
    %3714 = vmatpush1.bf16.xpose.msra.mxu0 0
    %3715 = vmatprep.subr.bf16.mxu0 0
    %3716 = vmatpush1.bf16.xpose.msra.mxu0 0
    %3717 = vmatprep.subr.bf16.mxu0 0
    %3718 = vmatpush1.bf16.xpose.msra.mxu0 0
    %3719 = vmatprep.subr.bf16.mxu0 0
    %3720 = vmatpush1.bf16.xpose.msra.mxu0 0
    %3721 = vmatprep.subr.bf16.mxu0 0
    %3722 = vmatpush1.bf16.xpose.msra.mxu0 0
    %3723 = vmatprep.subr.bf16.mxu0 0
    %3724 = vmatpush1.bf16.xpose.msra.mxu0 0
    %3725 = vmatprep.subr.bf16.mxu0 0
    %3726 = vmatpush1.bf16.xpose.msra.mxu0 0
    %3727 = vmatprep.subr.bf16.mxu0 0
    %3728 = vmatpush1.bf16.xpose.msra.mxu0 0
    %3729 = vmatprep.subr.bf16.mxu0 0
    %3730 = vmatpush1.bf16.xpose.msra.mxu0 0
    %3731 = vmatprep.subr.bf16.mxu0 0
    %3732 = vmatpush1.bf16.xpose.msra.mxu0 0
    %3733 = vmatprep.subr.bf16.mxu0 0
    %3734 = vmatpush1.bf16.xpose.msra.mxu0 0
    %3735 = vmatprep.subr.bf16.mxu0 0
    %3736 = vmatpush1.bf16.xpose.msra.mxu0 0
    %3737 = vmatprep.mubr.bf16.mxu0 0
    %3738 = vmatmul.mubr.bf16.gmra.mrb[0].mxu0 %v3700
    %v3739 = vpop.f32.mrb[0].mxu0
    %v3740 = vadd.f32 %v3473, %v3739
    %v3741 = vpop.f32.mrb[0].mxu0
    %v3742 = vpop.f32.mrb[0].mxu0
    %v3743 = vadd.f32 %v3474, %v3742
    %v3744 = vpop.f32.mrb[0].mxu0
    %3745 = vdwg.mxu0
    %3747 = vrot.lane.b32.xlu0 %v3453, 112
    %v3748 = vpop.permute.xlu0 %3747
    %3750 = vrot.lane.b32.xlu0 %v3461, 80
    %v3751 = vpop.permute.xlu0 %3750
    %v3753 = vsel %vm267, %v3748, 0
    %v3756 = vsel %vm267, %v3751, 0
    %3758 = vmatprep.subr.bf16.mxu0 0
    %3759 = vmatpush1.bf16.xpose.msra.mxu0 %v3756
    %3760 = vmatprep.subr.bf16.mxu0 0
    %3761 = vmatpush1.bf16.xpose.msra.mxu0 0
    %3762 = vmatprep.subr.bf16.mxu0 0
    %3763 = vmatpush1.bf16.xpose.msra.mxu0 0
    %3764 = vmatprep.subr.bf16.mxu0 0
    %3765 = vmatpush1.bf16.xpose.msra.mxu0 0
    %3766 = vmatprep.subr.bf16.mxu0 0
    %3767 = vmatpush1.bf16.xpose.msra.mxu0 0
    %3768 = vmatprep.subr.bf16.mxu0 0
    %3769 = vmatpush1.bf16.xpose.msra.mxu0 0
    %3770 = vmatprep.subr.bf16.mxu0 0
    %3771 = vmatpush1.bf16.xpose.msra.mxu0 0
    %3772 = vmatprep.subr.bf16.mxu0 0
    %3773 = vmatpush1.bf16.xpose.msra.mxu0 0
    %3774 = vmatprep.subr.bf16.mxu0 0
    %3775 = vmatpush1.bf16.xpose.msra.mxu0 0
    %3776 = vmatprep.subr.bf16.mxu0 0
    %3777 = vmatpush1.bf16.xpose.msra.mxu0 0
    %3778 = vmatprep.subr.bf16.mxu0 0
    %3779 = vmatpush1.bf16.xpose.msra.mxu0 0
    %3780 = vmatprep.subr.bf16.mxu0 0
    %3781 = vmatpush1.bf16.xpose.msra.mxu0 0
    %3782 = vmatprep.subr.bf16.mxu0 0
    %3783 = vmatpush1.bf16.xpose.msra.mxu0 0
    %3784 = vmatprep.subr.bf16.mxu0 0
    %3785 = vmatpush1.bf16.xpose.msra.mxu0 0
    %3786 = vmatprep.subr.bf16.mxu0 0
    %3787 = vmatpush1.bf16.xpose.msra.mxu0 0
    %3788 = vmatprep.subr.bf16.mxu0 0
    %3789 = vmatpush1.bf16.xpose.msra.mxu0 0
    %3790 = vmatprep.mubr.bf16.mxu0 0
    %3791 = vmatmul.mubr.bf16.gmra.mrb[0].mxu0 %v3753
    %v3792 = vpop.f32.mrb[0].mxu0
    %v3793 = vadd.f32 %v3475, %v3792
    %v3794 = vpop.f32.mrb[0].mxu0
    %v3795 = vpop.f32.mrb[0].mxu0
    %v3796 = vadd.f32 %v3476, %v3795
    %v3797 = vpop.f32.mrb[0].mxu0
    %3798 = vdwg.mxu0
    %3800 = vrot.lane.b32.xlu0 %v3454, 112
    %v3801 = vpop.permute.xlu0 %3800
    %3803 = vrot.lane.b32.xlu0 %v3462, 80
    %v3804 = vpop.permute.xlu0 %3803
    %v3806 = vsel %vm267, %v3801, 0
    %v3809 = vsel %vm267, %v3804, 0
    %3811 = vmatprep.subr.bf16.mxu0 0
    %3812 = vmatpush1.bf16.xpose.msra.mxu0 %v3809
    %3813 = vmatprep.subr.bf16.mxu0 0
    %3814 = vmatpush1.bf16.xpose.msra.mxu0 0
    %3815 = vmatprep.subr.bf16.mxu0 0
    %3816 = vmatpush1.bf16.xpose.msra.mxu0 0
    %3817 = vmatprep.subr.bf16.mxu0 0
    %3818 = vmatpush1.bf16.xpose.msra.mxu0 0
    %3819 = vmatprep.subr.bf16.mxu0 0
    %3820 = vmatpush1.bf16.xpose.msra.mxu0 0
    %3821 = vmatprep.subr.bf16.mxu0 0
    %3822 = vmatpush1.bf16.xpose.msra.mxu0 0
    %3823 = vmatprep.subr.bf16.mxu0 0
    %3824 = vmatpush1.bf16.xpose.msra.mxu0 0
    %3825 = vmatprep.subr.bf16.mxu0 0
    %3826 = vmatpush1.bf16.xpose.msra.mxu0 0
    %3827 = vmatprep.subr.bf16.mxu0 0
    %3828 = vmatpush1.bf16.xpose.msra.mxu0 0
    %3829 = vmatprep.subr.bf16.mxu0 0
    %3830 = vmatpush1.bf16.xpose.msra.mxu0 0
    %3831 = vmatprep.subr.bf16.mxu0 0
    %3832 = vmatpush1.bf16.xpose.msra.mxu0 0
    %3833 = vmatprep.subr.bf16.mxu0 0
    %3834 = vmatpush1.bf16.xpose.msra.mxu0 0
    %3835 = vmatprep.subr.bf16.mxu0 0
    %3836 = vmatpush1.bf16.xpose.msra.mxu0 0
    %3837 = vmatprep.subr.bf16.mxu0 0
    %3838 = vmatpush1.bf16.xpose.msra.mxu0 0
    %3839 = vmatprep.subr.bf16.mxu0 0
    %3840 = vmatpush1.bf16.xpose.msra.mxu0 0
    %3841 = vmatprep.subr.bf16.mxu0 0
    %3842 = vmatpush1.bf16.xpose.msra.mxu0 0
    %3843 = vmatprep.mubr.bf16.mxu0 0
    %3844 = vmatmul.mubr.bf16.gmra.mrb[0].mxu0 %v3806
    %v3845 = vpop.f32.mrb[0].mxu0
    %v3846 = vadd.f32 %v3477, %v3845
    %v3847 = vpop.f32.mrb[0].mxu0
    %v3848 = vpop.f32.mrb[0].mxu0
    %v3849 = vadd.f32 %v3478, %v3848
    %v3850 = vpop.f32.mrb[0].mxu0
    %3851 = vdwg.mxu0
    %3853 = vrot.lane.b32.xlu0 %v3455, 112
    %v3854 = vpop.permute.xlu0 %3853
    %3856 = vrot.lane.b32.xlu0 %v3463, 80
    %v3857 = vpop.permute.xlu0 %3856
    %v3859 = vsel %vm267, %v3854, 0
    %v3862 = vsel %vm267, %v3857, 0
    %3864 = vmatprep.subr.bf16.mxu0 0
    %3865 = vmatpush1.bf16.xpose.msra.mxu0 %v3862
    %3866 = vmatprep.subr.bf16.mxu0 0
    %3867 = vmatpush1.bf16.xpose.msra.mxu0 0
    %3868 = vmatprep.subr.bf16.mxu0 0
    %3869 = vmatpush1.bf16.xpose.msra.mxu0 0
    %3870 = vmatprep.subr.bf16.mxu0 0
    %3871 = vmatpush1.bf16.xpose.msra.mxu0 0
    %3872 = vmatprep.subr.bf16.mxu0 0
    %3873 = vmatpush1.bf16.xpose.msra.mxu0 0
    %3874 = vmatprep.subr.bf16.mxu0 0
    %3875 = vmatpush1.bf16.xpose.msra.mxu0 0
    %3876 = vmatprep.subr.bf16.mxu0 0
    %3877 = vmatpush1.bf16.xpose.msra.mxu0 0
    %3878 = vmatprep.subr.bf16.mxu0 0
    %3879 = vmatpush1.bf16.xpose.msra.mxu0 0
    %3880 = vmatprep.subr.bf16.mxu0 0
    %3881 = vmatpush1.bf16.xpose.msra.mxu0 0
    %3882 = vmatprep.subr.bf16.mxu0 0
    %3883 = vmatpush1.bf16.xpose.msra.mxu0 0
    %3884 = vmatprep.subr.bf16.mxu0 0
    %3885 = vmatpush1.bf16.xpose.msra.mxu0 0
    %3886 = vmatprep.subr.bf16.mxu0 0
    %3887 = vmatpush1.bf16.xpose.msra.mxu0 0
    %3888 = vmatprep.subr.bf16.mxu0 0
    %3889 = vmatpush1.bf16.xpose.msra.mxu0 0
    %3890 = vmatprep.subr.bf16.mxu0 0
    %3891 = vmatpush1.bf16.xpose.msra.mxu0 0
    %3892 = vmatprep.subr.bf16.mxu0 0
    %3893 = vmatpush1.bf16.xpose.msra.mxu0 0
    %3894 = vmatprep.subr.bf16.mxu0 0
    %3895 = vmatpush1.bf16.xpose.msra.mxu0 0
    %3896 = vmatprep.mubr.bf16.mxu0 0
    %3897 = vmatmul.mubr.bf16.gmra.mrb[0].mxu0 %v3859
    %v3898 = vpop.f32.mrb[0].mxu0
    %v3899 = vadd.f32 %v3479, %v3898
    %v3900 = vpop.f32.mrb[0].mxu0
    %v3901 = vpop.f32.mrb[0].mxu0
    %v3902 = vadd.f32 %v3480, %v3901
    %v3903 = vpop.f32.mrb[0].mxu0
    %3904 = vdwg.mxu0
    %v3905 = vsel %vm974, %v3528, -inf
    %3906 = vmax.xlane.f32.xlu0 %v3905
    %v3907 = vpop.xlane.xlu0 %3906
    %v3908 = vsel %vm974, %v3531, -inf
    %3909 = vmax.xlane.f32.xlu0 %v3908
    %v3910 = vpop.xlane.xlu0 %3909
    %v3911 = vsel %vm974, %v3581, -inf
    %3912 = vmax.xlane.f32.xlu0 %v3911
    %v3913 = vpop.xlane.xlu0 %3912
    %v3914 = vsel %vm974, %v3584, -inf
    %3915 = vmax.xlane.f32.xlu0 %v3914
    %v3916 = vpop.xlane.xlu0 %3915
    %v3917 = vsel %vm974, %v3634, -inf
    %3918 = vmax.xlane.f32.xlu0 %v3917
    %v3919 = vpop.xlane.xlu0 %3918
    %v3920 = vsel %vm974, %v3637, -inf
    %3921 = vmax.xlane.f32.xlu0 %v3920
    %v3922 = vpop.xlane.xlu0 %3921
    %v3923 = vsel %vm974, %v3687, -inf
    %3924 = vmax.xlane.f32.xlu0 %v3923
    %v3925 = vpop.xlane.xlu0 %3924
    %v3926 = vsel %vm974, %v3690, -inf
    %3927 = vmax.xlane.f32.xlu0 %v3926
    %v3928 = vpop.xlane.xlu0 %3927
    %v3929 = vsel %vm974, %v3740, -inf
    %3930 = vmax.xlane.f32.xlu0 %v3929
    %v3931 = vpop.xlane.xlu0 %3930
    %v3932 = vsel %vm974, %v3743, -inf
    %3933 = vmax.xlane.f32.xlu0 %v3932
    %v3934 = vpop.xlane.xlu0 %3933
    %v3935 = vsel %vm974, %v3793, -inf
    %3936 = vmax.xlane.f32.xlu0 %v3935
    %v3937 = vpop.xlane.xlu0 %3936
    %v3938 = vsel %vm974, %v3796, -inf
    %3939 = vmax.xlane.f32.xlu0 %v3938
    %v3940 = vpop.xlane.xlu0 %3939
    %v3941 = vsel %vm974, %v3846, -inf
    %3942 = vmax.xlane.f32.xlu0 %v3941
    %v3943 = vpop.xlane.xlu0 %3942
    %v3944 = vsel %vm974, %v3849, -inf
    %3945 = vmax.xlane.f32.xlu0 %v3944
    %v3946 = vpop.xlane.xlu0 %3945
    %v3947 = vsel %vm974, %v3899, -inf
    %3948 = vmax.xlane.f32.xlu0 %v3947
    %v3949 = vpop.xlane.xlu0 %3948
    %v3950 = vsel %vm974, %v3902, -inf
    %3951 = vmax.xlane.f32.xlu0 %v3950
    %v3952 = vpop.xlane.xlu0 %3951
    %v3953 = vsub.f32 %v3528, %v3907
    %v3954 = vsub.f32 %v3531, %v3910
    %v3955 = vsub.f32 %v3581, %v3913
    %v3956 = vsub.f32 %v3584, %v3916
    %v3957 = vsub.f32 %v3634, %v3919
    %v3958 = vsub.f32 %v3637, %v3922
    %v3959 = vsub.f32 %v3687, %v3925
    %v3960 = vsub.f32 %v3690, %v3928
    %v3961 = vsub.f32 %v3740, %v3931
    %v3962 = vsub.f32 %v3743, %v3934
    %v3963 = vsub.f32 %v3793, %v3937
    %v3964 = vsub.f32 %v3796, %v3940
    %v3965 = vsub.f32 %v3846, %v3943
    %v3966 = vsub.f32 %v3849, %v3946
    %v3967 = vsub.f32 %v3899, %v3949
    %v3968 = vsub.f32 %v3902, %v3952
    %v3969 = vmul.f32 %v3953, 1.442695
    %v3970 = vpow.pop %v3969
    %v3971 = vmul.f32 %v3954, 1.442695
    %v3972 = vpow.pop %v3971
    %v3973 = vmul.f32 %v3955, 1.442695
    %v3974 = vpow.pop %v3973
    %v3975 = vmul.f32 %v3956, 1.442695
    %v3976 = vpow.pop %v3975
    %v3977 = vmul.f32 %v3957, 1.442695
    %v3978 = vpow.pop %v3977
    %v3979 = vmul.f32 %v3958, 1.442695
    %v3980 = vpow.pop %v3979
    %v3981 = vmul.f32 %v3959, 1.442695
    %v3982 = vpow.pop %v3981
    %v3983 = vmul.f32 %v3960, 1.442695
    %v3984 = vpow.pop %v3983
    %v3985 = vmul.f32 %v3961, 1.442695
    %v3986 = vpow.pop %v3985
    %v3987 = vmul.f32 %v3962, 1.442695
    %v3988 = vpow.pop %v3987
    %v3989 = vmul.f32 %v3963, 1.442695
    %v3990 = vpow.pop %v3989
    %v3991 = vmul.f32 %v3964, 1.442695
    %v3992 = vpow.pop %v3991
    %v3993 = vmul.f32 %v3965, 1.442695
    %v3994 = vpow.pop %v3993
    %v3995 = vmul.f32 %v3966, 1.442695
    %v3996 = vpow.pop %v3995
    %v3997 = vmul.f32 %v3967, 1.442695
    %v3998 = vpow.pop %v3997
    %v3999 = vmul.f32 %v3968, 1.442695
    %v4000 = vpow.pop %v3999
    %v4001 = vsel %vm974, %v3970, 0.0
    %4002 = vadd.xlane.f32.xlu0 %v4001
    %v4003 = vpop.xlane.xlu0 %4002
    %v4004 = vsel %vm974, %v3972, 0.0
    %4005 = vadd.xlane.f32.xlu0 %v4004
    %v4006 = vpop.xlane.xlu0 %4005
    %v4007 = vsel %vm974, %v3974, 0.0
    %4008 = vadd.xlane.f32.xlu0 %v4007
    %v4009 = vpop.xlane.xlu0 %4008
    %v4010 = vsel %vm974, %v3976, 0.0
    %4011 = vadd.xlane.f32.xlu0 %v4010
    %v4012 = vpop.xlane.xlu0 %4011
    %v4013 = vsel %vm974, %v3978, 0.0
    %4014 = vadd.xlane.f32.xlu0 %v4013
    %v4015 = vpop.xlane.xlu0 %4014
    %v4016 = vsel %vm974, %v3980, 0.0
    %4017 = vadd.xlane.f32.xlu0 %v4016
    %v4018 = vpop.xlane.xlu0 %4017
    %v4019 = vsel %vm974, %v3982, 0.0
    %4020 = vadd.xlane.f32.xlu0 %v4019
    %v4021 = vpop.xlane.xlu0 %4020
    %v4022 = vsel %vm974, %v3984, 0.0
    %4023 = vadd.xlane.f32.xlu0 %v4022
    %v4024 = vpop.xlane.xlu0 %4023
    %v4025 = vsel %vm974, %v3986, 0.0
    %4026 = vadd.xlane.f32.xlu0 %v4025
    %v4027 = vpop.xlane.xlu0 %4026
    %v4028 = vsel %vm974, %v3988, 0.0
    %4029 = vadd.xlane.f32.xlu0 %v4028
    %v4030 = vpop.xlane.xlu0 %4029
    %v4031 = vsel %vm974, %v3990, 0.0
    %4032 = vadd.xlane.f32.xlu0 %v4031
    %v4033 = vpop.xlane.xlu0 %4032
    %v4034 = vsel %vm974, %v3992, 0.0
    %4035 = vadd.xlane.f32.xlu0 %v4034
    %v4036 = vpop.xlane.xlu0 %4035
    %v4037 = vsel %vm974, %v3994, 0.0
    %4038 = vadd.xlane.f32.xlu0 %v4037
    %v4039 = vpop.xlane.xlu0 %4038
    %v4040 = vsel %vm974, %v3996, 0.0
    %4041 = vadd.xlane.f32.xlu0 %v4040
    %v4042 = vpop.xlane.xlu0 %4041
    %v4043 = vsel %vm974, %v3998, 0.0
    %4044 = vadd.xlane.f32.xlu0 %v4043
    %v4045 = vpop.xlane.xlu0 %4044
    %v4046 = vsel %vm974, %v4000, 0.0
    %4047 = vadd.xlane.f32.xlu0 %v4046
    %v4048 = vpop.xlane.xlu0 %4047
    %v4049 = vrcp.pop %v4003
    %v4050 = vrcp.pop %v4006
    %v4051 = vrcp.pop %v4009
    %v4052 = vrcp.pop %v4012
    %v4053 = vrcp.pop %v4015
    %v4054 = vrcp.pop %v4018
    %v4055 = vrcp.pop %v4021
    %v4056 = vrcp.pop %v4024
    %v4057 = vrcp.pop %v4027
    %v4058 = vrcp.pop %v4030
    %v4059 = vrcp.pop %v4033
    %v4060 = vrcp.pop %v4036
    %v4061 = vrcp.pop %v4039
    %v4062 = vrcp.pop %v4042
    %v4063 = vrcp.pop %v4045
    %v4064 = vrcp.pop %v4048
    %v4065 = vmul.f32 %v3970, %v4049
    %v4066 = vmul.f32 %v3972, %v4050
    %v4067 = vmul.f32 %v3974, %v4051
    %v4068 = vmul.f32 %v3976, %v4052
    %v4069 = vmul.f32 %v3978, %v4053
    %v4070 = vmul.f32 %v3980, %v4054
    %v4071 = vmul.f32 %v3982, %v4055
    %v4072 = vmul.f32 %v3984, %v4056
    %v4073 = vmul.f32 %v3986, %v4057
    %v4074 = vmul.f32 %v3988, %v4058
    %v4075 = vmul.f32 %v3990, %v4059
    %v4076 = vmul.f32 %v3992, %v4060
    %v4077 = vmul.f32 %v3994, %v4061
    %v4078 = vmul.f32 %v3996, %v4062
    %v4079 = vmul.f32 %v3998, %v4063
    %v4080 = vmul.f32 %v4000, %v4064
    %v4081 = vpack.c.bf16 %v4066, %v4065
    %v4082 = vpack.c.bf16 %v4068, %v4067
    %v4083 = vpack.c.bf16 %v4070, %v4069
    %v4084 = vpack.c.bf16 %v4072, %v4071
    %v4085 = vpack.c.bf16 %v4074, %v4073
    %v4086 = vpack.c.bf16 %v4076, %v4075
    %v4087 = vpack.c.bf16 %v4078, %v4077
    %v4088 = vpack.c.bf16 %v4080, %v4079
    %4089 = vrot.lane.b32.xlu0 %v1159, 48
    %v4090 = vpop.permute.xlu0 %4089
    %v4093 = vsel %vm974, %v4081, 0
    %4095 = vmatprep.subr.bf16.mxu0 0
    %4096 = vmatpush1.bf16.msra.mxu0 %v4090
    %4097 = vmatprep.subr.bf16.mxu0 0
    %4098 = vmatpush1.bf16.msra.mxu0 0
    %4099 = vmatprep.subr.bf16.mxu0 0
    %4100 = vmatpush1.bf16.msra.mxu0 0
    %4101 = vmatprep.subr.bf16.mxu0 0
    %4102 = vmatpush1.bf16.msra.mxu0 0
    %4103 = vmatprep.subr.bf16.mxu0 0
    %4104 = vmatpush1.bf16.msra.mxu0 0
    %4105 = vmatprep.subr.bf16.mxu0 0
    %4106 = vmatpush1.bf16.msra.mxu0 0
    %4107 = vmatprep.subr.bf16.mxu0 0
    %4108 = vmatpush1.bf16.msra.mxu0 0
    %4109 = vmatprep.subr.bf16.mxu0 0
    %4110 = vmatpush1.bf16.msra.mxu0 0
    %4111 = vmatprep.subr.bf16.mxu0 0
    %4112 = vmatpush1.bf16.msra.mxu0 0
    %4113 = vmatprep.subr.bf16.mxu0 0
    %4114 = vmatpush1.bf16.msra.mxu0 0
    %4115 = vmatprep.subr.bf16.mxu0 0
    %4116 = vmatpush1.bf16.msra.mxu0 0
    %4117 = vmatprep.subr.bf16.mxu0 0
    %4118 = vmatpush1.bf16.msra.mxu0 0
    %4119 = vmatprep.subr.bf16.mxu0 0
    %4120 = vmatpush1.bf16.msra.mxu0 0
    %4121 = vmatprep.subr.bf16.mxu0 0
    %4122 = vmatpush1.bf16.msra.mxu0 0
    %4123 = vmatprep.subr.bf16.mxu0 0
    %4124 = vmatpush1.bf16.msra.mxu0 0
    %4125 = vmatprep.subr.bf16.mxu0 0
    %4126 = vmatpush1.bf16.msra.mxu0 0
    %4127 = vmatprep.mubr.bf16.mxu0 0
    %4128 = vmatmul.mubr.bf16.gmra.mrb[0].mxu0 %v4093
    %v4129 = vpop.f32.mrb[0].mxu0
    %v4130 = vadd.f32 0.0, %v4129
    %v4131 = vpop.f32.mrb[0].mxu0
    %v4132 = vpop.f32.mrb[0].mxu0
    %v4133 = vadd.f32 0.0, %v4132
    %v4134 = vpop.f32.mrb[0].mxu0
    %4135 = vdwg.mxu0
    %4136 = vrot.lane.b32.xlu0 %v1160, 48
    %v4137 = vpop.permute.xlu0 %4136
    %v4140 = vsel %vm974, %v4082, 0
    %4142 = vmatprep.subr.bf16.mxu0 0
    %4143 = vmatpush1.bf16.msra.mxu0 %v4137
    %4144 = vmatprep.subr.bf16.mxu0 0
    %4145 = vmatpush1.bf16.msra.mxu0 0
    %4146 = vmatprep.subr.bf16.mxu0 0
    %4147 = vmatpush1.bf16.msra.mxu0 0
    %4148 = vmatprep.subr.bf16.mxu0 0
    %4149 = vmatpush1.bf16.msra.mxu0 0
    %4150 = vmatprep.subr.bf16.mxu0 0
    %4151 = vmatpush1.bf16.msra.mxu0 0
    %4152 = vmatprep.subr.bf16.mxu0 0
    %4153 = vmatpush1.bf16.msra.mxu0 0
    %4154 = vmatprep.subr.bf16.mxu0 0
    %4155 = vmatpush1.bf16.msra.mxu0 0
    %4156 = vmatprep.subr.bf16.mxu0 0
    %4157 = vmatpush1.bf16.msra.mxu0 0
    %4158 = vmatprep.subr.bf16.mxu0 0
    %4159 = vmatpush1.bf16.msra.mxu0 0
    %4160 = vmatprep.subr.bf16.mxu0 0
    %4161 = vmatpush1.bf16.msra.mxu0 0
    %4162 = vmatprep.subr.bf16.mxu0 0
    %4163 = vmatpush1.bf16.msra.mxu0 0
    %4164 = vmatprep.subr.bf16.mxu0 0
    %4165 = vmatpush1.bf16.msra.mxu0 0
    %4166 = vmatprep.subr.bf16.mxu0 0
    %4167 = vmatpush1.bf16.msra.mxu0 0
    %4168 = vmatprep.subr.bf16.mxu0 0
    %4169 = vmatpush1.bf16.msra.mxu0 0
    %4170 = vmatprep.subr.bf16.mxu0 0
    %4171 = vmatpush1.bf16.msra.mxu0 0
    %4172 = vmatprep.subr.bf16.mxu0 0
    %4173 = vmatpush1.bf16.msra.mxu0 0
    %4174 = vmatprep.mubr.bf16.mxu0 0
    %4175 = vmatmul.mubr.bf16.gmra.mrb[0].mxu0 %v4140
    %v4176 = vpop.f32.mrb[0].mxu0
    %v4177 = vadd.f32 0.0, %v4176
    %v4178 = vpop.f32.mrb[0].mxu0
    %v4179 = vpop.f32.mrb[0].mxu0
    %v4180 = vadd.f32 0.0, %v4179
    %v4181 = vpop.f32.mrb[0].mxu0
    %4182 = vdwg.mxu0
    %4183 = vrot.lane.b32.xlu0 %v1161, 48
    %v4184 = vpop.permute.xlu0 %4183
    %v4187 = vsel %vm974, %v4083, 0
    %4189 = vmatprep.subr.bf16.mxu0 0
    %4190 = vmatpush1.bf16.msra.mxu0 %v4184
    %4191 = vmatprep.subr.bf16.mxu0 0
    %4192 = vmatpush1.bf16.msra.mxu0 0
    %4193 = vmatprep.subr.bf16.mxu0 0
    %4194 = vmatpush1.bf16.msra.mxu0 0
    %4195 = vmatprep.subr.bf16.mxu0 0
    %4196 = vmatpush1.bf16.msra.mxu0 0
    %4197 = vmatprep.subr.bf16.mxu0 0
    %4198 = vmatpush1.bf16.msra.mxu0 0
    %4199 = vmatprep.subr.bf16.mxu0 0
    %4200 = vmatpush1.bf16.msra.mxu0 0
    %4201 = vmatprep.subr.bf16.mxu0 0
    %4202 = vmatpush1.bf16.msra.mxu0 0
    %4203 = vmatprep.subr.bf16.mxu0 0
    %4204 = vmatpush1.bf16.msra.mxu0 0
    %4205 = vmatprep.subr.bf16.mxu0 0
    %4206 = vmatpush1.bf16.msra.mxu0 0
    %4207 = vmatprep.subr.bf16.mxu0 0
    %4208 = vmatpush1.bf16.msra.mxu0 0
    %4209 = vmatprep.subr.bf16.mxu0 0
    %4210 = vmatpush1.bf16.msra.mxu0 0
    %4211 = vmatprep.subr.bf16.mxu0 0
    %4212 = vmatpush1.bf16.msra.mxu0 0
    %4213 = vmatprep.subr.bf16.mxu0 0
    %4214 = vmatpush1.bf16.msra.mxu0 0
    %4215 = vmatprep.subr.bf16.mxu0 0
    %4216 = vmatpush1.bf16.msra.mxu0 0
    %4217 = vmatprep.subr.bf16.mxu0 0
    %4218 = vmatpush1.bf16.msra.mxu0 0
    %4219 = vmatprep.subr.bf16.mxu0 0
    %4220 = vmatpush1.bf16.msra.mxu0 0
    %4221 = vmatprep.mubr.bf16.mxu0 0
    %4222 = vmatmul.mubr.bf16.gmra.mrb[0].mxu0 %v4187
    %v4223 = vpop.f32.mrb[0].mxu0
    %v4224 = vadd.f32 0.0, %v4223
    %v4225 = vpop.f32.mrb[0].mxu0
    %v4226 = vpop.f32.mrb[0].mxu0
    %v4227 = vadd.f32 0.0, %v4226
    %v4228 = vpop.f32.mrb[0].mxu0
    %4229 = vdwg.mxu0
    %4230 = vrot.lane.b32.xlu0 %v1162, 48
    %v4231 = vpop.permute.xlu0 %4230
    %v4234 = vsel %vm974, %v4084, 0
    %4236 = vmatprep.subr.bf16.mxu0 0
    %4237 = vmatpush1.bf16.msra.mxu0 %v4231
    %4238 = vmatprep.subr.bf16.mxu0 0
    %4239 = vmatpush1.bf16.msra.mxu0 0
    %4240 = vmatprep.subr.bf16.mxu0 0
    %4241 = vmatpush1.bf16.msra.mxu0 0
    %4242 = vmatprep.subr.bf16.mxu0 0
    %4243 = vmatpush1.bf16.msra.mxu0 0
    %4244 = vmatprep.subr.bf16.mxu0 0
    %4245 = vmatpush1.bf16.msra.mxu0 0
    %4246 = vmatprep.subr.bf16.mxu0 0
    %4247 = vmatpush1.bf16.msra.mxu0 0
    %4248 = vmatprep.subr.bf16.mxu0 0
    %4249 = vmatpush1.bf16.msra.mxu0 0
    %4250 = vmatprep.subr.bf16.mxu0 0
    %4251 = vmatpush1.bf16.msra.mxu0 0
    %4252 = vmatprep.subr.bf16.mxu0 0
    %4253 = vmatpush1.bf16.msra.mxu0 0
    %4254 = vmatprep.subr.bf16.mxu0 0
    %4255 = vmatpush1.bf16.msra.mxu0 0
    %4256 = vmatprep.subr.bf16.mxu0 0
    %4257 = vmatpush1.bf16.msra.mxu0 0
    %4258 = vmatprep.subr.bf16.mxu0 0
    %4259 = vmatpush1.bf16.msra.mxu0 0
    %4260 = vmatprep.subr.bf16.mxu0 0
    %4261 = vmatpush1.bf16.msra.mxu0 0
    %4262 = vmatprep.subr.bf16.mxu0 0
    %4263 = vmatpush1.bf16.msra.mxu0 0
    %4264 = vmatprep.subr.bf16.mxu0 0
    %4265 = vmatpush1.bf16.msra.mxu0 0
    %4266 = vmatprep.subr.bf16.mxu0 0
    %4267 = vmatpush1.bf16.msra.mxu0 0
    %4268 = vmatprep.mubr.bf16.mxu0 0
    %4269 = vmatmul.mubr.bf16.gmra.mrb[0].mxu0 %v4234
    %v4270 = vpop.f32.mrb[0].mxu0
    %v4271 = vadd.f32 0.0, %v4270
    %v4272 = vpop.f32.mrb[0].mxu0
    %v4273 = vpop.f32.mrb[0].mxu0
    %v4274 = vadd.f32 0.0, %v4273
    %v4275 = vpop.f32.mrb[0].mxu0
    %4276 = vdwg.mxu0
    %4277 = vrot.lane.b32.xlu0 %v1163, 48
    %v4278 = vpop.permute.xlu0 %4277
    %v4281 = vsel %vm974, %v4085, 0
    %4283 = vmatprep.subr.bf16.mxu0 0
    %4284 = vmatpush1.bf16.msra.mxu0 %v4278
    %4285 = vmatprep.subr.bf16.mxu0 0
    %4286 = vmatpush1.bf16.msra.mxu0 0
    %4287 = vmatprep.subr.bf16.mxu0 0
    %4288 = vmatpush1.bf16.msra.mxu0 0
    %4289 = vmatprep.subr.bf16.mxu0 0
    %4290 = vmatpush1.bf16.msra.mxu0 0
    %4291 = vmatprep.subr.bf16.mxu0 0
    %4292 = vmatpush1.bf16.msra.mxu0 0
    %4293 = vmatprep.subr.bf16.mxu0 0
    %4294 = vmatpush1.bf16.msra.mxu0 0
    %4295 = vmatprep.subr.bf16.mxu0 0
    %4296 = vmatpush1.bf16.msra.mxu0 0
    %4297 = vmatprep.subr.bf16.mxu0 0
    %4298 = vmatpush1.bf16.msra.mxu0 0
    %4299 = vmatprep.subr.bf16.mxu0 0
    %4300 = vmatpush1.bf16.msra.mxu0 0
    %4301 = vmatprep.subr.bf16.mxu0 0
    %4302 = vmatpush1.bf16.msra.mxu0 0
    %4303 = vmatprep.subr.bf16.mxu0 0
    %4304 = vmatpush1.bf16.msra.mxu0 0
    %4305 = vmatprep.subr.bf16.mxu0 0
    %4306 = vmatpush1.bf16.msra.mxu0 0
    %4307 = vmatprep.subr.bf16.mxu0 0
    %4308 = vmatpush1.bf16.msra.mxu0 0
    %4309 = vmatprep.subr.bf16.mxu0 0
    %4310 = vmatpush1.bf16.msra.mxu0 0
    %4311 = vmatprep.subr.bf16.mxu0 0
    %4312 = vmatpush1.bf16.msra.mxu0 0
    %4313 = vmatprep.subr.bf16.mxu0 0
    %4314 = vmatpush1.bf16.msra.mxu0 0
    %4315 = vmatprep.mubr.bf16.mxu0 0
    %4316 = vmatmul.mubr.bf16.gmra.mrb[0].mxu0 %v4281
    %v4317 = vpop.f32.mrb[0].mxu0
    %v4318 = vadd.f32 0.0, %v4317
    %v4319 = vpop.f32.mrb[0].mxu0
    %v4320 = vpop.f32.mrb[0].mxu0
    %v4321 = vadd.f32 0.0, %v4320
    %v4322 = vpop.f32.mrb[0].mxu0
    %4323 = vdwg.mxu0
    %4324 = vrot.lane.b32.xlu0 %v1164, 48
    %v4325 = vpop.permute.xlu0 %4324
    %v4328 = vsel %vm974, %v4086, 0
    %4330 = vmatprep.subr.bf16.mxu0 0
    %4331 = vmatpush1.bf16.msra.mxu0 %v4325
    %4332 = vmatprep.subr.bf16.mxu0 0
    %4333 = vmatpush1.bf16.msra.mxu0 0
    %4334 = vmatprep.subr.bf16.mxu0 0
    %4335 = vmatpush1.bf16.msra.mxu0 0
    %4336 = vmatprep.subr.bf16.mxu0 0
    %4337 = vmatpush1.bf16.msra.mxu0 0
    %4338 = vmatprep.subr.bf16.mxu0 0
    %4339 = vmatpush1.bf16.msra.mxu0 0
    %4340 = vmatprep.subr.bf16.mxu0 0
    %4341 = vmatpush1.bf16.msra.mxu0 0
    %4342 = vmatprep.subr.bf16.mxu0 0
    %4343 = vmatpush1.bf16.msra.mxu0 0
    %4344 = vmatprep.subr.bf16.mxu0 0
    %4345 = vmatpush1.bf16.msra.mxu0 0
    %4346 = vmatprep.subr.bf16.mxu0 0
    %4347 = vmatpush1.bf16.msra.mxu0 0
    %4348 = vmatprep.subr.bf16.mxu0 0
    %4349 = vmatpush1.bf16.msra.mxu0 0
    %4350 = vmatprep.subr.bf16.mxu0 0
    %4351 = vmatpush1.bf16.msra.mxu0 0
    %4352 = vmatprep.subr.bf16.mxu0 0
    %4353 = vmatpush1.bf16.msra.mxu0 0
    %4354 = vmatprep.subr.bf16.mxu0 0
    %4355 = vmatpush1.bf16.msra.mxu0 0
    %4356 = vmatprep.subr.bf16.mxu0 0
    %4357 = vmatpush1.bf16.msra.mxu0 0
    %4358 = vmatprep.subr.bf16.mxu0 0
    %4359 = vmatpush1.bf16.msra.mxu0 0
    %4360 = vmatprep.subr.bf16.mxu0 0
    %4361 = vmatpush1.bf16.msra.mxu0 0
    %4362 = vmatprep.mubr.bf16.mxu0 0
    %4363 = vmatmul.mubr.bf16.gmra.mrb[0].mxu0 %v4328
    %v4364 = vpop.f32.mrb[0].mxu0
    %v4365 = vadd.f32 0.0, %v4364
    %v4366 = vpop.f32.mrb[0].mxu0
    %v4367 = vpop.f32.mrb[0].mxu0
    %v4368 = vadd.f32 0.0, %v4367
    %v4369 = vpop.f32.mrb[0].mxu0
    %4370 = vdwg.mxu0
    %4371 = vrot.lane.b32.xlu0 %v1165, 48
    %v4372 = vpop.permute.xlu0 %4371
    %v4375 = vsel %vm974, %v4087, 0
    %4377 = vmatprep.subr.bf16.mxu0 0
    %4378 = vmatpush1.bf16.msra.mxu0 %v4372
    %4379 = vmatprep.subr.bf16.mxu0 0
    %4380 = vmatpush1.bf16.msra.mxu0 0
    %4381 = vmatprep.subr.bf16.mxu0 0
    %4382 = vmatpush1.bf16.msra.mxu0 0
    %4383 = vmatprep.subr.bf16.mxu0 0
    %4384 = vmatpush1.bf16.msra.mxu0 0
    %4385 = vmatprep.subr.bf16.mxu0 0
    %4386 = vmatpush1.bf16.msra.mxu0 0
    %4387 = vmatprep.subr.bf16.mxu0 0
    %4388 = vmatpush1.bf16.msra.mxu0 0
    %4389 = vmatprep.subr.bf16.mxu0 0
    %4390 = vmatpush1.bf16.msra.mxu0 0
    %4391 = vmatprep.subr.bf16.mxu0 0
    %4392 = vmatpush1.bf16.msra.mxu0 0
    %4393 = vmatprep.subr.bf16.mxu0 0
    %4394 = vmatpush1.bf16.msra.mxu0 0
    %4395 = vmatprep.subr.bf16.mxu0 0
    %4396 = vmatpush1.bf16.msra.mxu0 0
    %4397 = vmatprep.subr.bf16.mxu0 0
    %4398 = vmatpush1.bf16.msra.mxu0 0
    %4399 = vmatprep.subr.bf16.mxu0 0
    %4400 = vmatpush1.bf16.msra.mxu0 0
    %4401 = vmatprep.subr.bf16.mxu0 0
    %4402 = vmatpush1.bf16.msra.mxu0 0
    %4403 = vmatprep.subr.bf16.mxu0 0
    %4404 = vmatpush1.bf16.msra.mxu0 0
    %4405 = vmatprep.subr.bf16.mxu0 0
    %4406 = vmatpush1.bf16.msra.mxu0 0
    %4407 = vmatprep.subr.bf16.mxu0 0
    %4408 = vmatpush1.bf16.msra.mxu0 0
    %4409 = vmatprep.mubr.bf16.mxu0 0
    %4410 = vmatmul.mubr.bf16.gmra.mrb[0].mxu0 %v4375
    %v4411 = vpop.f32.mrb[0].mxu0
    %v4412 = vadd.f32 0.0, %v4411
    %v4413 = vpop.f32.mrb[0].mxu0
    %v4414 = vpop.f32.mrb[0].mxu0
    %v4415 = vadd.f32 0.0, %v4414
    %v4416 = vpop.f32.mrb[0].mxu0
    %4417 = vdwg.mxu0
    %4418 = vrot.lane.b32.xlu0 %v1166, 48
    %v4419 = vpop.permute.xlu0 %4418
    %v4422 = vsel %vm974, %v4088, 0
    %4424 = vmatprep.subr.bf16.mxu0 0
    %4425 = vmatpush1.bf16.msra.mxu0 %v4419
    %4426 = vmatprep.subr.bf16.mxu0 0
    %4427 = vmatpush1.bf16.msra.mxu0 0
    %4428 = vmatprep.subr.bf16.mxu0 0
    %4429 = vmatpush1.bf16.msra.mxu0 0
    %4430 = vmatprep.subr.bf16.mxu0 0
    %4431 = vmatpush1.bf16.msra.mxu0 0
    %4432 = vmatprep.subr.bf16.mxu0 0
    %4433 = vmatpush1.bf16.msra.mxu0 0
    %4434 = vmatprep.subr.bf16.mxu0 0
    %4435 = vmatpush1.bf16.msra.mxu0 0
    %4436 = vmatprep.subr.bf16.mxu0 0
    %4437 = vmatpush1.bf16.msra.mxu0 0
    %4438 = vmatprep.subr.bf16.mxu0 0
    %4439 = vmatpush1.bf16.msra.mxu0 0
    %4440 = vmatprep.subr.bf16.mxu0 0
    %4441 = vmatpush1.bf16.msra.mxu0 0
    %4442 = vmatprep.subr.bf16.mxu0 0
    %4443 = vmatpush1.bf16.msra.mxu0 0
    %4444 = vmatprep.subr.bf16.mxu0 0
    %4445 = vmatpush1.bf16.msra.mxu0 0
    %4446 = vmatprep.subr.bf16.mxu0 0
    %4447 = vmatpush1.bf16.msra.mxu0 0
    %4448 = vmatprep.subr.bf16.mxu0 0
    %4449 = vmatpush1.bf16.msra.mxu0 0
    %4450 = vmatprep.subr.bf16.mxu0 0
    %4451 = vmatpush1.bf16.msra.mxu0 0
    %4452 = vmatprep.subr.bf16.mxu0 0
    %4453 = vmatpush1.bf16.msra.mxu0 0
    %4454 = vmatprep.subr.bf16.mxu0 0
    %4455 = vmatpush1.bf16.msra.mxu0 0
    %4456 = vmatprep.mubr.bf16.mxu0 0
    %4457 = vmatmul.mubr.bf16.gmra.mrb[0].mxu0 %v4422
    %v4458 = vpop.f32.mrb[0].mxu0
    %v4459 = vadd.f32 0.0, %v4458
    %v4460 = vpop.f32.mrb[0].mxu0
    %v4461 = vpop.f32.mrb[0].mxu0
    %v4462 = vadd.f32 0.0, %v4461
    %v4463 = vpop.f32.mrb[0].mxu0
    %4464 = vdwg.mxu0
    %v4465 = vpack.c.bf16 %v4133, %v4130
    %v4466 = vpack.c.bf16 %v4180, %v4177
    %v4467 = vpack.c.bf16 %v4227, %v4224
    %v4468 = vpack.c.bf16 %v4274, %v4271
    %v4469 = vpack.c.bf16 %v4321, %v4318
    %v4470 = vpack.c.bf16 %v4368, %v4365
    %v4471 = vpack.c.bf16 %v4415, %v4412
    %v4472 = vpack.c.bf16 %v4462, %v4459
    %s4473 = scalar_lea.vmem %s5, 8
    %v4474 = vld [vmem:[%s4473] sm:$0xf]
    %v4476 = vsel %vm267, %v4465, 0
    %v4479 = vsel %vm267, %v4466, 0
    %v4482 = vsel %vm267, %v4467, 0
    %v4485 = vsel %vm267, %v4468, 0
    %v4488 = vsel %vm267, %v4469, 0
    %v4491 = vsel %vm267, %v4470, 0
    %v4494 = vsel %vm267, %v4471, 0
    %v4497 = vsel %vm267, %v4472, 0
    %v4500 = vsel %vm2917, %v4474, 0
    %4502 = vmatprep.subr.bf16.mxu0 0
    %4503 = vmatpush1.bf16.msra.mxu0 %v4500
    %4504 = vmatprep.subr.bf16.mxu0 0
    %4505 = vmatpush1.bf16.msra.mxu0 0
    %4506 = vmatprep.subr.bf16.mxu0 0
    %4507 = vmatpush1.bf16.msra.mxu0 0
    %4508 = vmatprep.subr.bf16.mxu0 0
    %4509 = vmatpush1.bf16.msra.mxu0 0
    %4510 = vmatprep.subr.bf16.mxu0 0
    %4511 = vmatpush1.bf16.msra.mxu0 0
    %4512 = vmatprep.subr.bf16.mxu0 0
    %4513 = vmatpush1.bf16.msra.mxu0 0
    %4514 = vmatprep.subr.bf16.mxu0 0
    %4515 = vmatpush1.bf16.msra.mxu0 0
    %4516 = vmatprep.subr.bf16.mxu0 0
    %4517 = vmatpush1.bf16.msra.mxu0 0
    %4518 = vmatprep.subr.bf16.mxu0 0
    %4519 = vmatpush1.bf16.msra.mxu0 0
    %4520 = vmatprep.subr.bf16.mxu0 0
    %4521 = vmatpush1.bf16.msra.mxu0 0
    %4522 = vmatprep.subr.bf16.mxu0 0
    %4523 = vmatpush1.bf16.msra.mxu0 0
    %4524 = vmatprep.subr.bf16.mxu0 0
    %4525 = vmatpush1.bf16.msra.mxu0 0
    %4526 = vmatprep.subr.bf16.mxu0 0
    %4527 = vmatpush1.bf16.msra.mxu0 0
    %4528 = vmatprep.subr.bf16.mxu0 0
    %4529 = vmatpush1.bf16.msra.mxu0 0
    %4530 = vmatprep.subr.bf16.mxu0 0
    %4531 = vmatpush1.bf16.msra.mxu0 0
    %4532 = vmatprep.subr.bf16.mxu0 0
    %4533 = vmatpush1.bf16.msra.mxu0 0
    %4534 = vmatprep.mubr.bf16.mxu0 0
    %4535 = vmatmul.mubr.bf16.gmra.mrb[0].mxu0 %v4476
    %v4536 = vpop.f32.mrb[0].mxu0
    %v4537 = vadd.f32 0.0, %v4536
    %v4538 = vpop.f32.mrb[0].mxu0
    %v4539 = vpop.f32.mrb[0].mxu0
    %v4540 = vadd.f32 0.0, %v4539
    %v4541 = vpop.f32.mrb[0].mxu0
    %4542 = vmatprep.mubr.bf16.mxu0 0
    %4543 = vmatmul.mubr.bf16.gmra.mrb[0].mxu0 %v4479
    %v4544 = vpop.f32.mrb[0].mxu0
    %v4545 = vadd.f32 0.0, %v4544
    %v4546 = vpop.f32.mrb[0].mxu0
    %v4547 = vpop.f32.mrb[0].mxu0
    %v4548 = vadd.f32 0.0, %v4547
    %v4549 = vpop.f32.mrb[0].mxu0
    %4550 = vmatprep.mubr.bf16.mxu0 0
    %4551 = vmatmul.mubr.bf16.gmra.mrb[0].mxu0 %v4482
    %v4552 = vpop.f32.mrb[0].mxu0
    %v4553 = vadd.f32 0.0, %v4552
    %v4554 = vpop.f32.mrb[0].mxu0
    %v4555 = vpop.f32.mrb[0].mxu0
    %v4556 = vadd.f32 0.0, %v4555
    %v4557 = vpop.f32.mrb[0].mxu0
    %4558 = vmatprep.mubr.bf16.mxu0 0
    %4559 = vmatmul.mubr.bf16.gmra.mrb[0].mxu0 %v4485
    %v4560 = vpop.f32.mrb[0].mxu0
    %v4561 = vadd.f32 0.0, %v4560
    %v4562 = vpop.f32.mrb[0].mxu0
    %v4563 = vpop.f32.mrb[0].mxu0
    %v4564 = vadd.f32 0.0, %v4563
    %v4565 = vpop.f32.mrb[0].mxu0
    %4566 = vmatprep.mubr.bf16.mxu0 0
    %4567 = vmatmul.mubr.bf16.gmra.mrb[0].mxu0 %v4488
    %v4568 = vpop.f32.mrb[0].mxu0
    %v4569 = vadd.f32 0.0, %v4568
    %v4570 = vpop.f32.mrb[0].mxu0
    %v4571 = vpop.f32.mrb[0].mxu0
    %v4572 = vadd.f32 0.0, %v4571
    %v4573 = vpop.f32.mrb[0].mxu0
    %4574 = vmatprep.mubr.bf16.mxu0 0
    %4575 = vmatmul.mubr.bf16.gmra.mrb[0].mxu0 %v4491
    %v4576 = vpop.f32.mrb[0].mxu0
    %v4577 = vadd.f32 0.0, %v4576
    %v4578 = vpop.f32.mrb[0].mxu0
    %v4579 = vpop.f32.mrb[0].mxu0
    %v4580 = vadd.f32 0.0, %v4579
    %v4581 = vpop.f32.mrb[0].mxu0
    %4582 = vmatprep.mubr.bf16.mxu0 0
    %4583 = vmatmul.mubr.bf16.gmra.mrb[0].mxu0 %v4494
    %v4584 = vpop.f32.mrb[0].mxu0
    %v4585 = vadd.f32 0.0, %v4584
    %v4586 = vpop.f32.mrb[0].mxu0
    %v4587 = vpop.f32.mrb[0].mxu0
    %v4588 = vadd.f32 0.0, %v4587
    %v4589 = vpop.f32.mrb[0].mxu0
    %4590 = vmatprep.mubr.bf16.mxu0 0
    %4591 = vmatmul.mubr.bf16.gmra.mrb[0].mxu0 %v4497
    %v4592 = vpop.f32.mrb[0].mxu0
    %v4593 = vadd.f32 0.0, %v4592
    %v4594 = vpop.f32.mrb[0].mxu0
    %v4595 = vpop.f32.mrb[0].mxu0
    %v4596 = vadd.f32 0.0, %v4595
    %v4597 = vpop.f32.mrb[0].mxu0
    %4598 = vdwg.mxu0
    %v4599 = vadd.f32 %v3080, %v4537
    %v4600 = vadd.f32 %v3083, %v4540
    %v4601 = vadd.f32 %v3088, %v4545
    %v4602 = vadd.f32 %v3091, %v4548
    %v4603 = vadd.f32 %v3096, %v4553
    %v4604 = vadd.f32 %v3099, %v4556
    %v4605 = vadd.f32 %v3104, %v4561
    %v4606 = vadd.f32 %v3107, %v4564
    %v4607 = vadd.f32 %v3112, %v4569
    %v4608 = vadd.f32 %v3115, %v4572
    %v4609 = vadd.f32 %v3120, %v4577
    %v4610 = vadd.f32 %v3123, %v4580
    %v4611 = vadd.f32 %v3128, %v4585
    %v4612 = vadd.f32 %v3131, %v4588
    %v4613 = vadd.f32 %v3136, %v4593
    %v4614 = vadd.f32 %v3139, %v4596
    %4615 = vrot.lane.b32.xlu0 %v251, 104
    %v4616 = vpop.permute.xlu0 %4615
    %4617 = vrot.lane.b32.xlu0 %v252, 104
    %v4618 = vpop.permute.xlu0 %4617
    %4619 = vrot.lane.b32.xlu0 %v253, 104
    %v4620 = vpop.permute.xlu0 %4619
    %4621 = vrot.lane.b32.xlu0 %v254, 104
    %v4622 = vpop.permute.xlu0 %4621
    %4623 = vrot.lane.b32.xlu0 %v255, 104
    %v4624 = vpop.permute.xlu0 %4623
    %4625 = vrot.lane.b32.xlu0 %v256, 104
    %v4626 = vpop.permute.xlu0 %4625
    %4627 = vrot.lane.b32.xlu0 %v257, 104
    %v4628 = vpop.permute.xlu0 %4627
    %4629 = vrot.lane.b32.xlu0 %v258, 104
    %v4630 = vpop.permute.xlu0 %4629
    %4631 = vrot.lane.b32.xlu0 %v259, 104
    %v4632 = vpop.permute.xlu0 %4631
    %4633 = vrot.lane.b32.xlu0 %v260, 104
    %v4634 = vpop.permute.xlu0 %4633
    %4635 = vrot.lane.b32.xlu0 %v261, 104
    %v4636 = vpop.permute.xlu0 %4635
    %4637 = vrot.lane.b32.xlu0 %v262, 104
    %v4638 = vpop.permute.xlu0 %4637
    %4639 = vrot.lane.b32.xlu0 %v263, 104
    %v4640 = vpop.permute.xlu0 %4639
    %4641 = vrot.lane.b32.xlu0 %v264, 104
    %v4642 = vpop.permute.xlu0 %4641
    %4643 = vrot.lane.b32.xlu0 %v265, 104
    %v4644 = vpop.permute.xlu0 %4643
    %4645 = vrot.lane.b32.xlu0 %v266, 104
    %v4646 = vpop.permute.xlu0 %4645
    %v4663 = vsel %vm267, %v4616, 0.0
    %4664 = vadd.xlane.f32.xlu0 %v4663
    %v4665 = vpop.xlane.xlu0 %4664
    %v4666 = vsel %vm267, %v4618, 0.0
    %4667 = vadd.xlane.f32.xlu0 %v4666
    %v4668 = vpop.xlane.xlu0 %4667
    %v4669 = vsel %vm267, %v4620, 0.0
    %4670 = vadd.xlane.f32.xlu0 %v4669
    %v4671 = vpop.xlane.xlu0 %4670
    %v4672 = vsel %vm267, %v4622, 0.0
    %4673 = vadd.xlane.f32.xlu0 %v4672
    %v4674 = vpop.xlane.xlu0 %4673
    %v4675 = vsel %vm267, %v4624, 0.0
    %4676 = vadd.xlane.f32.xlu0 %v4675
    %v4677 = vpop.xlane.xlu0 %4676
    %v4678 = vsel %vm267, %v4626, 0.0
    %4679 = vadd.xlane.f32.xlu0 %v4678
    %v4680 = vpop.xlane.xlu0 %4679
    %v4681 = vsel %vm267, %v4628, 0.0
    %4682 = vadd.xlane.f32.xlu0 %v4681
    %v4683 = vpop.xlane.xlu0 %4682
    %v4684 = vsel %vm267, %v4630, 0.0
    %4685 = vadd.xlane.f32.xlu0 %v4684
    %v4686 = vpop.xlane.xlu0 %4685
    %v4687 = vsel %vm267, %v4632, 0.0
    %4688 = vadd.xlane.f32.xlu0 %v4687
    %v4689 = vpop.xlane.xlu0 %4688
    %v4690 = vsel %vm267, %v4634, 0.0
    %4691 = vadd.xlane.f32.xlu0 %v4690
    %v4692 = vpop.xlane.xlu0 %4691
    %v4693 = vsel %vm267, %v4636, 0.0
    %4694 = vadd.xlane.f32.xlu0 %v4693
    %v4695 = vpop.xlane.xlu0 %4694
    %v4696 = vsel %vm267, %v4638, 0.0
    %4697 = vadd.xlane.f32.xlu0 %v4696
    %v4698 = vpop.xlane.xlu0 %4697
    %v4699 = vsel %vm267, %v4640, 0.0
    %4700 = vadd.xlane.f32.xlu0 %v4699
    %v4701 = vpop.xlane.xlu0 %4700
    %v4702 = vsel %vm267, %v4642, 0.0
    %4703 = vadd.xlane.f32.xlu0 %v4702
    %v4704 = vpop.xlane.xlu0 %4703
    %v4705 = vsel %vm267, %v4644, 0.0
    %4706 = vadd.xlane.f32.xlu0 %v4705
    %v4707 = vpop.xlane.xlu0 %4706
    %v4708 = vsel %vm267, %v4646, 0.0
    %4709 = vadd.xlane.f32.xlu0 %v4708
    %v4710 = vpop.xlane.xlu0 %4709
    %v4711 = vadd.f32 %v4665, 1e-12
    %v4712 = vadd.f32 %v4668, 1e-12
    %v4713 = vadd.f32 %v4671, 1e-12
    %v4714 = vadd.f32 %v4674, 1e-12
    %v4715 = vadd.f32 %v4677, 1e-12
    %v4716 = vadd.f32 %v4680, 1e-12
    %v4717 = vadd.f32 %v4683, 1e-12
    %v4718 = vadd.f32 %v4686, 1e-12
    %v4719 = vadd.f32 %v4689, 1e-12
    %v4720 = vadd.f32 %v4692, 1e-12
    %v4721 = vadd.f32 %v4695, 1e-12
    %v4722 = vadd.f32 %v4698, 1e-12
    %v4723 = vadd.f32 %v4701, 1e-12
    %v4724 = vadd.f32 %v4704, 1e-12
    %v4725 = vadd.f32 %v4707, 1e-12
    %v4726 = vadd.f32 %v4710, 1e-12
    %v4727 = vrsqrt.pop %v4711
    %v4728 = vrsqrt.pop %v4712
    %v4729 = vrsqrt.pop %v4713
    %v4730 = vrsqrt.pop %v4714
    %v4731 = vrsqrt.pop %v4715
    %v4732 = vrsqrt.pop %v4716
    %v4733 = vrsqrt.pop %v4717
    %v4734 = vrsqrt.pop %v4718
    %v4735 = vrsqrt.pop %v4719
    %v4736 = vrsqrt.pop %v4720
    %v4737 = vrsqrt.pop %v4721
    %v4738 = vrsqrt.pop %v4722
    %v4739 = vrsqrt.pop %v4723
    %v4740 = vrsqrt.pop %v4724
    %v4741 = vrsqrt.pop %v4725
    %v4742 = vrsqrt.pop %v4726
    %v4743 = vmul.f32 %v189, %v4727
    %v4744 = vmul.f32 %v192, %v4728
    %v4745 = vmul.f32 %v197, %v4729
    %v4746 = vmul.f32 %v200, %v4730
    %v4747 = vmul.f32 %v205, %v4731
    %v4748 = vmul.f32 %v208, %v4732
    %v4749 = vmul.f32 %v213, %v4733
    %v4750 = vmul.f32 %v216, %v4734
    %v4751 = vmul.f32 %v221, %v4735
    %v4752 = vmul.f32 %v224, %v4736
    %v4753 = vmul.f32 %v229, %v4737
    %v4754 = vmul.f32 %v232, %v4738
    %v4755 = vmul.f32 %v237, %v4739
    %v4756 = vmul.f32 %v240, %v4740
    %v4757 = vmul.f32 %v245, %v4741
    %v4758 = vmul.f32 %v248, %v4742
    %4759 = vrot.lane.b32.xlu0 %v251, 72
    %v4760 = vpop.permute.xlu0 %4759
    %4761 = vrot.lane.b32.xlu0 %v252, 72
    %v4762 = vpop.permute.xlu0 %4761
    %4763 = vrot.lane.b32.xlu0 %v253, 72
    %v4764 = vpop.permute.xlu0 %4763
    %4765 = vrot.lane.b32.xlu0 %v254, 72
    %v4766 = vpop.permute.xlu0 %4765
    %4767 = vrot.lane.b32.xlu0 %v255, 72
    %v4768 = vpop.permute.xlu0 %4767
    %4769 = vrot.lane.b32.xlu0 %v256, 72
    %v4770 = vpop.permute.xlu0 %4769
    %4771 = vrot.lane.b32.xlu0 %v257, 72
    %v4772 = vpop.permute.xlu0 %4771
    %4773 = vrot.lane.b32.xlu0 %v258, 72
    %v4774 = vpop.permute.xlu0 %4773
    %4775 = vrot.lane.b32.xlu0 %v259, 72
    %v4776 = vpop.permute.xlu0 %4775
    %4777 = vrot.lane.b32.xlu0 %v260, 72
    %v4778 = vpop.permute.xlu0 %4777
    %4779 = vrot.lane.b32.xlu0 %v261, 72
    %v4780 = vpop.permute.xlu0 %4779
    %4781 = vrot.lane.b32.xlu0 %v262, 72
    %v4782 = vpop.permute.xlu0 %4781
    %4783 = vrot.lane.b32.xlu0 %v263, 72
    %v4784 = vpop.permute.xlu0 %4783
    %4785 = vrot.lane.b32.xlu0 %v264, 72
    %v4786 = vpop.permute.xlu0 %4785
    %4787 = vrot.lane.b32.xlu0 %v265, 72
    %v4788 = vpop.permute.xlu0 %4787
    %4789 = vrot.lane.b32.xlu0 %v266, 72
    %v4790 = vpop.permute.xlu0 %4789
    %v4807 = vsel %vm267, %v4760, 0.0
    %4808 = vadd.xlane.f32.xlu0 %v4807
    %v4809 = vpop.xlane.xlu0 %4808
    %v4810 = vsel %vm267, %v4762, 0.0
    %4811 = vadd.xlane.f32.xlu0 %v4810
    %v4812 = vpop.xlane.xlu0 %4811
    %v4813 = vsel %vm267, %v4764, 0.0
    %4814 = vadd.xlane.f32.xlu0 %v4813
    %v4815 = vpop.xlane.xlu0 %4814
    %v4816 = vsel %vm267, %v4766, 0.0
    %4817 = vadd.xlane.f32.xlu0 %v4816
    %v4818 = vpop.xlane.xlu0 %4817
    %v4819 = vsel %vm267, %v4768, 0.0
    %4820 = vadd.xlane.f32.xlu0 %v4819
    %v4821 = vpop.xlane.xlu0 %4820
    %v4822 = vsel %vm267, %v4770, 0.0
    %4823 = vadd.xlane.f32.xlu0 %v4822
    %v4824 = vpop.xlane.xlu0 %4823
    %v4825 = vsel %vm267, %v4772, 0.0
    %4826 = vadd.xlane.f32.xlu0 %v4825
    %v4827 = vpop.xlane.xlu0 %4826
    %v4828 = vsel %vm267, %v4774, 0.0
    %4829 = vadd.xlane.f32.xlu0 %v4828
    %v4830 = vpop.xlane.xlu0 %4829
    %v4831 = vsel %vm267, %v4776, 0.0
    %4832 = vadd.xlane.f32.xlu0 %v4831
    %v4833 = vpop.xlane.xlu0 %4832
    %v4834 = vsel %vm267, %v4778, 0.0
    %4835 = vadd.xlane.f32.xlu0 %v4834
    %v4836 = vpop.xlane.xlu0 %4835
    %v4837 = vsel %vm267, %v4780, 0.0
    %4838 = vadd.xlane.f32.xlu0 %v4837
    %v4839 = vpop.xlane.xlu0 %4838
    %v4840 = vsel %vm267, %v4782, 0.0
    %4841 = vadd.xlane.f32.xlu0 %v4840
    %v4842 = vpop.xlane.xlu0 %4841
    %v4843 = vsel %vm267, %v4784, 0.0
    %4844 = vadd.xlane.f32.xlu0 %v4843
    %v4845 = vpop.xlane.xlu0 %4844
    %v4846 = vsel %vm267, %v4786, 0.0
    %4847 = vadd.xlane.f32.xlu0 %v4846
    %v4848 = vpop.xlane.xlu0 %4847
    %v4849 = vsel %vm267, %v4788, 0.0
    %4850 = vadd.xlane.f32.xlu0 %v4849
    %v4851 = vpop.xlane.xlu0 %4850
    %v4852 = vsel %vm267, %v4790, 0.0
    %4853 = vadd.xlane.f32.xlu0 %v4852
    %v4854 = vpop.xlane.xlu0 %4853
    %v4855 = vadd.f32 %v4809, 1e-12
    %v4856 = vadd.f32 %v4812, 1e-12
    %v4857 = vadd.f32 %v4815, 1e-12
    %v4858 = vadd.f32 %v4818, 1e-12
    %v4859 = vadd.f32 %v4821, 1e-12
    %v4860 = vadd.f32 %v4824, 1e-12
    %v4861 = vadd.f32 %v4827, 1e-12
    %v4862 = vadd.f32 %v4830, 1e-12
    %v4863 = vadd.f32 %v4833, 1e-12
    %v4864 = vadd.f32 %v4836, 1e-12
    %v4865 = vadd.f32 %v4839, 1e-12
    %v4866 = vadd.f32 %v4842, 1e-12
    %v4867 = vadd.f32 %v4845, 1e-12
    %v4868 = vadd.f32 %v4848, 1e-12
    %v4869 = vadd.f32 %v4851, 1e-12
    %v4870 = vadd.f32 %v4854, 1e-12
    %v4871 = vrsqrt.pop %v4855
    %v4872 = vrsqrt.pop %v4856
    %v4873 = vrsqrt.pop %v4857
    %v4874 = vrsqrt.pop %v4858
    %v4875 = vrsqrt.pop %v4859
    %v4876 = vrsqrt.pop %v4860
    %v4877 = vrsqrt.pop %v4861
    %v4878 = vrsqrt.pop %v4862
    %v4879 = vrsqrt.pop %v4863
    %v4880 = vrsqrt.pop %v4864
    %v4881 = vrsqrt.pop %v4865
    %v4882 = vrsqrt.pop %v4866
    %v4883 = vrsqrt.pop %v4867
    %v4884 = vrsqrt.pop %v4868
    %v4885 = vrsqrt.pop %v4869
    %v4886 = vrsqrt.pop %v4870
    %v4887 = vmul.f32 %v189, %v4871
    %v4888 = vmul.f32 %v192, %v4872
    %v4889 = vmul.f32 %v197, %v4873
    %v4890 = vmul.f32 %v200, %v4874
    %v4891 = vmul.f32 %v205, %v4875
    %v4892 = vmul.f32 %v208, %v4876
    %v4893 = vmul.f32 %v213, %v4877
    %v4894 = vmul.f32 %v216, %v4878
    %v4895 = vmul.f32 %v221, %v4879
    %v4896 = vmul.f32 %v224, %v4880
    %v4897 = vmul.f32 %v229, %v4881
    %v4898 = vmul.f32 %v232, %v4882
    %v4899 = vmul.f32 %v237, %v4883
    %v4900 = vmul.f32 %v240, %v4884
    %v4901 = vmul.f32 %v245, %v4885
    %v4902 = vmul.f32 %v248, %v4886
    %s4903 = sld [smem:[#allocation9 + $0x3]]
    %v4904 = vstv %s4903
    %v4905 = vmul.f32 %v4743, %v4904
    %v4906 = vmul.f32 %v4744, %v4904
    %v4907 = vmul.f32 %v4745, %v4904
    %v4908 = vmul.f32 %v4746, %v4904
    %v4909 = vmul.f32 %v4747, %v4904
    %v4910 = vmul.f32 %v4748, %v4904
    %v4911 = vmul.f32 %v4749, %v4904
    %v4912 = vmul.f32 %v4750, %v4904
    %v4913 = vmul.f32 %v4751, %v4904
    %v4914 = vmul.f32 %v4752, %v4904
    %v4915 = vmul.f32 %v4753, %v4904
    %v4916 = vmul.f32 %v4754, %v4904
    %v4917 = vmul.f32 %v4755, %v4904
    %v4918 = vmul.f32 %v4756, %v4904
    %v4919 = vmul.f32 %v4757, %v4904
    %v4920 = vmul.f32 %v4758, %v4904
    %v4921 = vpack.c.bf16 %v4906, %v4905
    %v4922 = vpack.c.bf16 %v4908, %v4907
    %v4923 = vpack.c.bf16 %v4910, %v4909
    %v4924 = vpack.c.bf16 %v4912, %v4911
    %v4925 = vpack.c.bf16 %v4914, %v4913
    %v4926 = vpack.c.bf16 %v4916, %v4915
    %v4927 = vpack.c.bf16 %v4918, %v4917
    %v4928 = vpack.c.bf16 %v4920, %v4919
    %v4929 = vpack.c.bf16 %v4888, %v4887
    %v4930 = vpack.c.bf16 %v4890, %v4889
    %v4931 = vpack.c.bf16 %v4892, %v4891
    %v4932 = vpack.c.bf16 %v4894, %v4893
    %v4933 = vpack.c.bf16 %v4896, %v4895
    %v4934 = vpack.c.bf16 %v4898, %v4897
    %v4935 = vpack.c.bf16 %v4900, %v4899
    %v4936 = vpack.c.bf16 %v4902, %v4901
    %s4937 = scalar_lea.vmem [#allocation6], 48
    %v4938 = vld [vmem:[%s4937] sm:$0xff]
    %v4939 = vld [vmem:[%s4937 + $0x8] sm:$0xff]
    %v4940 = vld [vmem:[%s4937 + $0x40] sm:$0xff]
    %v4941 = vld [vmem:[%s4937 + $0x48] sm:$0xff]
    %v4942 = vld [vmem:[%s4937 + $0x80] sm:$0xff]
    %v4943 = vld [vmem:[%s4937 + $0x88] sm:$0xff]
    %v4944 = vld [vmem:[%s4937 + $0xc0] sm:$0xff]
    %v4945 = vld [vmem:[%s4937 + $0xc8] sm:$0xff]
    %v4946 = vld [vmem:[%s4937 + $0x100] sm:$0xff]
    %v4947 = vld [vmem:[%s4937 + $0x108] sm:$0xff]
    %v4948 = vld [vmem:[%s4937 + $0x140] sm:$0xff]
    %v4949 = vld [vmem:[%s4937 + $0x148] sm:$0xff]
    %v4950 = vld [vmem:[%s4937 + $0x180] sm:$0xff]
    %v4951 = vld [vmem:[%s4937 + $0x188] sm:$0xff]
    %v4952 = vld [vmem:[%s4937 + $0x1c0] sm:$0xff]
    %v4953 = vld [vmem:[%s4937 + $0x1c8] sm:$0xff]
    %4955 = vrot.lane.b32.xlu0 %v4921, 104
    %v4956 = vpop.permute.xlu0 %4955
    %4958 = vrot.lane.b32.xlu0 %v4929, 72
    %v4959 = vpop.permute.xlu0 %4958
    %v4961 = vsel %vm267, %v4956, 0
    %v4964 = vsel %vm267, %v4959, 0
    %4966 = vmatprep.subr.bf16.mxu0 0
    %4967 = vmatpush1.bf16.xpose.msra.mxu0 %v4964
    %4968 = vmatprep.subr.bf16.mxu0 0
    %4969 = vmatpush1.bf16.xpose.msra.mxu0 0
    %4970 = vmatprep.subr.bf16.mxu0 0
    %4971 = vmatpush1.bf16.xpose.msra.mxu0 0
    %4972 = vmatprep.subr.bf16.mxu0 0
    %4973 = vmatpush1.bf16.xpose.msra.mxu0 0
    %4974 = vmatprep.subr.bf16.mxu0 0
    %4975 = vmatpush1.bf16.xpose.msra.mxu0 0
    %4976 = vmatprep.subr.bf16.mxu0 0
    %4977 = vmatpush1.bf16.xpose.msra.mxu0 0
    %4978 = vmatprep.subr.bf16.mxu0 0
    %4979 = vmatpush1.bf16.xpose.msra.mxu0 0
    %4980 = vmatprep.subr.bf16.mxu0 0
    %4981 = vmatpush1.bf16.xpose.msra.mxu0 0
    %4982 = vmatprep.subr.bf16.mxu0 0
    %4983 = vmatpush1.bf16.xpose.msra.mxu0 0
    %4984 = vmatprep.subr.bf16.mxu0 0
    %4985 = vmatpush1.bf16.xpose.msra.mxu0 0
    %4986 = vmatprep.subr.bf16.mxu0 0
    %4987 = vmatpush1.bf16.xpose.msra.mxu0 0
    %4988 = vmatprep.subr.bf16.mxu0 0
    %4989 = vmatpush1.bf16.xpose.msra.mxu0 0
    %4990 = vmatprep.subr.bf16.mxu0 0
    %4991 = vmatpush1.bf16.xpose.msra.mxu0 0
    %4992 = vmatprep.subr.bf16.mxu0 0
    %4993 = vmatpush1.bf16.xpose.msra.mxu0 0
    %4994 = vmatprep.subr.bf16.mxu0 0
    %4995 = vmatpush1.bf16.xpose.msra.mxu0 0
    %4996 = vmatprep.subr.bf16.mxu0 0
    %4997 = vmatpush1.bf16.xpose.msra.mxu0 0
    %4998 = vmatprep.mubr.bf16.mxu0 0
    %4999 = vmatmul.mubr.bf16.gmra.mrb[0].mxu0 %v4961
    %v5000 = vpop.f32.mrb[0].mxu0
    %v5001 = vadd.f32 %v4938, %v5000
    %v5002 = vpop.f32.mrb[0].mxu0
    %v5003 = vpop.f32.mrb[0].mxu0
    %v5004 = vadd.f32 %v4939, %v5003
    %v5005 = vpop.f32.mrb[0].mxu0
    %5006 = vdwg.mxu0
    %5008 = vrot.lane.b32.xlu0 %v4922, 104
    %v5009 = vpop.permute.xlu0 %5008
    %5011 = vrot.lane.b32.xlu0 %v4930, 72
    %v5012 = vpop.permute.xlu0 %5011
    %v5014 = vsel %vm267, %v5009, 0
    %v5017 = vsel %vm267, %v5012, 0
    %5019 = vmatprep.subr.bf16.mxu0 0
    %5020 = vmatpush1.bf16.xpose.msra.mxu0 %v5017
    %5021 = vmatprep.subr.bf16.mxu0 0
    %5022 = vmatpush1.bf16.xpose.msra.mxu0 0
    %5023 = vmatprep.subr.bf16.mxu0 0
    %5024 = vmatpush1.bf16.xpose.msra.mxu0 0
    %5025 = vmatprep.subr.bf16.mxu0 0
    %5026 = vmatpush1.bf16.xpose.msra.mxu0 0
    %5027 = vmatprep.subr.bf16.mxu0 0
    %5028 = vmatpush1.bf16.xpose.msra.mxu0 0
    %5029 = vmatprep.subr.bf16.mxu0 0
    %5030 = vmatpush1.bf16.xpose.msra.mxu0 0
    %5031 = vmatprep.subr.bf16.mxu0 0
    %5032 = vmatpush1.bf16.xpose.msra.mxu0 0
    %5033 = vmatprep.subr.bf16.mxu0 0
    %5034 = vmatpush1.bf16.xpose.msra.mxu0 0
    %5035 = vmatprep.subr.bf16.mxu0 0
    %5036 = vmatpush1.bf16.xpose.msra.mxu0 0
    %5037 = vmatprep.subr.bf16.mxu0 0
    %5038 = vmatpush1.bf16.xpose.msra.mxu0 0
    %5039 = vmatprep.subr.bf16.mxu0 0
    %5040 = vmatpush1.bf16.xpose.msra.mxu0 0
    %5041 = vmatprep.subr.bf16.mxu0 0
    %5042 = vmatpush1.bf16.xpose.msra.mxu0 0
    %5043 = vmatprep.subr.bf16.mxu0 0
    %5044 = vmatpush1.bf16.xpose.msra.mxu0 0
    %5045 = vmatprep.subr.bf16.mxu0 0
    %5046 = vmatpush1.bf16.xpose.msra.mxu0 0
    %5047 = vmatprep.subr.bf16.mxu0 0
    %5048 = vmatpush1.bf16.xpose.msra.mxu0 0
    %5049 = vmatprep.subr.bf16.mxu0 0
    %5050 = vmatpush1.bf16.xpose.msra.mxu0 0
    %5051 = vmatprep.mubr.bf16.mxu0 0
    %5052 = vmatmul.mubr.bf16.gmra.mrb[0].mxu0 %v5014
    %v5053 = vpop.f32.mrb[0].mxu0
    %v5054 = vadd.f32 %v4940, %v5053
    %v5055 = vpop.f32.mrb[0].mxu0
    %v5056 = vpop.f32.mrb[0].mxu0
    %v5057 = vadd.f32 %v4941, %v5056
    %v5058 = vpop.f32.mrb[0].mxu0
    %5059 = vdwg.mxu0
    %5061 = vrot.lane.b32.xlu0 %v4923, 104
    %v5062 = vpop.permute.xlu0 %5061
    %5064 = vrot.lane.b32.xlu0 %v4931, 72
    %v5065 = vpop.permute.xlu0 %5064
    %v5067 = vsel %vm267, %v5062, 0
    %v5070 = vsel %vm267, %v5065, 0
    %5072 = vmatprep.subr.bf16.mxu0 0
    %5073 = vmatpush1.bf16.xpose.msra.mxu0 %v5070
    %5074 = vmatprep.subr.bf16.mxu0 0
    %5075 = vmatpush1.bf16.xpose.msra.mxu0 0
    %5076 = vmatprep.subr.bf16.mxu0 0
    %5077 = vmatpush1.bf16.xpose.msra.mxu0 0
    %5078 = vmatprep.subr.bf16.mxu0 0
    %5079 = vmatpush1.bf16.xpose.msra.mxu0 0
    %5080 = vmatprep.subr.bf16.mxu0 0
    %5081 = vmatpush1.bf16.xpose.msra.mxu0 0
    %5082 = vmatprep.subr.bf16.mxu0 0
    %5083 = vmatpush1.bf16.xpose.msra.mxu0 0
    %5084 = vmatprep.subr.bf16.mxu0 0
    %5085 = vmatpush1.bf16.xpose.msra.mxu0 0
    %5086 = vmatprep.subr.bf16.mxu0 0
    %5087 = vmatpush1.bf16.xpose.msra.mxu0 0
    %5088 = vmatprep.subr.bf16.mxu0 0
    %5089 = vmatpush1.bf16.xpose.msra.mxu0 0
    %5090 = vmatprep.subr.bf16.mxu0 0
    %5091 = vmatpush1.bf16.xpose.msra.mxu0 0
    %5092 = vmatprep.subr.bf16.mxu0 0
    %5093 = vmatpush1.bf16.xpose.msra.mxu0 0
    %5094 = vmatprep.subr.bf16.mxu0 0
    %5095 = vmatpush1.bf16.xpose.msra.mxu0 0
    %5096 = vmatprep.subr.bf16.mxu0 0
    %5097 = vmatpush1.bf16.xpose.msra.mxu0 0
    %5098 = vmatprep.subr.bf16.mxu0 0
    %5099 = vmatpush1.bf16.xpose.msra.mxu0 0
    %5100 = vmatprep.subr.bf16.mxu0 0
    %5101 = vmatpush1.bf16.xpose.msra.mxu0 0
    %5102 = vmatprep.subr.bf16.mxu0 0
    %5103 = vmatpush1.bf16.xpose.msra.mxu0 0
    %5104 = vmatprep.mubr.bf16.mxu0 0
    %5105 = vmatmul.mubr.bf16.gmra.mrb[0].mxu0 %v5067
    %v5106 = vpop.f32.mrb[0].mxu0
    %v5107 = vadd.f32 %v4942, %v5106
    %v5108 = vpop.f32.mrb[0].mxu0
    %v5109 = vpop.f32.mrb[0].mxu0
    %v5110 = vadd.f32 %v4943, %v5109
    %v5111 = vpop.f32.mrb[0].mxu0
    %5112 = vdwg.mxu0
    %5114 = vrot.lane.b32.xlu0 %v4924, 104
    %v5115 = vpop.permute.xlu0 %5114
    %5117 = vrot.lane.b32.xlu0 %v4932, 72
    %v5118 = vpop.permute.xlu0 %5117
    %v5120 = vsel %vm267, %v5115, 0
    %v5123 = vsel %vm267, %v5118, 0
    %5125 = vmatprep.subr.bf16.mxu0 0
    %5126 = vmatpush1.bf16.xpose.msra.mxu0 %v5123
    %5127 = vmatprep.subr.bf16.mxu0 0
    %5128 = vmatpush1.bf16.xpose.msra.mxu0 0
    %5129 = vmatprep.subr.bf16.mxu0 0
    %5130 = vmatpush1.bf16.xpose.msra.mxu0 0
    %5131 = vmatprep.subr.bf16.mxu0 0
    %5132 = vmatpush1.bf16.xpose.msra.mxu0 0
    %5133 = vmatprep.subr.bf16.mxu0 0
    %5134 = vmatpush1.bf16.xpose.msra.mxu0 0
    %5135 = vmatprep.subr.bf16.mxu0 0
    %5136 = vmatpush1.bf16.xpose.msra.mxu0 0
    %5137 = vmatprep.subr.bf16.mxu0 0
    %5138 = vmatpush1.bf16.xpose.msra.mxu0 0
    %5139 = vmatprep.subr.bf16.mxu0 0
    %5140 = vmatpush1.bf16.xpose.msra.mxu0 0
    %5141 = vmatprep.subr.bf16.mxu0 0
    %5142 = vmatpush1.bf16.xpose.msra.mxu0 0
    %5143 = vmatprep.subr.bf16.mxu0 0
    %5144 = vmatpush1.bf16.xpose.msra.mxu0 0
    %5145 = vmatprep.subr.bf16.mxu0 0
    %5146 = vmatpush1.bf16.xpose.msra.mxu0 0
    %5147 = vmatprep.subr.bf16.mxu0 0
    %5148 = vmatpush1.bf16.xpose.msra.mxu0 0
    %5149 = vmatprep.subr.bf16.mxu0 0
    %5150 = vmatpush1.bf16.xpose.msra.mxu0 0
    %5151 = vmatprep.subr.bf16.mxu0 0
    %5152 = vmatpush1.bf16.xpose.msra.mxu0 0
    %5153 = vmatprep.subr.bf16.mxu0 0
    %5154 = vmatpush1.bf16.xpose.msra.mxu0 0
    %5155 = vmatprep.subr.bf16.mxu0 0
    %5156 = vmatpush1.bf16.xpose.msra.mxu0 0
    %5157 = vmatprep.mubr.bf16.mxu0 0
    %5158 = vmatmul.mubr.bf16.gmra.mrb[0].mxu0 %v5120
    %v5159 = vpop.f32.mrb[0].mxu0
    %v5160 = vadd.f32 %v4944, %v5159
    %v5161 = vpop.f32.mrb[0].mxu0
    %v5162 = vpop.f32.mrb[0].mxu0
    %v5163 = vadd.f32 %v4945, %v5162
    %v5164 = vpop.f32.mrb[0].mxu0
    %5165 = vdwg.mxu0
    %5167 = vrot.lane.b32.xlu0 %v4925, 104
    %v5168 = vpop.permute.xlu0 %5167
    %5170 = vrot.lane.b32.xlu0 %v4933, 72
    %v5171 = vpop.permute.xlu0 %5170
    %v5173 = vsel %vm267, %v5168, 0
    %v5176 = vsel %vm267, %v5171, 0
    %5178 = vmatprep.subr.bf16.mxu0 0
    %5179 = vmatpush1.bf16.xpose.msra.mxu0 %v5176
    %5180 = vmatprep.subr.bf16.mxu0 0
    %5181 = vmatpush1.bf16.xpose.msra.mxu0 0
    %5182 = vmatprep.subr.bf16.mxu0 0
    %5183 = vmatpush1.bf16.xpose.msra.mxu0 0
    %5184 = vmatprep.subr.bf16.mxu0 0
    %5185 = vmatpush1.bf16.xpose.msra.mxu0 0
    %5186 = vmatprep.subr.bf16.mxu0 0
    %5187 = vmatpush1.bf16.xpose.msra.mxu0 0
    %5188 = vmatprep.subr.bf16.mxu0 0
    %5189 = vmatpush1.bf16.xpose.msra.mxu0 0
    %5190 = vmatprep.subr.bf16.mxu0 0
    %5191 = vmatpush1.bf16.xpose.msra.mxu0 0
    %5192 = vmatprep.subr.bf16.mxu0 0
    %5193 = vmatpush1.bf16.xpose.msra.mxu0 0
    %5194 = vmatprep.subr.bf16.mxu0 0
    %5195 = vmatpush1.bf16.xpose.msra.mxu0 0
    %5196 = vmatprep.subr.bf16.mxu0 0
    %5197 = vmatpush1.bf16.xpose.msra.mxu0 0
    %5198 = vmatprep.subr.bf16.mxu0 0
    %5199 = vmatpush1.bf16.xpose.msra.mxu0 0
    %5200 = vmatprep.subr.bf16.mxu0 0
    %5201 = vmatpush1.bf16.xpose.msra.mxu0 0
    %5202 = vmatprep.subr.bf16.mxu0 0
    %5203 = vmatpush1.bf16.xpose.msra.mxu0 0
    %5204 = vmatprep.subr.bf16.mxu0 0
    %5205 = vmatpush1.bf16.xpose.msra.mxu0 0
    %5206 = vmatprep.subr.bf16.mxu0 0
    %5207 = vmatpush1.bf16.xpose.msra.mxu0 0
    %5208 = vmatprep.subr.bf16.mxu0 0
    %5209 = vmatpush1.bf16.xpose.msra.mxu0 0
    %5210 = vmatprep.mubr.bf16.mxu0 0
    %5211 = vmatmul.mubr.bf16.gmra.mrb[0].mxu0 %v5173
    %v5212 = vpop.f32.mrb[0].mxu0
    %v5213 = vadd.f32 %v4946, %v5212
    %v5214 = vpop.f32.mrb[0].mxu0
    %v5215 = vpop.f32.mrb[0].mxu0
    %v5216 = vadd.f32 %v4947, %v5215
    %v5217 = vpop.f32.mrb[0].mxu0
    %5218 = vdwg.mxu0
    %5220 = vrot.lane.b32.xlu0 %v4926, 104
    %v5221 = vpop.permute.xlu0 %5220
    %5223 = vrot.lane.b32.xlu0 %v4934, 72
    %v5224 = vpop.permute.xlu0 %5223
    %v5226 = vsel %vm267, %v5221, 0
    %v5229 = vsel %vm267, %v5224, 0
    %5231 = vmatprep.subr.bf16.mxu0 0
    %5232 = vmatpush1.bf16.xpose.msra.mxu0 %v5229
    %5233 = vmatprep.subr.bf16.mxu0 0
    %5234 = vmatpush1.bf16.xpose.msra.mxu0 0
    %5235 = vmatprep.subr.bf16.mxu0 0
    %5236 = vmatpush1.bf16.xpose.msra.mxu0 0
    %5237 = vmatprep.subr.bf16.mxu0 0
    %5238 = vmatpush1.bf16.xpose.msra.mxu0 0
    %5239 = vmatprep.subr.bf16.mxu0 0
    %5240 = vmatpush1.bf16.xpose.msra.mxu0 0
    %5241 = vmatprep.subr.bf16.mxu0 0
    %5242 = vmatpush1.bf16.xpose.msra.mxu0 0
    %5243 = vmatprep.subr.bf16.mxu0 0
    %5244 = vmatpush1.bf16.xpose.msra.mxu0 0
    %5245 = vmatprep.subr.bf16.mxu0 0
    %5246 = vmatpush1.bf16.xpose.msra.mxu0 0
    %5247 = vmatprep.subr.bf16.mxu0 0
    %5248 = vmatpush1.bf16.xpose.msra.mxu0 0
    %5249 = vmatprep.subr.bf16.mxu0 0
    %5250 = vmatpush1.bf16.xpose.msra.mxu0 0
    %5251 = vmatprep.subr.bf16.mxu0 0
    %5252 = vmatpush1.bf16.xpose.msra.mxu0 0
    %5253 = vmatprep.subr.bf16.mxu0 0
    %5254 = vmatpush1.bf16.xpose.msra.mxu0 0
    %5255 = vmatprep.subr.bf16.mxu0 0
    %5256 = vmatpush1.bf16.xpose.msra.mxu0 0
    %5257 = vmatprep.subr.bf16.mxu0 0
    %5258 = vmatpush1.bf16.xpose.msra.mxu0 0
    %5259 = vmatprep.subr.bf16.mxu0 0
    %5260 = vmatpush1.bf16.xpose.msra.mxu0 0
    %5261 = vmatprep.subr.bf16.mxu0 0
    %5262 = vmatpush1.bf16.xpose.msra.mxu0 0
    %5263 = vmatprep.mubr.bf16.mxu0 0
    %5264 = vmatmul.mubr.bf16.gmra.mrb[0].mxu0 %v5226
    %v5265 = vpop.f32.mrb[0].mxu0
    %v5266 = vadd.f32 %v4948, %v5265
    %v5267 = vpop.f32.mrb[0].mxu0
    %v5268 = vpop.f32.mrb[0].mxu0
    %v5269 = vadd.f32 %v4949, %v5268
    %v5270 = vpop.f32.mrb[0].mxu0
    %5271 = vdwg.mxu0
    %5273 = vrot.lane.b32.xlu0 %v4927, 104
    %v5274 = vpop.permute.xlu0 %5273
    %5276 = vrot.lane.b32.xlu0 %v4935, 72
    %v5277 = vpop.permute.xlu0 %5276
    %v5279 = vsel %vm267, %v5274, 0
    %v5282 = vsel %vm267, %v5277, 0
    %5284 = vmatprep.subr.bf16.mxu0 0
    %5285 = vmatpush1.bf16.xpose.msra.mxu0 %v5282
    %5286 = vmatprep.subr.bf16.mxu0 0
    %5287 = vmatpush1.bf16.xpose.msra.mxu0 0
    %5288 = vmatprep.subr.bf16.mxu0 0
    %5289 = vmatpush1.bf16.xpose.msra.mxu0 0
    %5290 = vmatprep.subr.bf16.mxu0 0
    %5291 = vmatpush1.bf16.xpose.msra.mxu0 0
    %5292 = vmatprep.subr.bf16.mxu0 0
    %5293 = vmatpush1.bf16.xpose.msra.mxu0 0
    %5294 = vmatprep.subr.bf16.mxu0 0
    %5295 = vmatpush1.bf16.xpose.msra.mxu0 0
    %5296 = vmatprep.subr.bf16.mxu0 0
    %5297 = vmatpush1.bf16.xpose.msra.mxu0 0
    %5298 = vmatprep.subr.bf16.mxu0 0
    %5299 = vmatpush1.bf16.xpose.msra.mxu0 0
    %5300 = vmatprep.subr.bf16.mxu0 0
    %5301 = vmatpush1.bf16.xpose.msra.mxu0 0
    %5302 = vmatprep.subr.bf16.mxu0 0
    %5303 = vmatpush1.bf16.xpose.msra.mxu0 0
    %5304 = vmatprep.subr.bf16.mxu0 0
    %5305 = vmatpush1.bf16.xpose.msra.mxu0 0
    %5306 = vmatprep.subr.bf16.mxu0 0
    %5307 = vmatpush1.bf16.xpose.msra.mxu0 0
    %5308 = vmatprep.subr.bf16.mxu0 0
    %5309 = vmatpush1.bf16.xpose.msra.mxu0 0
    %5310 = vmatprep.subr.bf16.mxu0 0
    %5311 = vmatpush1.bf16.xpose.msra.mxu0 0
    %5312 = vmatprep.subr.bf16.mxu0 0
    %5313 = vmatpush1.bf16.xpose.msra.mxu0 0
    %5314 = vmatprep.subr.bf16.mxu0 0
    %5315 = vmatpush1.bf16.xpose.msra.mxu0 0
    %5316 = vmatprep.mubr.bf16.mxu0 0
    %5317 = vmatmul.mubr.bf16.gmra.mrb[0].mxu0 %v5279
    %v5318 = vpop.f32.mrb[0].mxu0
    %v5319 = vadd.f32 %v4950, %v5318
    %v5320 = vpop.f32.mrb[0].mxu0
    %v5321 = vpop.f32.mrb[0].mxu0
    %v5322 = vadd.f32 %v4951, %v5321
    %v5323 = vpop.f32.mrb[0].mxu0
    %5324 = vdwg.mxu0
    %5326 = vrot.lane.b32.xlu0 %v4928, 104
    %v5327 = vpop.permute.xlu0 %5326
    %5329 = vrot.lane.b32.xlu0 %v4936, 72
    %v5330 = vpop.permute.xlu0 %5329
    %v5332 = vsel %vm267, %v5327, 0
    %v5335 = vsel %vm267, %v5330, 0
    %5337 = vmatprep.subr.bf16.mxu0 0
    %5338 = vmatpush1.bf16.xpose.msra.mxu0 %v5335
    %5339 = vmatprep.subr.bf16.mxu0 0
    %5340 = vmatpush1.bf16.xpose.msra.mxu0 0
    %5341 = vmatprep.subr.bf16.mxu0 0
    %5342 = vmatpush1.bf16.xpose.msra.mxu0 0
    %5343 = vmatprep.subr.bf16.mxu0 0
    %5344 = vmatpush1.bf16.xpose.msra.mxu0 0
    %5345 = vmatprep.subr.bf16.mxu0 0
    %5346 = vmatpush1.bf16.xpose.msra.mxu0 0
    %5347 = vmatprep.subr.bf16.mxu0 0
    %5348 = vmatpush1.bf16.xpose.msra.mxu0 0
    %5349 = vmatprep.subr.bf16.mxu0 0
    %5350 = vmatpush1.bf16.xpose.msra.mxu0 0
    %5351 = vmatprep.subr.bf16.mxu0 0
    %5352 = vmatpush1.bf16.xpose.msra.mxu0 0
    %5353 = vmatprep.subr.bf16.mxu0 0
    %5354 = vmatpush1.bf16.xpose.msra.mxu0 0
    %5355 = vmatprep.subr.bf16.mxu0 0
    %5356 = vmatpush1.bf16.xpose.msra.mxu0 0
    %5357 = vmatprep.subr.bf16.mxu0 0
    %5358 = vmatpush1.bf16.xpose.msra.mxu0 0
    %5359 = vmatprep.subr.bf16.mxu0 0
    %5360 = vmatpush1.bf16.xpose.msra.mxu0 0
    %5361 = vmatprep.subr.bf16.mxu0 0
    %5362 = vmatpush1.bf16.xpose.msra.mxu0 0
    %5363 = vmatprep.subr.bf16.mxu0 0
    %5364 = vmatpush1.bf16.xpose.msra.mxu0 0
    %5365 = vmatprep.subr.bf16.mxu0 0
    %5366 = vmatpush1.bf16.xpose.msra.mxu0 0
    %5367 = vmatprep.subr.bf16.mxu0 0
    %5368 = vmatpush1.bf16.xpose.msra.mxu0 0
    %5369 = vmatprep.mubr.bf16.mxu0 0
    %5370 = vmatmul.mubr.bf16.gmra.mrb[0].mxu0 %v5332
    %v5371 = vpop.f32.mrb[0].mxu0
    %v5372 = vadd.f32 %v4952, %v5371
    %v5373 = vpop.f32.mrb[0].mxu0
    %v5374 = vpop.f32.mrb[0].mxu0
    %v5375 = vadd.f32 %v4953, %v5374
    %v5376 = vpop.f32.mrb[0].mxu0
    %5377 = vdwg.mxu0
    %v5378 = vsel %vm974, %v5001, -inf
    %5379 = vmax.xlane.f32.xlu0 %v5378
    %v5380 = vpop.xlane.xlu0 %5379
    %v5381 = vsel %vm974, %v5004, -inf
    %5382 = vmax.xlane.f32.xlu0 %v5381
    %v5383 = vpop.xlane.xlu0 %5382
    %v5384 = vsel %vm974, %v5054, -inf
    %5385 = vmax.xlane.f32.xlu0 %v5384
    %v5386 = vpop.xlane.xlu0 %5385
    %v5387 = vsel %vm974, %v5057, -inf
    %5388 = vmax.xlane.f32.xlu0 %v5387
    %v5389 = vpop.xlane.xlu0 %5388
    %v5390 = vsel %vm974, %v5107, -inf
    %5391 = vmax.xlane.f32.xlu0 %v5390
    %v5392 = vpop.xlane.xlu0 %5391
    %v5393 = vsel %vm974, %v5110, -inf
    %5394 = vmax.xlane.f32.xlu0 %v5393
    %v5395 = vpop.xlane.xlu0 %5394
    %v5396 = vsel %vm974, %v5160, -inf
    %5397 = vmax.xlane.f32.xlu0 %v5396
    %v5398 = vpop.xlane.xlu0 %5397
    %v5399 = vsel %vm974, %v5163, -inf
    %5400 = vmax.xlane.f32.xlu0 %v5399
    %v5401 = vpop.xlane.xlu0 %5400
    %v5402 = vsel %vm974, %v5213, -inf
    %5403 = vmax.xlane.f32.xlu0 %v5402
    %v5404 = vpop.xlane.xlu0 %5403
    %v5405 = vsel %vm974, %v5216, -inf
    %5406 = vmax.xlane.f32.xlu0 %v5405
    %v5407 = vpop.xlane.xlu0 %5406
    %v5408 = vsel %vm974, %v5266, -inf
    %5409 = vmax.xlane.f32.xlu0 %v5408
    %v5410 = vpop.xlane.xlu0 %5409
    %v5411 = vsel %vm974, %v5269, -inf
    %5412 = vmax.xlane.f32.xlu0 %v5411
    %v5413 = vpop.xlane.xlu0 %5412
    %v5414 = vsel %vm974, %v5319, -inf
    %5415 = vmax.xlane.f32.xlu0 %v5414
    %v5416 = vpop.xlane.xlu0 %5415
    %v5417 = vsel %vm974, %v5322, -inf
    %5418 = vmax.xlane.f32.xlu0 %v5417
    %v5419 = vpop.xlane.xlu0 %5418
    %v5420 = vsel %vm974, %v5372, -inf
    %5421 = vmax.xlane.f32.xlu0 %v5420
    %v5422 = vpop.xlane.xlu0 %5421
    %v5423 = vsel %vm974, %v5375, -inf
    %5424 = vmax.xlane.f32.xlu0 %v5423
    %v5425 = vpop.xlane.xlu0 %5424
    %v5426 = vsub.f32 %v5001, %v5380
    %v5427 = vsub.f32 %v5004, %v5383
    %v5428 = vsub.f32 %v5054, %v5386
    %v5429 = vsub.f32 %v5057, %v5389
    %v5430 = vsub.f32 %v5107, %v5392
    %v5431 = vsub.f32 %v5110, %v5395
    %v5432 = vsub.f32 %v5160, %v5398
    %v5433 = vsub.f32 %v5163, %v5401
    %v5434 = vsub.f32 %v5213, %v5404
    %v5435 = vsub.f32 %v5216, %v5407
    %v5436 = vsub.f32 %v5266, %v5410
    %v5437 = vsub.f32 %v5269, %v5413
    %v5438 = vsub.f32 %v5319, %v5416
    %v5439 = vsub.f32 %v5322, %v5419
    %v5440 = vsub.f32 %v5372, %v5422
    %v5441 = vsub.f32 %v5375, %v5425
    %v5442 = vmul.f32 %v5426, 1.442695
    %v5443 = vpow.pop %v5442
    %v5444 = vmul.f32 %v5427, 1.442695
    %v5445 = vpow.pop %v5444
    %v5446 = vmul.f32 %v5428, 1.442695
    %v5447 = vpow.pop %v5446
    %v5448 = vmul.f32 %v5429, 1.442695
    %v5449 = vpow.pop %v5448
    %v5450 = vmul.f32 %v5430, 1.442695
    %v5451 = vpow.pop %v5450
    %v5452 = vmul.f32 %v5431, 1.442695
    %v5453 = vpow.pop %v5452
    %v5454 = vmul.f32 %v5432, 1.442695
    %v5455 = vpow.pop %v5454
    %v5456 = vmul.f32 %v5433, 1.442695
    %v5457 = vpow.pop %v5456
    %v5458 = vmul.f32 %v5434, 1.442695
    %v5459 = vpow.pop %v5458
    %v5460 = vmul.f32 %v5435, 1.442695
    %v5461 = vpow.pop %v5460
    %v5462 = vmul.f32 %v5436, 1.442695
    %v5463 = vpow.pop %v5462
    %v5464 = vmul.f32 %v5437, 1.442695
    %v5465 = vpow.pop %v5464
    %v5466 = vmul.f32 %v5438, 1.442695
    %v5467 = vpow.pop %v5466
    %v5468 = vmul.f32 %v5439, 1.442695
    %v5469 = vpow.pop %v5468
    %v5470 = vmul.f32 %v5440, 1.442695
    %v5471 = vpow.pop %v5470
    %v5472 = vmul.f32 %v5441, 1.442695
    %v5473 = vpow.pop %v5472
    %v5474 = vsel %vm974, %v5443, 0.0
    %5475 = vadd.xlane.f32.xlu0 %v5474
    %v5476 = vpop.xlane.xlu0 %5475
    %v5477 = vsel %vm974, %v5445, 0.0
    %5478 = vadd.xlane.f32.xlu0 %v5477
    %v5479 = vpop.xlane.xlu0 %5478
    %v5480 = vsel %vm974, %v5447, 0.0
    %5481 = vadd.xlane.f32.xlu0 %v5480
    %v5482 = vpop.xlane.xlu0 %5481
    %v5483 = vsel %vm974, %v5449, 0.0
    %5484 = vadd.xlane.f32.xlu0 %v5483
    %v5485 = vpop.xlane.xlu0 %5484
    %v5486 = vsel %vm974, %v5451, 0.0
    %5487 = vadd.xlane.f32.xlu0 %v5486
    %v5488 = vpop.xlane.xlu0 %5487
    %v5489 = vsel %vm974, %v5453, 0.0
    %5490 = vadd.xlane.f32.xlu0 %v5489
    %v5491 = vpop.xlane.xlu0 %5490
    %v5492 = vsel %vm974, %v5455, 0.0
    %5493 = vadd.xlane.f32.xlu0 %v5492
    %v5494 = vpop.xlane.xlu0 %5493
    %v5495 = vsel %vm974, %v5457, 0.0
    %5496 = vadd.xlane.f32.xlu0 %v5495
    %v5497 = vpop.xlane.xlu0 %5496
    %v5498 = vsel %vm974, %v5459, 0.0
    %5499 = vadd.xlane.f32.xlu0 %v5498
    %v5500 = vpop.xlane.xlu0 %5499
    %v5501 = vsel %vm974, %v5461, 0.0
    %5502 = vadd.xlane.f32.xlu0 %v5501
    %v5503 = vpop.xlane.xlu0 %5502
    %v5504 = vsel %vm974, %v5463, 0.0
    %5505 = vadd.xlane.f32.xlu0 %v5504
    %v5506 = vpop.xlane.xlu0 %5505
    %v5507 = vsel %vm974, %v5465, 0.0
    %5508 = vadd.xlane.f32.xlu0 %v5507
    %v5509 = vpop.xlane.xlu0 %5508
    %v5510 = vsel %vm974, %v5467, 0.0
    %5511 = vadd.xlane.f32.xlu0 %v5510
    %v5512 = vpop.xlane.xlu0 %5511
    %v5513 = vsel %vm974, %v5469, 0.0
    %5514 = vadd.xlane.f32.xlu0 %v5513
    %v5515 = vpop.xlane.xlu0 %5514
    %v5516 = vsel %vm974, %v5471, 0.0
    %5517 = vadd.xlane.f32.xlu0 %v5516
    %v5518 = vpop.xlane.xlu0 %5517
    %v5519 = vsel %vm974, %v5473, 0.0
    %5520 = vadd.xlane.f32.xlu0 %v5519
    %v5521 = vpop.xlane.xlu0 %5520
    %v5522 = vrcp.pop %v5476
    %v5523 = vrcp.pop %v5479
    %v5524 = vrcp.pop %v5482
    %v5525 = vrcp.pop %v5485
    %v5526 = vrcp.pop %v5488
    %v5527 = vrcp.pop %v5491
    %v5528 = vrcp.pop %v5494
    %v5529 = vrcp.pop %v5497
    %v5530 = vrcp.pop %v5500
    %v5531 = vrcp.pop %v5503
    %v5532 = vrcp.pop %v5506
    %v5533 = vrcp.pop %v5509
    %v5534 = vrcp.pop %v5512
    %v5535 = vrcp.pop %v5515
    %v5536 = vrcp.pop %v5518
    %v5537 = vrcp.pop %v5521
    %v5538 = vmul.f32 %v5443, %v5522
    %v5539 = vmul.f32 %v5445, %v5523
    %v5540 = vmul.f32 %v5447, %v5524
    %v5541 = vmul.f32 %v5449, %v5525
    %v5542 = vmul.f32 %v5451, %v5526
    %v5543 = vmul.f32 %v5453, %v5527
    %v5544 = vmul.f32 %v5455, %v5528
    %v5545 = vmul.f32 %v5457, %v5529
    %v5546 = vmul.f32 %v5459, %v5530
    %v5547 = vmul.f32 %v5461, %v5531
    %v5548 = vmul.f32 %v5463, %v5532
    %v5549 = vmul.f32 %v5465, %v5533
    %v5550 = vmul.f32 %v5467, %v5534
    %v5551 = vmul.f32 %v5469, %v5535
    %v5552 = vmul.f32 %v5471, %v5536
    %v5553 = vmul.f32 %v5473, %v5537
    %v5554 = vpack.c.bf16 %v5539, %v5538
    %v5555 = vpack.c.bf16 %v5541, %v5540
    %v5556 = vpack.c.bf16 %v5543, %v5542
    %v5557 = vpack.c.bf16 %v5545, %v5544
    %v5558 = vpack.c.bf16 %v5547, %v5546
    %v5559 = vpack.c.bf16 %v5549, %v5548
    %v5560 = vpack.c.bf16 %v5551, %v5550
    %v5561 = vpack.c.bf16 %v5553, %v5552
    %5562 = vrot.lane.b32.xlu0 %v1159, 40
    %v5563 = vpop.permute.xlu0 %5562
    %v5566 = vsel %vm974, %v5554, 0
    %5568 = vmatprep.subr.bf16.mxu0 0
    %5569 = vmatpush1.bf16.msra.mxu0 %v5563
    %5570 = vmatprep.subr.bf16.mxu0 0
    %5571 = vmatpush1.bf16.msra.mxu0 0
    %5572 = vmatprep.subr.bf16.mxu0 0
    %5573 = vmatpush1.bf16.msra.mxu0 0
    %5574 = vmatprep.subr.bf16.mxu0 0
    %5575 = vmatpush1.bf16.msra.mxu0 0
    %5576 = vmatprep.subr.bf16.mxu0 0
    %5577 = vmatpush1.bf16.msra.mxu0 0
    %5578 = vmatprep.subr.bf16.mxu0 0
    %5579 = vmatpush1.bf16.msra.mxu0 0
    %5580 = vmatprep.subr.bf16.mxu0 0
    %5581 = vmatpush1.bf16.msra.mxu0 0
    %5582 = vmatprep.subr.bf16.mxu0 0
    %5583 = vmatpush1.bf16.msra.mxu0 0
    %5584 = vmatprep.subr.bf16.mxu0 0
    %5585 = vmatpush1.bf16.msra.mxu0 0
    %5586 = vmatprep.subr.bf16.mxu0 0
    %5587 = vmatpush1.bf16.msra.mxu0 0
    %5588 = vmatprep.subr.bf16.mxu0 0
    %5589 = vmatpush1.bf16.msra.mxu0 0
    %5590 = vmatprep.subr.bf16.mxu0 0
    %5591 = vmatpush1.bf16.msra.mxu0 0
    %5592 = vmatprep.subr.bf16.mxu0 0
    %5593 = vmatpush1.bf16.msra.mxu0 0
    %5594 = vmatprep.subr.bf16.mxu0 0
    %5595 = vmatpush1.bf16.msra.mxu0 0
    %5596 = vmatprep.subr.bf16.mxu0 0
    %5597 = vmatpush1.bf16.msra.mxu0 0
    %5598 = vmatprep.subr.bf16.mxu0 0
    %5599 = vmatpush1.bf16.msra.mxu0 0
    %5600 = vmatprep.mubr.bf16.mxu0 0
    %5601 = vmatmul.mubr.bf16.gmra.mrb[0].mxu0 %v5566
    %v5602 = vpop.f32.mrb[0].mxu0
    %v5603 = vadd.f32 0.0, %v5602
    %v5604 = vpop.f32.mrb[0].mxu0
    %v5605 = vpop.f32.mrb[0].mxu0
    %v5606 = vadd.f32 0.0, %v5605
    %v5607 = vpop.f32.mrb[0].mxu0
    %5608 = vdwg.mxu0
    %5609 = vrot.lane.b32.xlu0 %v1160, 40
    %v5610 = vpop.permute.xlu0 %5609
    %v5613 = vsel %vm974, %v5555, 0
    %5615 = vmatprep.subr.bf16.mxu0 0
    %5616 = vmatpush1.bf16.msra.mxu0 %v5610
    %5617 = vmatprep.subr.bf16.mxu0 0
    %5618 = vmatpush1.bf16.msra.mxu0 0
    %5619 = vmatprep.subr.bf16.mxu0 0
    %5620 = vmatpush1.bf16.msra.mxu0 0
    %5621 = vmatprep.subr.bf16.mxu0 0
    %5622 = vmatpush1.bf16.msra.mxu0 0
    %5623 = vmatprep.subr.bf16.mxu0 0
    %5624 = vmatpush1.bf16.msra.mxu0 0
    %5625 = vmatprep.subr.bf16.mxu0 0
    %5626 = vmatpush1.bf16.msra.mxu0 0
    %5627 = vmatprep.subr.bf16.mxu0 0
    %5628 = vmatpush1.bf16.msra.mxu0 0
    %5629 = vmatprep.subr.bf16.mxu0 0
    %5630 = vmatpush1.bf16.msra.mxu0 0
    %5631 = vmatprep.subr.bf16.mxu0 0
    %5632 = vmatpush1.bf16.msra.mxu0 0
    %5633 = vmatprep.subr.bf16.mxu0 0
    %5634 = vmatpush1.bf16.msra.mxu0 0
    %5635 = vmatprep.subr.bf16.mxu0 0
    %5636 = vmatpush1.bf16.msra.mxu0 0
    %5637 = vmatprep.subr.bf16.mxu0 0
    %5638 = vmatpush1.bf16.msra.mxu0 0
    %5639 = vmatprep.subr.bf16.mxu0 0
    %5640 = vmatpush1.bf16.msra.mxu0 0
    %5641 = vmatprep.subr.bf16.mxu0 0
    %5642 = vmatpush1.bf16.msra.mxu0 0
    %5643 = vmatprep.subr.bf16.mxu0 0
    %5644 = vmatpush1.bf16.msra.mxu0 0
    %5645 = vmatprep.subr.bf16.mxu0 0
    %5646 = vmatpush1.bf16.msra.mxu0 0
    %5647 = vmatprep.mubr.bf16.mxu0 0
    %5648 = vmatmul.mubr.bf16.gmra.mrb[0].mxu0 %v5613
    %v5649 = vpop.f32.mrb[0].mxu0
    %v5650 = vadd.f32 0.0, %v5649
    %v5651 = vpop.f32.mrb[0].mxu0
    %v5652 = vpop.f32.mrb[0].mxu0
    %v5653 = vadd.f32 0.0, %v5652
    %v5654 = vpop.f32.mrb[0].mxu0
    %5655 = vdwg.mxu0
    %5656 = vrot.lane.b32.xlu0 %v1161, 40
    %v5657 = vpop.permute.xlu0 %5656
    %v5660 = vsel %vm974, %v5556, 0
    %5662 = vmatprep.subr.bf16.mxu0 0
    %5663 = vmatpush1.bf16.msra.mxu0 %v5657
    %5664 = vmatprep.subr.bf16.mxu0 0
    %5665 = vmatpush1.bf16.msra.mxu0 0
    %5666 = vmatprep.subr.bf16.mxu0 0
    %5667 = vmatpush1.bf16.msra.mxu0 0
    %5668 = vmatprep.subr.bf16.mxu0 0
    %5669 = vmatpush1.bf16.msra.mxu0 0
    %5670 = vmatprep.subr.bf16.mxu0 0
    %5671 = vmatpush1.bf16.msra.mxu0 0
    %5672 = vmatprep.subr.bf16.mxu0 0
    %5673 = vmatpush1.bf16.msra.mxu0 0
    %5674 = vmatprep.subr.bf16.mxu0 0
    %5675 = vmatpush1.bf16.msra.mxu0 0
    %5676 = vmatprep.subr.bf16.mxu0 0
    %5677 = vmatpush1.bf16.msra.mxu0 0
    %5678 = vmatprep.subr.bf16.mxu0 0
    %5679 = vmatpush1.bf16.msra.mxu0 0
    %5680 = vmatprep.subr.bf16.mxu0 0
    %5681 = vmatpush1.bf16.msra.mxu0 0
    %5682 = vmatprep.subr.bf16.mxu0 0
    %5683 = vmatpush1.bf16.msra.mxu0 0
    %5684 = vmatprep.subr.bf16.mxu0 0
    %5685 = vmatpush1.bf16.msra.mxu0 0
    %5686 = vmatprep.subr.bf16.mxu0 0
    %5687 = vmatpush1.bf16.msra.mxu0 0
    %5688 = vmatprep.subr.bf16.mxu0 0
    %5689 = vmatpush1.bf16.msra.mxu0 0
    %5690 = vmatprep.subr.bf16.mxu0 0
    %5691 = vmatpush1.bf16.msra.mxu0 0
    %5692 = vmatprep.subr.bf16.mxu0 0
    %5693 = vmatpush1.bf16.msra.mxu0 0
    %5694 = vmatprep.mubr.bf16.mxu0 0
    %5695 = vmatmul.mubr.bf16.gmra.mrb[0].mxu0 %v5660
    %v5696 = vpop.f32.mrb[0].mxu0
    %v5697 = vadd.f32 0.0, %v5696
    %v5698 = vpop.f32.mrb[0].mxu0
    %v5699 = vpop.f32.mrb[0].mxu0
    %v5700 = vadd.f32 0.0, %v5699
    %v5701 = vpop.f32.mrb[0].mxu0
    %5702 = vdwg.mxu0
    %5703 = vrot.lane.b32.xlu0 %v1162, 40
    %v5704 = vpop.permute.xlu0 %5703
    %v5707 = vsel %vm974, %v5557, 0
    %5709 = vmatprep.subr.bf16.mxu0 0
    %5710 = vmatpush1.bf16.msra.mxu0 %v5704
    %5711 = vmatprep.subr.bf16.mxu0 0
    %5712 = vmatpush1.bf16.msra.mxu0 0
    %5713 = vmatprep.subr.bf16.mxu0 0
    %5714 = vmatpush1.bf16.msra.mxu0 0
    %5715 = vmatprep.subr.bf16.mxu0 0
    %5716 = vmatpush1.bf16.msra.mxu0 0
    %5717 = vmatprep.subr.bf16.mxu0 0
    %5718 = vmatpush1.bf16.msra.mxu0 0
    %5719 = vmatprep.subr.bf16.mxu0 0
    %5720 = vmatpush1.bf16.msra.mxu0 0
    %5721 = vmatprep.subr.bf16.mxu0 0
    %5722 = vmatpush1.bf16.msra.mxu0 0
    %5723 = vmatprep.subr.bf16.mxu0 0
    %5724 = vmatpush1.bf16.msra.mxu0 0
    %5725 = vmatprep.subr.bf16.mxu0 0
    %5726 = vmatpush1.bf16.msra.mxu0 0
    %5727 = vmatprep.subr.bf16.mxu0 0
    %5728 = vmatpush1.bf16.msra.mxu0 0
    %5729 = vmatprep.subr.bf16.mxu0 0
    %5730 = vmatpush1.bf16.msra.mxu0 0
    %5731 = vmatprep.subr.bf16.mxu0 0
    %5732 = vmatpush1.bf16.msra.mxu0 0
    %5733 = vmatprep.subr.bf16.mxu0 0
    %5734 = vmatpush1.bf16.msra.mxu0 0
    %5735 = vmatprep.subr.bf16.mxu0 0
    %5736 = vmatpush1.bf16.msra.mxu0 0
    %5737 = vmatprep.subr.bf16.mxu0 0
    %5738 = vmatpush1.bf16.msra.mxu0 0
    %5739 = vmatprep.subr.bf16.mxu0 0
    %5740 = vmatpush1.bf16.msra.mxu0 0
    %5741 = vmatprep.mubr.bf16.mxu0 0
    %5742 = vmatmul.mubr.bf16.gmra.mrb[0].mxu0 %v5707
    %v5743 = vpop.f32.mrb[0].mxu0
    %v5744 = vadd.f32 0.0, %v5743
    %v5745 = vpop.f32.mrb[0].mxu0
    %v5746 = vpop.f32.mrb[0].mxu0
    %v5747 = vadd.f32 0.0, %v5746
    %v5748 = vpop.f32.mrb[0].mxu0
    %5749 = vdwg.mxu0
    %5750 = vrot.lane.b32.xlu0 %v1163, 40
    %v5751 = vpop.permute.xlu0 %5750
    %v5754 = vsel %vm974, %v5558, 0
    %5756 = vmatprep.subr.bf16.mxu0 0
    %5757 = vmatpush1.bf16.msra.mxu0 %v5751
    %5758 = vmatprep.subr.bf16.mxu0 0
    %5759 = vmatpush1.bf16.msra.mxu0 0
    %5760 = vmatprep.subr.bf16.mxu0 0
    %5761 = vmatpush1.bf16.msra.mxu0 0
    %5762 = vmatprep.subr.bf16.mxu0 0
    %5763 = vmatpush1.bf16.msra.mxu0 0
    %5764 = vmatprep.subr.bf16.mxu0 0
    %5765 = vmatpush1.bf16.msra.mxu0 0
    %5766 = vmatprep.subr.bf16.mxu0 0
    %5767 = vmatpush1.bf16.msra.mxu0 0
    %5768 = vmatprep.subr.bf16.mxu0 0
    %5769 = vmatpush1.bf16.msra.mxu0 0
    %5770 = vmatprep.subr.bf16.mxu0 0
    %5771 = vmatpush1.bf16.msra.mxu0 0
    %5772 = vmatprep.subr.bf16.mxu0 0
    %5773 = vmatpush1.bf16.msra.mxu0 0
    %5774 = vmatprep.subr.bf16.mxu0 0
    %5775 = vmatpush1.bf16.msra.mxu0 0
    %5776 = vmatprep.subr.bf16.mxu0 0
    %5777 = vmatpush1.bf16.msra.mxu0 0
    %5778 = vmatprep.subr.bf16.mxu0 0
    %5779 = vmatpush1.bf16.msra.mxu0 0
    %5780 = vmatprep.subr.bf16.mxu0 0
    %5781 = vmatpush1.bf16.msra.mxu0 0
    %5782 = vmatprep.subr.bf16.mxu0 0
    %5783 = vmatpush1.bf16.msra.mxu0 0
    %5784 = vmatprep.subr.bf16.mxu0 0
    %5785 = vmatpush1.bf16.msra.mxu0 0
    %5786 = vmatprep.subr.bf16.mxu0 0
    %5787 = vmatpush1.bf16.msra.mxu0 0
    %5788 = vmatprep.mubr.bf16.mxu0 0
    %5789 = vmatmul.mubr.bf16.gmra.mrb[0].mxu0 %v5754
    %v5790 = vpop.f32.mrb[0].mxu0
    %v5791 = vadd.f32 0.0, %v5790
    %v5792 = vpop.f32.mrb[0].mxu0
    %v5793 = vpop.f32.mrb[0].mxu0
    %v5794 = vadd.f32 0.0, %v5793
    %v5795 = vpop.f32.mrb[0].mxu0
    %5796 = vdwg.mxu0
    %5797 = vrot.lane.b32.xlu0 %v1164, 40
    %v5798 = vpop.permute.xlu0 %5797
    %v5801 = vsel %vm974, %v5559, 0
    %5803 = vmatprep.subr.bf16.mxu0 0
    %5804 = vmatpush1.bf16.msra.mxu0 %v5798
    %5805 = vmatprep.subr.bf16.mxu0 0
    %5806 = vmatpush1.bf16.msra.mxu0 0
    %5807 = vmatprep.subr.bf16.mxu0 0
    %5808 = vmatpush1.bf16.msra.mxu0 0
    %5809 = vmatprep.subr.bf16.mxu0 0
    %5810 = vmatpush1.bf16.msra.mxu0 0
    %5811 = vmatprep.subr.bf16.mxu0 0
    %5812 = vmatpush1.bf16.msra.mxu0 0
    %5813 = vmatprep.subr.bf16.mxu0 0
    %5814 = vmatpush1.bf16.msra.mxu0 0
    %5815 = vmatprep.subr.bf16.mxu0 0
    %5816 = vmatpush1.bf16.msra.mxu0 0
    %5817 = vmatprep.subr.bf16.mxu0 0
    %5818 = vmatpush1.bf16.msra.mxu0 0
    %5819 = vmatprep.subr.bf16.mxu0 0
    %5820 = vmatpush1.bf16.msra.mxu0 0
    %5821 = vmatprep.subr.bf16.mxu0 0
    %5822 = vmatpush1.bf16.msra.mxu0 0
    %5823 = vmatprep.subr.bf16.mxu0 0
    %5824 = vmatpush1.bf16.msra.mxu0 0
    %5825 = vmatprep.subr.bf16.mxu0 0
    %5826 = vmatpush1.bf16.msra.mxu0 0
    %5827 = vmatprep.subr.bf16.mxu0 0
    %5828 = vmatpush1.bf16.msra.mxu0 0
    %5829 = vmatprep.subr.bf16.mxu0 0
    %5830 = vmatpush1.bf16.msra.mxu0 0
    %5831 = vmatprep.subr.bf16.mxu0 0
    %5832 = vmatpush1.bf16.msra.mxu0 0
    %5833 = vmatprep.subr.bf16.mxu0 0
    %5834 = vmatpush1.bf16.msra.mxu0 0
    %5835 = vmatprep.mubr.bf16.mxu0 0
    %5836 = vmatmul.mubr.bf16.gmra.mrb[0].mxu0 %v5801
    %v5837 = vpop.f32.mrb[0].mxu0
    %v5838 = vadd.f32 0.0, %v5837
    %v5839 = vpop.f32.mrb[0].mxu0
    %v5840 = vpop.f32.mrb[0].mxu0
    %v5841 = vadd.f32 0.0, %v5840
    %v5842 = vpop.f32.mrb[0].mxu0
    %5843 = vdwg.mxu0
    %5844 = vrot.lane.b32.xlu0 %v1165, 40
    %v5845 = vpop.permute.xlu0 %5844
    %v5848 = vsel %vm974, %v5560, 0
    %5850 = vmatprep.subr.bf16.mxu0 0
    %5851 = vmatpush1.bf16.msra.mxu0 %v5845
    %5852 = vmatprep.subr.bf16.mxu0 0
    %5853 = vmatpush1.bf16.msra.mxu0 0
    %5854 = vmatprep.subr.bf16.mxu0 0
    %5855 = vmatpush1.bf16.msra.mxu0 0
    %5856 = vmatprep.subr.bf16.mxu0 0
    %5857 = vmatpush1.bf16.msra.mxu0 0
    %5858 = vmatprep.subr.bf16.mxu0 0
    %5859 = vmatpush1.bf16.msra.mxu0 0
    %5860 = vmatprep.subr.bf16.mxu0 0
    %5861 = vmatpush1.bf16.msra.mxu0 0
    %5862 = vmatprep.subr.bf16.mxu0 0
    %5863 = vmatpush1.bf16.msra.mxu0 0
    %5864 = vmatprep.subr.bf16.mxu0 0
    %5865 = vmatpush1.bf16.msra.mxu0 0
    %5866 = vmatprep.subr.bf16.mxu0 0
    %5867 = vmatpush1.bf16.msra.mxu0 0
    %5868 = vmatprep.subr.bf16.mxu0 0
    %5869 = vmatpush1.bf16.msra.mxu0 0
    %5870 = vmatprep.subr.bf16.mxu0 0
    %5871 = vmatpush1.bf16.msra.mxu0 0
    %5872 = vmatprep.subr.bf16.mxu0 0
    %5873 = vmatpush1.bf16.msra.mxu0 0
    %5874 = vmatprep.subr.bf16.mxu0 0
    %5875 = vmatpush1.bf16.msra.mxu0 0
    %5876 = vmatprep.subr.bf16.mxu0 0
    %5877 = vmatpush1.bf16.msra.mxu0 0
    %5878 = vmatprep.subr.bf16.mxu0 0
    %5879 = vmatpush1.bf16.msra.mxu0 0
    %5880 = vmatprep.subr.bf16.mxu0 0
    %5881 = vmatpush1.bf16.msra.mxu0 0
    %5882 = vmatprep.mubr.bf16.mxu0 0
    %5883 = vmatmul.mubr.bf16.gmra.mrb[0].mxu0 %v5848
    %v5884 = vpop.f32.mrb[0].mxu0
    %v5885 = vadd.f32 0.0, %v5884
    %v5886 = vpop.f32.mrb[0].mxu0
    %v5887 = vpop.f32.mrb[0].mxu0
    %v5888 = vadd.f32 0.0, %v5887
    %v5889 = vpop.f32.mrb[0].mxu0
    %5890 = vdwg.mxu0
    %5891 = vrot.lane.b32.xlu0 %v1166, 40
    %v5892 = vpop.permute.xlu0 %5891
    %v5895 = vsel %vm974, %v5561, 0
    %5897 = vmatprep.subr.bf16.mxu0 0
    %5898 = vmatpush1.bf16.msra.mxu0 %v5892
    %5899 = vmatprep.subr.bf16.mxu0 0
    %5900 = vmatpush1.bf16.msra.mxu0 0
    %5901 = vmatprep.subr.bf16.mxu0 0
    %5902 = vmatpush1.bf16.msra.mxu0 0
    %5903 = vmatprep.subr.bf16.mxu0 0
    %5904 = vmatpush1.bf16.msra.mxu0 0
    %5905 = vmatprep.subr.bf16.mxu0 0
    %5906 = vmatpush1.bf16.msra.mxu0 0
    %5907 = vmatprep.subr.bf16.mxu0 0
    %5908 = vmatpush1.bf16.msra.mxu0 0
    %5909 = vmatprep.subr.bf16.mxu0 0
    %5910 = vmatpush1.bf16.msra.mxu0 0
    %5911 = vmatprep.subr.bf16.mxu0 0
    %5912 = vmatpush1.bf16.msra.mxu0 0
    %5913 = vmatprep.subr.bf16.mxu0 0
    %5914 = vmatpush1.bf16.msra.mxu0 0
    %5915 = vmatprep.subr.bf16.mxu0 0
    %5916 = vmatpush1.bf16.msra.mxu0 0
    %5917 = vmatprep.subr.bf16.mxu0 0
    %5918 = vmatpush1.bf16.msra.mxu0 0
    %5919 = vmatprep.subr.bf16.mxu0 0
    %5920 = vmatpush1.bf16.msra.mxu0 0
    %5921 = vmatprep.subr.bf16.mxu0 0
    %5922 = vmatpush1.bf16.msra.mxu0 0
    %5923 = vmatprep.subr.bf16.mxu0 0
    %5924 = vmatpush1.bf16.msra.mxu0 0
    %5925 = vmatprep.subr.bf16.mxu0 0
    %5926 = vmatpush1.bf16.msra.mxu0 0
    %5927 = vmatprep.subr.bf16.mxu0 0
    %5928 = vmatpush1.bf16.msra.mxu0 0
    %5929 = vmatprep.mubr.bf16.mxu0 0
    %5930 = vmatmul.mubr.bf16.gmra.mrb[0].mxu0 %v5895
    %v5931 = vpop.f32.mrb[0].mxu0
    %v5932 = vadd.f32 0.0, %v5931
    %v5933 = vpop.f32.mrb[0].mxu0
    %v5934 = vpop.f32.mrb[0].mxu0
    %v5935 = vadd.f32 0.0, %v5934
    %v5936 = vpop.f32.mrb[0].mxu0
    %5937 = vdwg.mxu0
    %v5938 = vpack.c.bf16 %v5606, %v5603
    %v5939 = vpack.c.bf16 %v5653, %v5650
    %v5940 = vpack.c.bf16 %v5700, %v5697
    %v5941 = vpack.c.bf16 %v5747, %v5744
    %v5942 = vpack.c.bf16 %v5794, %v5791
    %v5943 = vpack.c.bf16 %v5841, %v5838
    %v5944 = vpack.c.bf16 %v5888, %v5885
    %v5945 = vpack.c.bf16 %v5935, %v5932
    %s5946 = scalar_lea.vmem %s5, 12
    %v5947 = vld [vmem:[%s5946] sm:$0xf]
    %v5949 = vsel %vm267, %v5938, 0
    %v5952 = vsel %vm267, %v5939, 0
    %v5955 = vsel %vm267, %v5940, 0
    %v5958 = vsel %vm267, %v5941, 0
    %v5961 = vsel %vm267, %v5942, 0
    %v5964 = vsel %vm267, %v5943, 0
    %v5967 = vsel %vm267, %v5944, 0
    %v5970 = vsel %vm267, %v5945, 0
    %v5973 = vsel %vm2917, %v5947, 0
    %5975 = vmatprep.subr.bf16.mxu0 0
    %5976 = vmatpush1.bf16.msra.mxu0 %v5973
    %5977 = vmatprep.subr.bf16.mxu0 0
    %5978 = vmatpush1.bf16.msra.mxu0 0
    %5979 = vmatprep.subr.bf16.mxu0 0
    %5980 = vmatpush1.bf16.msra.mxu0 0
    %5981 = vmatprep.subr.bf16.mxu0 0
    %5982 = vmatpush1.bf16.msra.mxu0 0
    %5983 = vmatprep.subr.bf16.mxu0 0
    %5984 = vmatpush1.bf16.msra.mxu0 0
    %5985 = vmatprep.subr.bf16.mxu0 0
    %5986 = vmatpush1.bf16.msra.mxu0 0
    %5987 = vmatprep.subr.bf16.mxu0 0
    %5988 = vmatpush1.bf16.msra.mxu0 0
    %5989 = vmatprep.subr.bf16.mxu0 0
    %5990 = vmatpush1.bf16.msra.mxu0 0
    %5991 = vmatprep.subr.bf16.mxu0 0
    %5992 = vmatpush1.bf16.msra.mxu0 0
    %5993 = vmatprep.subr.bf16.mxu0 0
    %5994 = vmatpush1.bf16.msra.mxu0 0
    %5995 = vmatprep.subr.bf16.mxu0 0
    %5996 = vmatpush1.bf16.msra.mxu0 0
    %5997 = vmatprep.subr.bf16.mxu0 0
    %5998 = vmatpush1.bf16.msra.mxu0 0
    %5999 = vmatprep.subr.bf16.mxu0 0
    %6000 = vmatpush1.bf16.msra.mxu0 0
    %6001 = vmatprep.subr.bf16.mxu0 0
    %6002 = vmatpush1.bf16.msra.mxu0 0
    %6003 = vmatprep.subr.bf16.mxu0 0
    %6004 = vmatpush1.bf16.msra.mxu0 0
    %6005 = vmatprep.subr.bf16.mxu0 0
    %6006 = vmatpush1.bf16.msra.mxu0 0
    %6007 = vmatprep.mubr.bf16.mxu0 0
    %6008 = vmatmul.mubr.bf16.gmra.mrb[0].mxu0 %v5949
    %v6009 = vpop.f32.mrb[0].mxu0
    %v6010 = vadd.f32 0.0, %v6009
    %v6011 = vpop.f32.mrb[0].mxu0
    %v6012 = vpop.f32.mrb[0].mxu0
    %v6013 = vadd.f32 0.0, %v6012
    %v6014 = vpop.f32.mrb[0].mxu0
    %6015 = vmatprep.mubr.bf16.mxu0 0
    %6016 = vmatmul.mubr.bf16.gmra.mrb[0].mxu0 %v5952
    %v6017 = vpop.f32.mrb[0].mxu0
    %v6018 = vadd.f32 0.0, %v6017
    %v6019 = vpop.f32.mrb[0].mxu0
    %v6020 = vpop.f32.mrb[0].mxu0
    %v6021 = vadd.f32 0.0, %v6020
    %v6022 = vpop.f32.mrb[0].mxu0
    %6023 = vmatprep.mubr.bf16.mxu0 0
    %6024 = vmatmul.mubr.bf16.gmra.mrb[0].mxu0 %v5955
    %v6025 = vpop.f32.mrb[0].mxu0
    %v6026 = vadd.f32 0.0, %v6025
    %v6027 = vpop.f32.mrb[0].mxu0
    %v6028 = vpop.f32.mrb[0].mxu0
    %v6029 = vadd.f32 0.0, %v6028
    %v6030 = vpop.f32.mrb[0].mxu0
    %6031 = vmatprep.mubr.bf16.mxu0 0
    %6032 = vmatmul.mubr.bf16.gmra.mrb[0].mxu0 %v5958
    %v6033 = vpop.f32.mrb[0].mxu0
    %v6034 = vadd.f32 0.0, %v6033
    %v6035 = vpop.f32.mrb[0].mxu0
    %v6036 = vpop.f32.mrb[0].mxu0
    %v6037 = vadd.f32 0.0, %v6036
    %v6038 = vpop.f32.mrb[0].mxu0
    %6039 = vmatprep.mubr.bf16.mxu0 0
    %6040 = vmatmul.mubr.bf16.gmra.mrb[0].mxu0 %v5961
    %v6041 = vpop.f32.mrb[0].mxu0
    %v6042 = vadd.f32 0.0, %v6041
    %v6043 = vpop.f32.mrb[0].mxu0
    %v6044 = vpop.f32.mrb[0].mxu0
    %v6045 = vadd.f32 0.0, %v6044
    %v6046 = vpop.f32.mrb[0].mxu0
    %6047 = vmatprep.mubr.bf16.mxu0 0
    %6048 = vmatmul.mubr.bf16.gmra.mrb[0].mxu0 %v5964
    %v6049 = vpop.f32.mrb[0].mxu0
    %v6050 = vadd.f32 0.0, %v6049
    %v6051 = vpop.f32.mrb[0].mxu0
    %v6052 = vpop.f32.mrb[0].mxu0
    %v6053 = vadd.f32 0.0, %v6052
    %v6054 = vpop.f32.mrb[0].mxu0
    %6055 = vmatprep.mubr.bf16.mxu0 0
    %6056 = vmatmul.mubr.bf16.gmra.mrb[0].mxu0 %v5967
    %v6057 = vpop.f32.mrb[0].mxu0
    %v6058 = vadd.f32 0.0, %v6057
    %v6059 = vpop.f32.mrb[0].mxu0
    %v6060 = vpop.f32.mrb[0].mxu0
    %v6061 = vadd.f32 0.0, %v6060
    %v6062 = vpop.f32.mrb[0].mxu0
    %6063 = vmatprep.mubr.bf16.mxu0 0
    %6064 = vmatmul.mubr.bf16.gmra.mrb[0].mxu0 %v5970
    %v6065 = vpop.f32.mrb[0].mxu0
    %v6066 = vadd.f32 0.0, %v6065
    %v6067 = vpop.f32.mrb[0].mxu0
    %v6068 = vpop.f32.mrb[0].mxu0
    %v6069 = vadd.f32 0.0, %v6068
    %v6070 = vpop.f32.mrb[0].mxu0
    %6071 = vdwg.mxu0
    %v6072 = vadd.f32 %v4599, %v6010
    %v6073 = vadd.f32 %v4600, %v6013
    %v6074 = vadd.f32 %v4601, %v6018
    %v6075 = vadd.f32 %v4602, %v6021
    %v6076 = vadd.f32 %v4603, %v6026
    %v6077 = vadd.f32 %v4604, %v6029
    %v6078 = vadd.f32 %v4605, %v6034
    %v6079 = vadd.f32 %v4606, %v6037
    %v6080 = vadd.f32 %v4607, %v6042
    %v6081 = vadd.f32 %v4608, %v6045
    %v6082 = vadd.f32 %v4609, %v6050
    %v6083 = vadd.f32 %v4610, %v6053
    %v6084 = vadd.f32 %v4611, %v6058
    %v6085 = vadd.f32 %v4612, %v6061
    %v6086 = vadd.f32 %v4613, %v6066
    %v6087 = vadd.f32 %v4614, %v6069
    %v6088 = vld [vmem:[%s6] sm:$0x1]
    %v6090 = vlaneseq
    %v6091 = vshrl.u32 %v6090, 7
    %v6092 = vsub.s32 0, %v6091
    %v6093 = vrot.slane %v6088, %v6092
    %v6095 = vadd.f32 %v6072, %v6093
    %v6096 = vadd.f32 %v6073, %v6093
    %v6097 = vadd.f32 %v6074, %v6093
    %v6098 = vadd.f32 %v6075, %v6093
    %v6099 = vadd.f32 %v6076, %v6093
    %v6100 = vadd.f32 %v6077, %v6093
    %v6101 = vadd.f32 %v6078, %v6093
    %v6102 = vadd.f32 %v6079, %v6093
    %v6103 = vadd.f32 %v6080, %v6093
    %v6104 = vadd.f32 %v6081, %v6093
    %v6105 = vadd.f32 %v6082, %v6093
    %v6106 = vadd.f32 %v6083, %v6093
    %v6107 = vadd.f32 %v6084, %v6093
    %v6108 = vadd.f32 %v6085, %v6093
    %v6109 = vadd.f32 %v6086, %v6093
    %v6110 = vadd.f32 %v6087, %v6093
    %6111 = vst.msk [vmem:[#allocation10] sm:$0xff] %vm129, %v6095
    %6112 = vst.msk [vmem:[#allocation10 + $0x8] sm:$0xff] %vm129, %v6096
    %6113 = vst.msk [vmem:[#allocation10 + $0x10] sm:$0xff] %vm129, %v6097
    %6114 = vst.msk [vmem:[#allocation10 + $0x18] sm:$0xff] %vm129, %v6098
    %6115 = vst.msk [vmem:[#allocation10 + $0x20] sm:$0xff] %vm129, %v6099
    %6116 = vst.msk [vmem:[#allocation10 + $0x28] sm:$0xff] %vm129, %v6100
    %6117 = vst.msk [vmem:[#allocation10 + $0x30] sm:$0xff] %vm129, %v6101
    %6118 = vst.msk [vmem:[#allocation10 + $0x38] sm:$0xff] %vm129, %v6102
    %6119 = vst.msk [vmem:[#allocation10 + $0x40] sm:$0xff] %vm129, %v6103
    %6120 = vst.msk [vmem:[#allocation10 + $0x48] sm:$0xff] %vm129, %v6104
    %6121 = vst.msk [vmem:[#allocation10 + $0x50] sm:$0xff] %vm129, %v6105
    %6122 = vst.msk [vmem:[#allocation10 + $0x58] sm:$0xff] %vm129, %v6106
    %6123 = vst.msk [vmem:[#allocation10 + $0x60] sm:$0xff] %vm129, %v6107
    %6124 = vst.msk [vmem:[#allocation10 + $0x68] sm:$0xff] %vm129, %v6108
    %6125 = vst.msk [vmem:[#allocation10 + $0x70] sm:$0xff] %vm129, %v6109
    %6126 = vst.msk [vmem:[#allocation10 + $0x78] sm:$0xff] %vm129, %v6110
    // Predicated region
    $region46: #{tpu_custom_call.1} parent=1 // pred_check
      _
    $region47: #{tpu_custom_call.1} parent=1 // pred_check_branch
      %6128 = sbr.rel (0) target = $region49
    $region48: #{tpu_custom_call.1} parent=1 // pred_region
      %s6130 = ssub.s32 2048, 2048
      %6131 = vsyncadd [#allocation4], %s6130
      %s6132 = sshll.u32 [#allocation10], 4
      %s6133 = int_to_ptr.vmem [resolvable:$true] %s6132
      %6138 = dma.vmem_to_hbm [thread:$0]  %s6133, 2048, %s7, [#allocation4], 128, 128, 8
    $region49: #{tpu_custom_call.1} parent=1 // pred_fallthru
      _
    // Predicated region
    $region50: #{tpu_custom_call.1} parent=1 // pred_check
      _
    $region51: #{tpu_custom_call.1} parent=1 // pred_check_branch
      %6140 = sbr.rel (0) target = $region53
    $region52: #{tpu_custom_call.1} parent=1 // pred_region
      %6141 = dma.done [#allocation4], 2048
    $region53: #{tpu_custom_call.1} parent=1 // pred_fallthru
      _
    %6142 = vsyncpa [#allocation3], 1
    %6143 = vsyncpa [#allocation7], 1
    %6144 = vsyncpa [#allocation4], 1
    %6145 = vsyncpa [#allocation5], 1

</llo_original>
